<compile_context>
chip_gen: v5e
topology: v5e:2x2
jax: 0.10.0
libtpu: 0.0.40
codegen_flags: <defaults>
</compile_context>

<pallas_src>
import numpy as np
import jax
import jax.numpy as jnp
from jax.experimental import pallas as pl
from jax.experimental.pallas import tpu as pltpu


# ----------------------------------------------------------------------------
# Fused kernel: F chained LSTMs + sigmoid(Linear(H,1)) heads, all in VMEM.
# ----------------------------------------------------------------------------
def _make_controller_kernel(F, N, H):
    def kernel(x_ref, wih_ref, whh_ref, b_ref, wd_ref, bd_ref, h0_ref, c0_ref,
               d_ref, h_out_ref, c_out_ref,
               ybuf_a, ybuf_b, gbuf):
        h = h0_ref[...]            # (N, H)
        c = c0_ref[...]            # (N, H)
        bufs = (ybuf_a, ybuf_b)

        # F and N are small & static -> fully unrolled trace.
        # TODO(synk): switch the time loop to lax.fori_loop with a VMEM carry if T grows >~32.
        for f in range(F):
            wih = wih_ref[f]       # (H, 4H)
            whh = whh_ref[f]       # (H, 4H)
            bias = b_ref[f]        # (1, 4H)
            src = x_ref if f == 0 else bufs[(f - 1) % 2]
            dst = bufs[f % 2] if (f + 1) < F else None   # last feature's y is never needed

            # Hoisted input projection for ALL timesteps of this feature:
            # src row b*N + t holds x_f[b, t]  ->  same row of gbuf holds its gate input.
            gbuf[...] = (jnp.dot(src[...], wih, preferred_element_type=jnp.float32)
                         + bias)                                     # (N*N, 4H)

            for t in range(N):
                # rows {t + j*N} = timestep t of every sequence j; this strided gather is
                # exactly the permute(1,0,2) between features, done entirely in VMEM.
                gx = gbuf[pl.ds(t, N, stride=N), :]                   # (N, 4H)
                gates = gx + jnp.dot(h, whh, preferred_element_type=jnp.float32)
                i_g = jax.nn.sigmoid(gates[:, 0 * H:1 * H])
                f_g = jax.nn.sigmoid(gates[:, 1 * H:2 * H])
                g_g = jnp.tanh(gates[:, 2 * H:3 * H])
                o_g = jax.nn.sigmoid(gates[:, 3 * H:4 * H])
                c = f_g * c + i_g * g_g
                h = o_g * jnp.tanh(c)
                if dst is not None:
                    # next feature's batch-major flat input: row t*N + j = h_t[j]
                    dst[pl.ds(t * N, N), :] = h                       # contiguous store

            # Linear(H, 1) head on the final hidden state, then sigmoid (VPU + lane reduce).
            head = jax.nn.sigmoid(
                jnp.sum(h * wd_ref[f], axis=-1, keepdims=True) + bd_ref[f])   # (N, 1)
            d_ref[f] = head

        h_out_ref[...] = h
        c_out_ref[...] = c

    return kernel


# ----------------------------------------------------------------------------
# ControllerNet forward (matches the PyTorch module, including the permute chain)
# ----------------------------------------------------------------------------
def controller_net_forward(x, state, params):
    """x: (B, T, H) batch-first; state = (h0, c0), each (1, B, H); requires B == T."""
    h0, c0 = state
    B, T, H = x.shape
    assert B == T, "ControllerNet's permute chain requires batch == seq"
    F = params["wih"].shape[0]
    N = B
    x2d = x.reshape(N * N, H)      # batch-major flat: row b*N + t = x[b, t]

    vmem = pl.BlockSpec(memory_space=pltpu.MemorySpace.VMEM)
    d, h_n, c_n = pl.pallas_call(
        _make_controller_kernel(F, N, H),
        out_shape=(
            jax.ShapeDtypeStruct((F, N, 1), jnp.float32),   # sigmoid(dense_f(h_n)) per feature
            jax.ShapeDtypeStruct((N, H), jnp.float32),      # final h
            jax.ShapeDtypeStruct((N, H), jnp.float32),      # final c
        ),
        in_specs=[vmem] * 8,
        out_specs=(vmem, vmem, vmem),
        scratch_shapes=[
            pltpu.VMEM((N * N, H), jnp.float32),            # inter-feature activations (ping)
            pltpu.VMEM((N * N, H), jnp.float32),            # inter-feature activations (pong)
            pltpu.VMEM((N * N, 4 * H), jnp.float32),        # hoisted projected gates
        ],
    )(x2d, params["wih"], params["whh"], params["b"], params["wd"], params["bd"],
      h0[0], c0[0])

    outputs = [d[f] for f in range(F)]
    return outputs, (h_n[None], c_n[None])


controller_net_forward_jit = jax.jit(controller_net_forward)


# ----------------------------------------------------------------------------
# Pure-JAX reference (explicit permute between features) for correctness check.
# ----------------------------------------------------------------------------
def reference_forward(x, state, params):
    h0, c0 = state
    h, c = h0[0], c0[0]
    F = params["wih"].shape[0]
    outputs = []
    x_bf = x
    for f in range(F):
        T = x_bf.shape[1]
        H = h.shape[1]
        wih, whh, b = params["wih"][f], params["whh"][f], params["b"][f]
        ys = []
        for t in range(T):
            x_t = x_bf[:, t, :]
            gates = x_t @ wih + h @ whh + b
            i_g = jax.nn.sigmoid(gates[:, :H])
            f_g = jax.nn.sigmoid(gates[:, H:2 * H])
            g_g = jnp.tanh(gates[:, 2 * H:3 * H])
            o_g = jax.nn.sigmoid(gates[:, 3 * H:])
            c = f_g * c + i_g * g_g
            h = o_g * jnp.tanh(c)
            ys.append(h)
        y_bf = jnp.stack(ys, axis=1)                 # (B, T, H)
        x_bf = jnp.transpose(y_bf, (1, 0, 2))        # .permute(1, 0, 2)
        outputs.append(jax.nn.sigmoid(h @ params["wd"][f].T + params["bd"][f]))
    return outputs, (h[None], c[None])


def init_params(key, num_of_features, H):
    k = 1.0 / np.sqrt(H)
    wihs, whhs, bs, wds, bds = [], [], [], [], []
    for _ in range(num_of_features):
        key, *ks = jax.random.split(key, 7)
        w_ih = jax.random.uniform(ks[0], (4 * H, H), jnp.float32, -k, k)
        w_hh = jax.random.uniform(ks[1], (4 * H, H), jnp.float32, -k, k)
        b_ih = jax.random.uniform(ks[2], (4 * H,), jnp.float32, -k, k)
        b_hh = jax.random.uniform(ks[3], (4 * H,), jnp.float32, -k, k)
        w_d = jax.random.uniform(ks[4], (1, H), jnp.float32, -k, k)
        b_d = jax.random.uniform(ks[5], (1,), jnp.float32, -k, k)
        wihs.append(w_ih.T)                 # (H, 4H)
        whhs.append(w_hh.T)                 # (H, 4H)
        bs.append((b_ih + b_hh)[None, :])   # (1, 4H)
        wds.append(w_d)                     # (1, H)
        bds.append(b_d[None, :])            # (1, 1)
    return {
        "wih": jnp.stack(wihs), "whh": jnp.stack(whhs), "b": jnp.stack(bs),
        "wd": jnp.stack(wds), "bd": jnp.stack(bds),
    }


if __name__ == "__main__":
    NUM_FEATURES = 3
    H = 32          # lstmcell_hidden_size
    B = T = 8       # batch == seq (required by the module's permute chain)

    key = jax.random.PRNGKey(0)
    kx, kh, kc, kp = jax.random.split(key, 4)
    x = jax.random.normal(kx, (B, T, H), jnp.float32)
    h0 = jax.random.normal(kh, (1, B, H), jnp.float32)
    c0 = jax.random.normal(kc, (1, B, H), jnp.float32)
    params = init_params(kp, NUM_FEATURES, H)

    outs, (hN, cN) = controller_net_forward_jit(x, (h0, c0), params)
    outs = [jax.block_until_ready(o) for o in outs]
    hN, cN = jax.block_until_ready(hN), jax.block_until_ready(cN)

    ref_outs, (ref_h, ref_c) = reference_forward(x, (h0, c0), params)
    for o, r in zip(outs, ref_outs):
        np.testing.assert_allclose(np.asarray(o), np.asarray(r), atol=1e-4, rtol=1e-4)
    np.testing.assert_allclose(np.asarray(hN), np.asarray(ref_h), atol=1e-4, rtol=1e-4)
    np.testing.assert_allclose(np.asarray(cN), np.asarray(ref_c), atol=1e-4, rtol=1e-4)

    print("KERNEL_OK")
</pallas_src>

<mosaic_0001>
module attributes {stable_mosaic.version = 11 : i64} {
  func.func @kernel(%arg0: memref<64x32xf32, #tpu.memory_space<vmem>>, %arg1: memref<3x32x128xf32, #tpu.memory_space<vmem>>, %arg2: memref<3x32x128xf32, #tpu.memory_space<vmem>>, %arg3: memref<3x1x128xf32, #tpu.memory_space<vmem>>, %arg4: memref<3x1x32xf32, #tpu.memory_space<vmem>>, %arg5: memref<3x1x1xf32, #tpu.memory_space<vmem>>, %arg6: memref<8x32xf32, #tpu.memory_space<vmem>>, %arg7: memref<8x32xf32, #tpu.memory_space<vmem>>, %arg8: memref<3x8x1xf32, #tpu.memory_space<vmem>>, %arg9: memref<8x32xf32, #tpu.memory_space<vmem>>, %arg10: memref<8x32xf32, #tpu.memory_space<vmem>>, %arg11: memref<64x32xf32, #tpu.memory_space<vmem>>, %arg12: memref<64x32xf32, #tpu.memory_space<vmem>>, %arg13: memref<64x128xf32, #tpu.memory_space<vmem>>) attributes {dimension_semantics = [], scalar_prefetch = 0 : i64, scratch_operands = 3 : i64, tpu.core_type = #tpu.core_type<tc>} {
    %c0 = arith.constant 0 : index
    %c0_0 = arith.constant 0 : index
    %0 = vector.load %arg6[%c0, %c0_0] : memref<8x32xf32, #tpu.memory_space<vmem>>, vector<8x32xf32>
    %c0_1 = arith.constant 0 : index
    %c0_2 = arith.constant 0 : index
    %1 = vector.load %arg7[%c0_1, %c0_2] : memref<8x32xf32, #tpu.memory_space<vmem>>, vector<8x32xf32>
    %c0_3 = arith.constant 0 : index
    %c0_4 = arith.constant 0 : index
    %c0_5 = arith.constant 0 : index
    %2 = vector.load %arg1[%c0_3, %c0_4, %c0_5] : memref<3x32x128xf32, #tpu.memory_space<vmem>>, vector<1x32x128xf32>
    %3 = vector.shape_cast %2 : vector<1x32x128xf32> to vector<32x128xf32>
    %c0_6 = arith.constant 0 : index
    %c0_7 = arith.constant 0 : index
    %c0_8 = arith.constant 0 : index
    %4 = vector.load %arg2[%c0_6, %c0_7, %c0_8] : memref<3x32x128xf32, #tpu.memory_space<vmem>>, vector<1x32x128xf32>
    %5 = vector.shape_cast %4 : vector<1x32x128xf32> to vector<32x128xf32>
    %c0_9 = arith.constant 0 : index
    %c0_10 = arith.constant 0 : index
    %c0_11 = arith.constant 0 : index
    %6 = vector.load %arg3[%c0_9, %c0_10, %c0_11] : memref<3x1x128xf32, #tpu.memory_space<vmem>>, vector<1x1x128xf32>
    %7 = vector.shape_cast %6 : vector<1x1x128xf32> to vector<1x128xf32>
    %c0_12 = arith.constant 0 : index
    %c0_13 = arith.constant 0 : index
    %8 = vector.load %arg0[%c0_12, %c0_13] : memref<64x32xf32, #tpu.memory_space<vmem>>, vector<64x32xf32>
    %cst = arith.constant dense<0.000000e+00> : vector<64x128xf32>
    %9 = tpu.matmul %8, %3, %cst {dimension_numbers = #tpu.dot_dimension_numbers<[1], [0], [0], [1], [0, 0, 1, 1], [], []>} : vector<64x32xf32>, vector<32x128xf32>, vector<64x128xf32> -> vector<64x128xf32>
    %10 = vector.broadcast %7 : vector<1x128xf32> to vector<64x128xf32>
    %11 = arith.addf %9, %10 : vector<64x128xf32>
    %c0_14 = arith.constant 0 : index
    %c0_15 = arith.constant 0 : index
    %12 = vector.load %arg13[%c0_14, %c0_15] : memref<64x128xf32, #tpu.memory_space<vmem>>, vector<64x128xf32>
    tpu.vector_store %arg13[%c0_14, %c0_15], %11 {strides = array<i32>} : memref<64x128xf32, #tpu.memory_space<vmem>>, vector<64x128xf32>,
    %c0_16 = arith.constant 0 : index
    %c0_17 = arith.constant 0 : index
    %13 = tpu.strided_load %arg13[%c0_16, %c0_17] {strides = array<i32: 8, 1>} : memref<64x128xf32, #tpu.memory_space<vmem>>, vector<8x128xf32>
    %cst_18 = arith.constant dense<0.000000e+00> : vector<8x128xf32>
    %14 = tpu.matmul %0, %5, %cst_18 {dimension_numbers = #tpu.dot_dimension_numbers<[1], [0], [0], [1], [0, 0, 1, 1], [], []>} : vector<8x32xf32>, vector<32x128xf32>, vector<8x128xf32> -> vector<8x128xf32>
    %15 = arith.addf %13, %14 : vector<8x128xf32>
    %16 = vector.extract_strided_slice %15 {offsets = [0, 0], sizes = [8, 32], strides = [1, 1]} : vector<8x128xf32> to vector<8x32xf32>
    %17 = arith.negf %16 : vector<8x32xf32>
    %18 = math.exp %17 : vector<8x32xf32>
    %cst_19 = arith.constant 1.000000e+00 : f32
    %19 = vector.broadcast %cst_19 : f32 to vector<8x32xf32>
    %20 = arith.addf %19, %18 : vector<8x32xf32>
    %21 = arith.divf %19, %20 : vector<8x32xf32>
    %22 = vector.extract_strided_slice %15 {offsets = [0, 32], sizes = [8, 32], strides = [1, 1]} : vector<8x128xf32> to vector<8x32xf32>
    %23 = arith.negf %22 : vector<8x32xf32>
    %24 = math.exp %23 : vector<8x32xf32>
    %cst_20 = arith.constant 1.000000e+00 : f32
    %25 = vector.broadcast %cst_20 : f32 to vector<8x32xf32>
    %26 = arith.addf %25, %24 : vector<8x32xf32>
    %27 = arith.divf %25, %26 : vector<8x32xf32>
    %28 = vector.extract_strided_slice %15 {offsets = [0, 64], sizes = [8, 32], strides = [1, 1]} : vector<8x128xf32> to vector<8x32xf32>
    %29 = math.tanh %28 : vector<8x32xf32>
    %30 = vector.extract_strided_slice %15 {offsets = [0, 96], sizes = [8, 32], strides = [1, 1]} : vector<8x128xf32> to vector<8x32xf32>
    %31 = arith.negf %30 : vector<8x32xf32>
    %32 = math.exp %31 : vector<8x32xf32>
    %cst_21 = arith.constant 1.000000e+00 : f32
    %33 = vector.broadcast %cst_21 : f32 to vector<8x32xf32>
    %34 = arith.addf %33, %32 : vector<8x32xf32>
    %35 = arith.divf %33, %34 : vector<8x32xf32>
    %36 = arith.mulf %27, %1 : vector<8x32xf32>
    %37 = arith.mulf %21, %29 : vector<8x32xf32>
    %38 = arith.addf %36, %37 : vector<8x32xf32>
    %39 = math.tanh %38 : vector<8x32xf32>
    %40 = arith.mulf %35, %39 : vector<8x32xf32>
    %c0_22 = arith.constant 0 : index
    %c0_23 = arith.constant 0 : index
    %41 = vector.load %arg11[%c0_22, %c0_23] : memref<64x32xf32, #tpu.memory_space<vmem>>, vector<8x32xf32>
    tpu.vector_store %arg11[%c0_22, %c0_23], %40 {strides = array<i32>} : memref<64x32xf32, #tpu.memory_space<vmem>>, vector<8x32xf32>,
    %c1 = arith.constant 1 : index
    %c0_24 = arith.constant 0 : index
    %42 = tpu.strided_load %arg13[%c1, %c0_24] {strides = array<i32: 8, 1>} : memref<64x128xf32, #tpu.memory_space<vmem>>, vector<8x128xf32>
    %cst_25 = arith.constant dense<0.000000e+00> : vector<8x128xf32>
    %43 = tpu.matmul %40, %5, %cst_25 {dimension_numbers = #tpu.dot_dimension_numbers<[1], [0], [0], [1], [0, 0, 1, 1], [], []>} : vector<8x32xf32>, vector<32x128xf32>, vector<8x128xf32> -> vector<8x128xf32>
    %44 = arith.addf %42, %43 : vector<8x128xf32>
    %45 = vector.extract_strided_slice %44 {offsets = [0, 0], sizes = [8, 32], strides = [1, 1]} : vector<8x128xf32> to vector<8x32xf32>
    %46 = arith.negf %45 : vector<8x32xf32>
    %47 = math.exp %46 : vector<8x32xf32>
    %cst_26 = arith.constant 1.000000e+00 : f32
    %48 = vector.broadcast %cst_26 : f32 to vector<8x32xf32>
    %49 = arith.addf %48, %47 : vector<8x32xf32>
    %50 = arith.divf %48, %49 : vector<8x32xf32>
    %51 = vector.extract_strided_slice %44 {offsets = [0, 32], sizes = [8, 32], strides = [1, 1]} : vector<8x128xf32> to vector<8x32xf32>
    %52 = arith.negf %51 : vector<8x32xf32>
    %53 = math.exp %52 : vector<8x32xf32>
    %cst_27 = arith.constant 1.000000e+00 : f32
    %54 = vector.broadcast %cst_27 : f32 to vector<8x32xf32>
    %55 = arith.addf %54, %53 : vector<8x32xf32>
    %56 = arith.divf %54, %55 : vector<8x32xf32>
    %57 = vector.extract_strided_slice %44 {offsets = [0, 64], sizes = [8, 32], strides = [1, 1]} : vector<8x128xf32> to vector<8x32xf32>
    %58 = math.tanh %57 : vector<8x32xf32>
    %59 = vector.extract_strided_slice %44 {offsets = [0, 96], sizes = [8, 32], strides = [1, 1]} : vector<8x128xf32> to vector<8x32xf32>
    %60 = arith.negf %59 : vector<8x32xf32>
    %61 = math.exp %60 : vector<8x32xf32>
    %cst_28 = arith.constant 1.000000e+00 : f32
    %62 = vector.broadcast %cst_28 : f32 to vector<8x32xf32>
    %63 = arith.addf %62, %61 : vector<8x32xf32>
    %64 = arith.divf %62, %63 : vector<8x32xf32>
    %65 = arith.mulf %56, %38 : vector<8x32xf32>
    %66 = arith.mulf %50, %58 : vector<8x32xf32>
    %67 = arith.addf %65, %66 : vector<8x32xf32>
    %68 = math.tanh %67 : vector<8x32xf32>
    %69 = arith.mulf %64, %68 : vector<8x32xf32>
    %c8 = arith.constant 8 : index
    %c0_29 = arith.constant 0 : index
    %70 = vector.load %arg11[%c8, %c0_29] : memref<64x32xf32, #tpu.memory_space<vmem>>, vector<8x32xf32>
    tpu.vector_store %arg11[%c8, %c0_29], %69 {strides = array<i32>} : memref<64x32xf32, #tpu.memory_space<vmem>>, vector<8x32xf32>,
    %c2 = arith.constant 2 : index
    %c0_30 = arith.constant 0 : index
    %71 = tpu.strided_load %arg13[%c2, %c0_30] {strides = array<i32: 8, 1>} : memref<64x128xf32, #tpu.memory_space<vmem>>, vector<8x128xf32>
    %cst_31 = arith.constant dense<0.000000e+00> : vector<8x128xf32>
    %72 = tpu.matmul %69, %5, %cst_31 {dimension_numbers = #tpu.dot_dimension_numbers<[1], [0], [0], [1], [0, 0, 1, 1], [], []>} : vector<8x32xf32>, vector<32x128xf32>, vector<8x128xf32> -> vector<8x128xf32>
    %73 = arith.addf %71, %72 : vector<8x128xf32>
    %74 = vector.extract_strided_slice %73 {offsets = [0, 0], sizes = [8, 32], strides = [1, 1]} : vector<8x128xf32> to vector<8x32xf32>
    %75 = arith.negf %74 : vector<8x32xf32>
    %76 = math.exp %75 : vector<8x32xf32>
    %cst_32 = arith.constant 1.000000e+00 : f32
    %77 = vector.broadcast %cst_32 : f32 to vector<8x32xf32>
    %78 = arith.addf %77, %76 : vector<8x32xf32>
    %79 = arith.divf %77, %78 : vector<8x32xf32>
    %80 = vector.extract_strided_slice %73 {offsets = [0, 32], sizes = [8, 32], strides = [1, 1]} : vector<8x128xf32> to vector<8x32xf32>
    %81 = arith.negf %80 : vector<8x32xf32>
    %82 = math.exp %81 : vector<8x32xf32>
    %cst_33 = arith.constant 1.000000e+00 : f32
    %83 = vector.broadcast %cst_33 : f32 to vector<8x32xf32>
    %84 = arith.addf %83, %82 : vector<8x32xf32>
    %85 = arith.divf %83, %84 : vector<8x32xf32>
    %86 = vector.extract_strided_slice %73 {offsets = [0, 64], sizes = [8, 32], strides = [1, 1]} : vector<8x128xf32> to vector<8x32xf32>
    %87 = math.tanh %86 : vector<8x32xf32>
    %88 = vector.extract_strided_slice %73 {offsets = [0, 96], sizes = [8, 32], strides = [1, 1]} : vector<8x128xf32> to vector<8x32xf32>
    %89 = arith.negf %88 : vector<8x32xf32>
    %90 = math.exp %89 : vector<8x32xf32>
    %cst_34 = arith.constant 1.000000e+00 : f32
    %91 = vector.broadcast %cst_34 : f32 to vector<8x32xf32>
    %92 = arith.addf %91, %90 : vector<8x32xf32>
    %93 = arith.divf %91, %92 : vector<8x32xf32>
    %94 = arith.mulf %85, %67 : vector<8x32xf32>
    %95 = arith.mulf %79, %87 : vector<8x32xf32>
    %96 = arith.addf %94, %95 : vector<8x32xf32>
    %97 = math.tanh %96 : vector<8x32xf32>
    %98 = arith.mulf %93, %97 : vector<8x32xf32>
    %c16 = arith.constant 16 : index
    %c0_35 = arith.constant 0 : index
    %99 = vector.load %arg11[%c16, %c0_35] : memref<64x32xf32, #tpu.memory_space<vmem>>, vector<8x32xf32>
    tpu.vector_store %arg11[%c16, %c0_35], %98 {strides = array<i32>} : memref<64x32xf32, #tpu.memory_space<vmem>>, vector<8x32xf32>,
    %c3 = arith.constant 3 : index
    %c0_36 = arith.constant 0 : index
    %100 = tpu.strided_load %arg13[%c3, %c0_36] {strides = array<i32: 8, 1>} : memref<64x128xf32, #tpu.memory_space<vmem>>, vector<8x128xf32>
    %cst_37 = arith.constant dense<0.000000e+00> : vector<8x128xf32>
    %101 = tpu.matmul %98, %5, %cst_37 {dimension_numbers = #tpu.dot_dimension_numbers<[1], [0], [0], [1], [0, 0, 1, 1], [], []>} : vector<8x32xf32>, vector<32x128xf32>, vector<8x128xf32> -> vector<8x128xf32>
    %102 = arith.addf %100, %101 : vector<8x128xf32>
    %103 = vector.extract_strided_slice %102 {offsets = [0, 0], sizes = [8, 32], strides = [1, 1]} : vector<8x128xf32> to vector<8x32xf32>
    %104 = arith.negf %103 : vector<8x32xf32>
    %105 = math.exp %104 : vector<8x32xf32>
    %cst_38 = arith.constant 1.000000e+00 : f32
    %106 = vector.broadcast %cst_38 : f32 to vector<8x32xf32>
    %107 = arith.addf %106, %105 : vector<8x32xf32>
    %108 = arith.divf %106, %107 : vector<8x32xf32>
    %109 = vector.extract_strided_slice %102 {offsets = [0, 32], sizes = [8, 32], strides = [1, 1]} : vector<8x128xf32> to vector<8x32xf32>
    %110 = arith.negf %109 : vector<8x32xf32>
    %111 = math.exp %110 : vector<8x32xf32>
    %cst_39 = arith.constant 1.000000e+00 : f32
    %112 = vector.broadcast %cst_39 : f32 to vector<8x32xf32>
    %113 = arith.addf %112, %111 : vector<8x32xf32>
    %114 = arith.divf %112, %113 : vector<8x32xf32>
    %115 = vector.extract_strided_slice %102 {offsets = [0, 64], sizes = [8, 32], strides = [1, 1]} : vector<8x128xf32> to vector<8x32xf32>
    %116 = math.tanh %115 : vector<8x32xf32>
    %117 = vector.extract_strided_slice %102 {offsets = [0, 96], sizes = [8, 32], strides = [1, 1]} : vector<8x128xf32> to vector<8x32xf32>
    %118 = arith.negf %117 : vector<8x32xf32>
    %119 = math.exp %118 : vector<8x32xf32>
    %cst_40 = arith.constant 1.000000e+00 : f32
    %120 = vector.broadcast %cst_40 : f32 to vector<8x32xf32>
    %121 = arith.addf %120, %119 : vector<8x32xf32>
    %122 = arith.divf %120, %121 : vector<8x32xf32>
    %123 = arith.mulf %114, %96 : vector<8x32xf32>
    %124 = arith.mulf %108, %116 : vector<8x32xf32>
    %125 = arith.addf %123, %124 : vector<8x32xf32>
    %126 = math.tanh %125 : vector<8x32xf32>
    %127 = arith.mulf %122, %126 : vector<8x32xf32>
    %c24 = arith.constant 24 : index
    %c0_41 = arith.constant 0 : index
    %128 = vector.load %arg11[%c24, %c0_41] : memref<64x32xf32, #tpu.memory_space<vmem>>, vector<8x32xf32>
    tpu.vector_store %arg11[%c24, %c0_41], %127 {strides = array<i32>} : memref<64x32xf32, #tpu.memory_space<vmem>>, vector<8x32xf32>,
    %c4 = arith.constant 4 : index
    %c0_42 = arith.constant 0 : index
    %129 = tpu.strided_load %arg13[%c4, %c0_42] {strides = array<i32: 8, 1>} : memref<64x128xf32, #tpu.memory_space<vmem>>, vector<8x128xf32>
    %cst_43 = arith.constant dense<0.000000e+00> : vector<8x128xf32>
    %130 = tpu.matmul %127, %5, %cst_43 {dimension_numbers = #tpu.dot_dimension_numbers<[1], [0], [0], [1], [0, 0, 1, 1], [], []>} : vector<8x32xf32>, vector<32x128xf32>, vector<8x128xf32> -> vector<8x128xf32>
    %131 = arith.addf %129, %130 : vector<8x128xf32>
    %132 = vector.extract_strided_slice %131 {offsets = [0, 0], sizes = [8, 32], strides = [1, 1]} : vector<8x128xf32> to vector<8x32xf32>
    %133 = arith.negf %132 : vector<8x32xf32>
    %134 = math.exp %133 : vector<8x32xf32>
    %cst_44 = arith.constant 1.000000e+00 : f32
    %135 = vector.broadcast %cst_44 : f32 to vector<8x32xf32>
    %136 = arith.addf %135, %134 : vector<8x32xf32>
    %137 = arith.divf %135, %136 : vector<8x32xf32>
    %138 = vector.extract_strided_slice %131 {offsets = [0, 32], sizes = [8, 32], strides = [1, 1]} : vector<8x128xf32> to vector<8x32xf32>
    %139 = arith.negf %138 : vector<8x32xf32>
    %140 = math.exp %139 : vector<8x32xf32>
    %cst_45 = arith.constant 1.000000e+00 : f32
    %141 = vector.broadcast %cst_45 : f32 to vector<8x32xf32>
    %142 = arith.addf %141, %140 : vector<8x32xf32>
    %143 = arith.divf %141, %142 : vector<8x32xf32>
    %144 = vector.extract_strided_slice %131 {offsets = [0, 64], sizes = [8, 32], strides = [1, 1]} : vector<8x128xf32> to vector<8x32xf32>
    %145 = math.tanh %144 : vector<8x32xf32>
    %146 = vector.extract_strided_slice %131 {offsets = [0, 96], sizes = [8, 32], strides = [1, 1]} : vector<8x128xf32> to vector<8x32xf32>
    %147 = arith.negf %146 : vector<8x32xf32>
    %148 = math.exp %147 : vector<8x32xf32>
    %cst_46 = arith.constant 1.000000e+00 : f32
    %149 = vector.broadcast %cst_46 : f32 to vector<8x32xf32>
    %150 = arith.addf %149, %148 : vector<8x32xf32>
    %151 = arith.divf %149, %150 : vector<8x32xf32>
    %152 = arith.mulf %143, %125 : vector<8x32xf32>
    %153 = arith.mulf %137, %145 : vector<8x32xf32>
    %154 = arith.addf %152, %153 : vector<8x32xf32>
    %155 = math.tanh %154 : vector<8x32xf32>
    %156 = arith.mulf %151, %155 : vector<8x32xf32>
    %c32 = arith.constant 32 : index
    %c0_47 = arith.constant 0 : index
    %157 = vector.load %arg11[%c32, %c0_47] : memref<64x32xf32, #tpu.memory_space<vmem>>, vector<8x32xf32>
    tpu.vector_store %arg11[%c32, %c0_47], %156 {strides = array<i32>} : memref<64x32xf32, #tpu.memory_space<vmem>>, vector<8x32xf32>,
    %c5 = arith.constant 5 : index
    %c0_48 = arith.constant 0 : index
    %158 = tpu.strided_load %arg13[%c5, %c0_48] {strides = array<i32: 8, 1>} : memref<64x128xf32, #tpu.memory_space<vmem>>, vector<8x128xf32>
    %cst_49 = arith.constant dense<0.000000e+00> : vector<8x128xf32>
    %159 = tpu.matmul %156, %5, %cst_49 {dimension_numbers = #tpu.dot_dimension_numbers<[1], [0], [0], [1], [0, 0, 1, 1], [], []>} : vector<8x32xf32>, vector<32x128xf32>, vector<8x128xf32> -> vector<8x128xf32>
    %160 = arith.addf %158, %159 : vector<8x128xf32>
    %161 = vector.extract_strided_slice %160 {offsets = [0, 0], sizes = [8, 32], strides = [1, 1]} : vector<8x128xf32> to vector<8x32xf32>
    %162 = arith.negf %161 : vector<8x32xf32>
    %163 = math.exp %162 : vector<8x32xf32>
    %cst_50 = arith.constant 1.000000e+00 : f32
    %164 = vector.broadcast %cst_50 : f32 to vector<8x32xf32>
    %165 = arith.addf %164, %163 : vector<8x32xf32>
    %166 = arith.divf %164, %165 : vector<8x32xf32>
    %167 = vector.extract_strided_slice %160 {offsets = [0, 32], sizes = [8, 32], strides = [1, 1]} : vector<8x128xf32> to vector<8x32xf32>
    %168 = arith.negf %167 : vector<8x32xf32>
    %169 = math.exp %168 : vector<8x32xf32>
    %cst_51 = arith.constant 1.000000e+00 : f32
    %170 = vector.broadcast %cst_51 : f32 to vector<8x32xf32>
    %171 = arith.addf %170, %169 : vector<8x32xf32>
    %172 = arith.divf %170, %171 : vector<8x32xf32>
    %173 = vector.extract_strided_slice %160 {offsets = [0, 64], sizes = [8, 32], strides = [1, 1]} : vector<8x128xf32> to vector<8x32xf32>
    %174 = math.tanh %173 : vector<8x32xf32>
    %175 = vector.extract_strided_slice %160 {offsets = [0, 96], sizes = [8, 32], strides = [1, 1]} : vector<8x128xf32> to vector<8x32xf32>
    %176 = arith.negf %175 : vector<8x32xf32>
    %177 = math.exp %176 : vector<8x32xf32>
    %cst_52 = arith.constant 1.000000e+00 : f32
    %178 = vector.broadcast %cst_52 : f32 to vector<8x32xf32>
    %179 = arith.addf %178, %177 : vector<8x32xf32>
    %180 = arith.divf %178, %179 : vector<8x32xf32>
    %181 = arith.mulf %172, %154 : vector<8x32xf32>
    %182 = arith.mulf %166, %174 : vector<8x32xf32>
    %183 = arith.addf %181, %182 : vector<8x32xf32>
    %184 = math.tanh %183 : vector<8x32xf32>
    %185 = arith.mulf %180, %184 : vector<8x32xf32>
    %c40 = arith.constant 40 : index
    %c0_53 = arith.constant 0 : index
    %186 = vector.load %arg11[%c40, %c0_53] : memref<64x32xf32, #tpu.memory_space<vmem>>, vector<8x32xf32>
    tpu.vector_store %arg11[%c40, %c0_53], %185 {strides = array<i32>} : memref<64x32xf32, #tpu.memory_space<vmem>>, vector<8x32xf32>,
    %c6 = arith.constant 6 : index
    %c0_54 = arith.constant 0 : index
    %187 = tpu.strided_load %arg13[%c6, %c0_54] {strides = array<i32: 8, 1>} : memref<64x128xf32, #tpu.memory_space<vmem>>, vector<8x128xf32>
    %cst_55 = arith.constant dense<0.000000e+00> : vector<8x128xf32>
    %188 = tpu.matmul %185, %5, %cst_55 {dimension_numbers = #tpu.dot_dimension_numbers<[1], [0], [0], [1], [0, 0, 1, 1], [], []>} : vector<8x32xf32>, vector<32x128xf32>, vector<8x128xf32> -> vector<8x128xf32>
    %189 = arith.addf %187, %188 : vector<8x128xf32>
    %190 = vector.extract_strided_slice %189 {offsets = [0, 0], sizes = [8, 32], strides = [1, 1]} : vector<8x128xf32> to vector<8x32xf32>
    %191 = arith.negf %190 : vector<8x32xf32>
    %192 = math.exp %191 : vector<8x32xf32>
    %cst_56 = arith.constant 1.000000e+00 : f32
    %193 = vector.broadcast %cst_56 : f32 to vector<8x32xf32>
    %194 = arith.addf %193, %192 : vector<8x32xf32>
    %195 = arith.divf %193, %194 : vector<8x32xf32>
    %196 = vector.extract_strided_slice %189 {offsets = [0, 32], sizes = [8, 32], strides = [1, 1]} : vector<8x128xf32> to vector<8x32xf32>
    %197 = arith.negf %196 : vector<8x32xf32>
    %198 = math.exp %197 : vector<8x32xf32>
    %cst_57 = arith.constant 1.000000e+00 : f32
    %199 = vector.broadcast %cst_57 : f32 to vector<8x32xf32>
    %200 = arith.addf %199, %198 : vector<8x32xf32>
    %201 = arith.divf %199, %200 : vector<8x32xf32>
    %202 = vector.extract_strided_slice %189 {offsets = [0, 64], sizes = [8, 32], strides = [1, 1]} : vector<8x128xf32> to vector<8x32xf32>
    %203 = math.tanh %202 : vector<8x32xf32>
    %204 = vector.extract_strided_slice %189 {offsets = [0, 96], sizes = [8, 32], strides = [1, 1]} : vector<8x128xf32> to vector<8x32xf32>
    %205 = arith.negf %204 : vector<8x32xf32>
    %206 = math.exp %205 : vector<8x32xf32>
    %cst_58 = arith.constant 1.000000e+00 : f32
    %207 = vector.broadcast %cst_58 : f32 to vector<8x32xf32>
    %208 = arith.addf %207, %206 : vector<8x32xf32>
    %209 = arith.divf %207, %208 : vector<8x32xf32>
    %210 = arith.mulf %201, %183 : vector<8x32xf32>
    %211 = arith.mulf %195, %203 : vector<8x32xf32>
    %212 = arith.addf %210, %211 : vector<8x32xf32>
    %213 = math.tanh %212 : vector<8x32xf32>
    %214 = arith.mulf %209, %213 : vector<8x32xf32>
    %c48 = arith.constant 48 : index
    %c0_59 = arith.constant 0 : index
    %215 = vector.load %arg11[%c48, %c0_59] : memref<64x32xf32, #tpu.memory_space<vmem>>, vector<8x32xf32>
    tpu.vector_store %arg11[%c48, %c0_59], %214 {strides = array<i32>} : memref<64x32xf32, #tpu.memory_space<vmem>>, vector<8x32xf32>,
    %c7 = arith.constant 7 : index
    %c0_60 = arith.constant 0 : index
    %216 = tpu.strided_load %arg13[%c7, %c0_60] {strides = array<i32: 8, 1>} : memref<64x128xf32, #tpu.memory_space<vmem>>, vector<8x128xf32>
    %cst_61 = arith.constant dense<0.000000e+00> : vector<8x128xf32>
    %217 = tpu.matmul %214, %5, %cst_61 {dimension_numbers = #tpu.dot_dimension_numbers<[1], [0], [0], [1], [0, 0, 1, 1], [], []>} : vector<8x32xf32>, vector<32x128xf32>, vector<8x128xf32> -> vector<8x128xf32>
    %218 = arith.addf %216, %217 : vector<8x128xf32>
    %219 = vector.extract_strided_slice %218 {offsets = [0, 0], sizes = [8, 32], strides = [1, 1]} : vector<8x128xf32> to vector<8x32xf32>
    %220 = arith.negf %219 : vector<8x32xf32>
    %221 = math.exp %220 : vector<8x32xf32>
    %cst_62 = arith.constant 1.000000e+00 : f32
    %222 = vector.broadcast %cst_62 : f32 to vector<8x32xf32>
    %223 = arith.addf %222, %221 : vector<8x32xf32>
    %224 = arith.divf %222, %223 : vector<8x32xf32>
    %225 = vector.extract_strided_slice %218 {offsets = [0, 32], sizes = [8, 32], strides = [1, 1]} : vector<8x128xf32> to vector<8x32xf32>
    %226 = arith.negf %225 : vector<8x32xf32>
    %227 = math.exp %226 : vector<8x32xf32>
    %cst_63 = arith.constant 1.000000e+00 : f32
    %228 = vector.broadcast %cst_63 : f32 to vector<8x32xf32>
    %229 = arith.addf %228, %227 : vector<8x32xf32>
    %230 = arith.divf %228, %229 : vector<8x32xf32>
    %231 = vector.extract_strided_slice %218 {offsets = [0, 64], sizes = [8, 32], strides = [1, 1]} : vector<8x128xf32> to vector<8x32xf32>
    %232 = math.tanh %231 : vector<8x32xf32>
    %233 = vector.extract_strided_slice %218 {offsets = [0, 96], sizes = [8, 32], strides = [1, 1]} : vector<8x128xf32> to vector<8x32xf32>
    %234 = arith.negf %233 : vector<8x32xf32>
    %235 = math.exp %234 : vector<8x32xf32>
    %cst_64 = arith.constant 1.000000e+00 : f32
    %236 = vector.broadcast %cst_64 : f32 to vector<8x32xf32>
    %237 = arith.addf %236, %235 : vector<8x32xf32>
    %238 = arith.divf %236, %237 : vector<8x32xf32>
    %239 = arith.mulf %230, %212 : vector<8x32xf32>
    %240 = arith.mulf %224, %232 : vector<8x32xf32>
    %241 = arith.addf %239, %240 : vector<8x32xf32>
    %242 = math.tanh %241 : vector<8x32xf32>
    %243 = arith.mulf %238, %242 : vector<8x32xf32>
    %c56 = arith.constant 56 : index
    %c0_65 = arith.constant 0 : index
    %244 = vector.load %arg11[%c56, %c0_65] : memref<64x32xf32, #tpu.memory_space<vmem>>, vector<8x32xf32>
    tpu.vector_store %arg11[%c56, %c0_65], %243 {strides = array<i32>} : memref<64x32xf32, #tpu.memory_space<vmem>>, vector<8x32xf32>,
    %c0_66 = arith.constant 0 : index
    %c0_67 = arith.constant 0 : index
    %c0_68 = arith.constant 0 : index
    %245 = vector.load %arg4[%c0_66, %c0_67, %c0_68] : memref<3x1x32xf32, #tpu.memory_space<vmem>>, vector<1x1x32xf32>
    %246 = vector.shape_cast %245 : vector<1x1x32xf32> to vector<1x32xf32>
    %247 = vector.broadcast %246 : vector<1x32xf32> to vector<8x32xf32>
    %248 = arith.mulf %243, %247 : vector<8x32xf32>
    %cst_69 = arith.constant dense<0.000000e+00> : vector<8xf32>
    %249 = vector.multi_reduction <add>, %248, %cst_69 [1] : vector<8x32xf32> to vector<8xf32>
    %250 = vector.shape_cast %249 : vector<8xf32> to vector<8x1xf32>
    %c0_70 = arith.constant 0 : index
    %c0_71 = arith.constant 0 : index
    %c0_72 = arith.constant 0 : index
    %251 = vector.load %arg5[%c0_70, %c0_71, %c0_72] : memref<3x1x1xf32, #tpu.memory_space<vmem>>, vector<1x1x1xf32>
    %252 = vector.shape_cast %251 : vector<1x1x1xf32> to vector<1x1xf32>
    %253 = vector.broadcast %252 : vector<1x1xf32> to vector<8x1xf32>
    %254 = arith.addf %250, %253 : vector<8x1xf32>
    %255 = arith.negf %254 : vector<8x1xf32>
    %256 = math.exp %255 : vector<8x1xf32>
    %cst_73 = arith.constant 1.000000e+00 : f32
    %257 = vector.broadcast %cst_73 : f32 to vector<8x1xf32>
    %258 = arith.addf %257, %256 : vector<8x1xf32>
    %259 = arith.divf %257, %258 : vector<8x1xf32>
    %c0_74 = arith.constant 0 : index
    %c0_75 = arith.constant 0 : index
    %c0_76 = arith.constant 0 : index
    %260 = vector.load %arg8[%c0_74, %c0_75, %c0_76] : memref<3x8x1xf32, #tpu.memory_space<vmem>>, vector<1x8x1xf32>
    %261 = vector.shape_cast %260 : vector<1x8x1xf32> to vector<8x1xf32>
    %262 = vector.shape_cast %259 : vector<8x1xf32> to vector<1x8x1xf32>
    tpu.vector_store %arg8[%c0_74, %c0_75, %c0_76], %262 {strides = array<i32>} : memref<3x8x1xf32, #tpu.memory_space<vmem>>, vector<1x8x1xf32>,
    %c1_77 = arith.constant 1 : index
    %c0_78 = arith.constant 0 : index
    %c0_79 = arith.constant 0 : index
    %263 = vector.load %arg1[%c1_77, %c0_78, %c0_79] : memref<3x32x128xf32, #tpu.memory_space<vmem>>, vector<1x32x128xf32>
    %264 = vector.shape_cast %263 : vector<1x32x128xf32> to vector<32x128xf32>
    %c1_80 = arith.constant 1 : index
    %c0_81 = arith.constant 0 : index
    %c0_82 = arith.constant 0 : index
    %265 = vector.load %arg2[%c1_80, %c0_81, %c0_82] : memref<3x32x128xf32, #tpu.memory_space<vmem>>, vector<1x32x128xf32>
    %266 = vector.shape_cast %265 : vector<1x32x128xf32> to vector<32x128xf32>
    %c1_83 = arith.constant 1 : index
    %c0_84 = arith.constant 0 : index
    %c0_85 = arith.constant 0 : index
    %267 = vector.load %arg3[%c1_83, %c0_84, %c0_85] : memref<3x1x128xf32, #tpu.memory_space<vmem>>, vector<1x1x128xf32>
    %268 = vector.shape_cast %267 : vector<1x1x128xf32> to vector<1x128xf32>
    %c0_86 = arith.constant 0 : index
    %c0_87 = arith.constant 0 : index
    %269 = vector.load %arg11[%c0_86, %c0_87] : memref<64x32xf32, #tpu.memory_space<vmem>>, vector<64x32xf32>
    %cst_88 = arith.constant dense<0.000000e+00> : vector<64x128xf32>
    %270 = tpu.matmul %269, %264, %cst_88 {dimension_numbers = #tpu.dot_dimension_numbers<[1], [0], [0], [1], [0, 0, 1, 1], [], []>} : vector<64x32xf32>, vector<32x128xf32>, vector<64x128xf32> -> vector<64x128xf32>
    %271 = vector.broadcast %268 : vector<1x128xf32> to vector<64x128xf32>
    %272 = arith.addf %270, %271 : vector<64x128xf32>
    %c0_89 = arith.constant 0 : index
    %c0_90 = arith.constant 0 : index
    %273 = vector.load %arg13[%c0_89, %c0_90] : memref<64x128xf32, #tpu.memory_space<vmem>>, vector<64x128xf32>
    tpu.vector_store %arg13[%c0_89, %c0_90], %272 {strides = array<i32>} : memref<64x128xf32, #tpu.memory_space<vmem>>, vector<64x128xf32>,
    %c0_91 = arith.constant 0 : index
    %c0_92 = arith.constant 0 : index
    %274 = tpu.strided_load %arg13[%c0_91, %c0_92] {strides = array<i32: 8, 1>} : memref<64x128xf32, #tpu.memory_space<vmem>>, vector<8x128xf32>
    %cst_93 = arith.constant dense<0.000000e+00> : vector<8x128xf32>
    %275 = tpu.matmul %243, %266, %cst_93 {dimension_numbers = #tpu.dot_dimension_numbers<[1], [0], [0], [1], [0, 0, 1, 1], [], []>} : vector<8x32xf32>, vector<32x128xf32>, vector<8x128xf32> -> vector<8x128xf32>
    %276 = arith.addf %274, %275 : vector<8x128xf32>
    %277 = vector.extract_strided_slice %276 {offsets = [0, 0], sizes = [8, 32], strides = [1, 1]} : vector<8x128xf32> to vector<8x32xf32>
    %278 = arith.negf %277 : vector<8x32xf32>
    %279 = math.exp %278 : vector<8x32xf32>
    %cst_94 = arith.constant 1.000000e+00 : f32
    %280 = vector.broadcast %cst_94 : f32 to vector<8x32xf32>
    %281 = arith.addf %280, %279 : vector<8x32xf32>
    %282 = arith.divf %280, %281 : vector<8x32xf32>
    %283 = vector.extract_strided_slice %276 {offsets = [0, 32], sizes = [8, 32], strides = [1, 1]} : vector<8x128xf32> to vector<8x32xf32>
    %284 = arith.negf %283 : vector<8x32xf32>
    %285 = math.exp %284 : vector<8x32xf32>
    %cst_95 = arith.constant 1.000000e+00 : f32
    %286 = vector.broadcast %cst_95 : f32 to vector<8x32xf32>
    %287 = arith.addf %286, %285 : vector<8x32xf32>
    %288 = arith.divf %286, %287 : vector<8x32xf32>
    %289 = vector.extract_strided_slice %276 {offsets = [0, 64], sizes = [8, 32], strides = [1, 1]} : vector<8x128xf32> to vector<8x32xf32>
    %290 = math.tanh %289 : vector<8x32xf32>
    %291 = vector.extract_strided_slice %276 {offsets = [0, 96], sizes = [8, 32], strides = [1, 1]} : vector<8x128xf32> to vector<8x32xf32>
    %292 = arith.negf %291 : vector<8x32xf32>
    %293 = math.exp %292 : vector<8x32xf32>
    %cst_96 = arith.constant 1.000000e+00 : f32
    %294 = vector.broadcast %cst_96 : f32 to vector<8x32xf32>
    %295 = arith.addf %294, %293 : vector<8x32xf32>
    %296 = arith.divf %294, %295 : vector<8x32xf32>
    %297 = arith.mulf %288, %241 : vector<8x32xf32>
    %298 = arith.mulf %282, %290 : vector<8x32xf32>
    %299 = arith.addf %297, %298 : vector<8x32xf32>
    %300 = math.tanh %299 : vector<8x32xf32>
    %301 = arith.mulf %296, %300 : vector<8x32xf32>
    %c0_97 = arith.constant 0 : index
    %c0_98 = arith.constant 0 : index
    %302 = vector.load %arg12[%c0_97, %c0_98] : memref<64x32xf32, #tpu.memory_space<vmem>>, vector<8x32xf32>
    tpu.vector_store %arg12[%c0_97, %c0_98], %301 {strides = array<i32>} : memref<64x32xf32, #tpu.memory_space<vmem>>, vector<8x32xf32>,
    %c1_99 = arith.constant 1 : index
    %c0_100 = arith.constant 0 : index
    %303 = tpu.strided_load %arg13[%c1_99, %c0_100] {strides = array<i32: 8, 1>} : memref<64x128xf32, #tpu.memory_space<vmem>>, vector<8x128xf32>
    %cst_101 = arith.constant dense<0.000000e+00> : vector<8x128xf32>
    %304 = tpu.matmul %301, %266, %cst_101 {dimension_numbers = #tpu.dot_dimension_numbers<[1], [0], [0], [1], [0, 0, 1, 1], [], []>} : vector<8x32xf32>, vector<32x128xf32>, vector<8x128xf32> -> vector<8x128xf32>
    %305 = arith.addf %303, %304 : vector<8x128xf32>
    %306 = vector.extract_strided_slice %305 {offsets = [0, 0], sizes = [8, 32], strides = [1, 1]} : vector<8x128xf32> to vector<8x32xf32>
    %307 = arith.negf %306 : vector<8x32xf32>
    %308 = math.exp %307 : vector<8x32xf32>
    %cst_102 = arith.constant 1.000000e+00 : f32
    %309 = vector.broadcast %cst_102 : f32 to vector<8x32xf32>
    %310 = arith.addf %309, %308 : vector<8x32xf32>
    %311 = arith.divf %309, %310 : vector<8x32xf32>
    %312 = vector.extract_strided_slice %305 {offsets = [0, 32], sizes = [8, 32], strides = [1, 1]} : vector<8x128xf32> to vector<8x32xf32>
    %313 = arith.negf %312 : vector<8x32xf32>
    %314 = math.exp %313 : vector<8x32xf32>
    %cst_103 = arith.constant 1.000000e+00 : f32
    %315 = vector.broadcast %cst_103 : f32 to vector<8x32xf32>
    %316 = arith.addf %315, %314 : vector<8x32xf32>
    %317 = arith.divf %315, %316 : vector<8x32xf32>
    %318 = vector.extract_strided_slice %305 {offsets = [0, 64], sizes = [8, 32], strides = [1, 1]} : vector<8x128xf32> to vector<8x32xf32>
    %319 = math.tanh %318 : vector<8x32xf32>
    %320 = vector.extract_strided_slice %305 {offsets = [0, 96], sizes = [8, 32], strides = [1, 1]} : vector<8x128xf32> to vector<8x32xf32>
    %321 = arith.negf %320 : vector<8x32xf32>
    %322 = math.exp %321 : vector<8x32xf32>
    %cst_104 = arith.constant 1.000000e+00 : f32
    %323 = vector.broadcast %cst_104 : f32 to vector<8x32xf32>
    %324 = arith.addf %323, %322 : vector<8x32xf32>
    %325 = arith.divf %323, %324 : vector<8x32xf32>
    %326 = arith.mulf %317, %299 : vector<8x32xf32>
    %327 = arith.mulf %311, %319 : vector<8x32xf32>
    %328 = arith.addf %326, %327 : vector<8x32xf32>
    %329 = math.tanh %328 : vector<8x32xf32>
    %330 = arith.mulf %325, %329 : vector<8x32xf32>
    %c8_105 = arith.constant 8 : index
    %c0_106 = arith.constant 0 : index
    %331 = vector.load %arg12[%c8_105, %c0_106] : memref<64x32xf32, #tpu.memory_space<vmem>>, vector<8x32xf32>
    tpu.vector_store %arg12[%c8_105, %c0_106], %330 {strides = array<i32>} : memref<64x32xf32, #tpu.memory_space<vmem>>, vector<8x32xf32>,
    %c2_107 = arith.constant 2 : index
    %c0_108 = arith.constant 0 : index
    %332 = tpu.strided_load %arg13[%c2_107, %c0_108] {strides = array<i32: 8, 1>} : memref<64x128xf32, #tpu.memory_space<vmem>>, vector<8x128xf32>
    %cst_109 = arith.constant dense<0.000000e+00> : vector<8x128xf32>
    %333 = tpu.matmul %330, %266, %cst_109 {dimension_numbers = #tpu.dot_dimension_numbers<[1], [0], [0], [1], [0, 0, 1, 1], [], []>} : vector<8x32xf32>, vector<32x128xf32>, vector<8x128xf32> -> vector<8x128xf32>
    %334 = arith.addf %332, %333 : vector<8x128xf32>
    %335 = vector.extract_strided_slice %334 {offsets = [0, 0], sizes = [8, 32], strides = [1, 1]} : vector<8x128xf32> to vector<8x32xf32>
    %336 = arith.negf %335 : vector<8x32xf32>
    %337 = math.exp %336 : vector<8x32xf32>
    %cst_110 = arith.constant 1.000000e+00 : f32
    %338 = vector.broadcast %cst_110 : f32 to vector<8x32xf32>
    %339 = arith.addf %338, %337 : vector<8x32xf32>
    %340 = arith.divf %338, %339 : vector<8x32xf32>
    %341 = vector.extract_strided_slice %334 {offsets = [0, 32], sizes = [8, 32], strides = [1, 1]} : vector<8x128xf32> to vector<8x32xf32>
    %342 = arith.negf %341 : vector<8x32xf32>
    %343 = math.exp %342 : vector<8x32xf32>
    %cst_111 = arith.constant 1.000000e+00 : f32
    %344 = vector.broadcast %cst_111 : f32 to vector<8x32xf32>
    %345 = arith.addf %344, %343 : vector<8x32xf32>
    %346 = arith.divf %344, %345 : vector<8x32xf32>
    %347 = vector.extract_strided_slice %334 {offsets = [0, 64], sizes = [8, 32], strides = [1, 1]} : vector<8x128xf32> to vector<8x32xf32>
    %348 = math.tanh %347 : vector<8x32xf32>
    %349 = vector.extract_strided_slice %334 {offsets = [0, 96], sizes = [8, 32], strides = [1, 1]} : vector<8x128xf32> to vector<8x32xf32>
    %350 = arith.negf %349 : vector<8x32xf32>
    %351 = math.exp %350 : vector<8x32xf32>
    %cst_112 = arith.constant 1.000000e+00 : f32
    %352 = vector.broadcast %cst_112 : f32 to vector<8x32xf32>
    %353 = arith.addf %352, %351 : vector<8x32xf32>
    %354 = arith.divf %352, %353 : vector<8x32xf32>
    %355 = arith.mulf %346, %328 : vector<8x32xf32>
    %356 = arith.mulf %340, %348 : vector<8x32xf32>
    %357 = arith.addf %355, %356 : vector<8x32xf32>
    %358 = math.tanh %357 : vector<8x32xf32>
    %359 = arith.mulf %354, %358 : vector<8x32xf32>
    %c16_113 = arith.constant 16 : index
    %c0_114 = arith.constant 0 : index
    %360 = vector.load %arg12[%c16_113, %c0_114] : memref<64x32xf32, #tpu.memory_space<vmem>>, vector<8x32xf32>
    tpu.vector_store %arg12[%c16_113, %c0_114], %359 {strides = array<i32>} : memref<64x32xf32, #tpu.memory_space<vmem>>, vector<8x32xf32>,
    %c3_115 = arith.constant 3 : index
    %c0_116 = arith.constant 0 : index
    %361 = tpu.strided_load %arg13[%c3_115, %c0_116] {strides = array<i32: 8, 1>} : memref<64x128xf32, #tpu.memory_space<vmem>>, vector<8x128xf32>
    %cst_117 = arith.constant dense<0.000000e+00> : vector<8x128xf32>
    %362 = tpu.matmul %359, %266, %cst_117 {dimension_numbers = #tpu.dot_dimension_numbers<[1], [0], [0], [1], [0, 0, 1, 1], [], []>} : vector<8x32xf32>, vector<32x128xf32>, vector<8x128xf32> -> vector<8x128xf32>
    %363 = arith.addf %361, %362 : vector<8x128xf32>
    %364 = vector.extract_strided_slice %363 {offsets = [0, 0], sizes = [8, 32], strides = [1, 1]} : vector<8x128xf32> to vector<8x32xf32>
    %365 = arith.negf %364 : vector<8x32xf32>
    %366 = math.exp %365 : vector<8x32xf32>
    %cst_118 = arith.constant 1.000000e+00 : f32
    %367 = vector.broadcast %cst_118 : f32 to vector<8x32xf32>
    %368 = arith.addf %367, %366 : vector<8x32xf32>
    %369 = arith.divf %367, %368 : vector<8x32xf32>
    %370 = vector.extract_strided_slice %363 {offsets = [0, 32], sizes = [8, 32], strides = [1, 1]} : vector<8x128xf32> to vector<8x32xf32>
    %371 = arith.negf %370 : vector<8x32xf32>
    %372 = math.exp %371 : vector<8x32xf32>
    %cst_119 = arith.constant 1.000000e+00 : f32
    %373 = vector.broadcast %cst_119 : f32 to vector<8x32xf32>
    %374 = arith.addf %373, %372 : vector<8x32xf32>
    %375 = arith.divf %373, %374 : vector<8x32xf32>
    %376 = vector.extract_strided_slice %363 {offsets = [0, 64], sizes = [8, 32], strides = [1, 1]} : vector<8x128xf32> to vector<8x32xf32>
    %377 = math.tanh %376 : vector<8x32xf32>
    %378 = vector.extract_strided_slice %363 {offsets = [0, 96], sizes = [8, 32], strides = [1, 1]} : vector<8x128xf32> to vector<8x32xf32>
    %379 = arith.negf %378 : vector<8x32xf32>
    %380 = math.exp %379 : vector<8x32xf32>
    %cst_120 = arith.constant 1.000000e+00 : f32
    %381 = vector.broadcast %cst_120 : f32 to vector<8x32xf32>
    %382 = arith.addf %381, %380 : vector<8x32xf32>
    %383 = arith.divf %381, %382 : vector<8x32xf32>
    %384 = arith.mulf %375, %357 : vector<8x32xf32>
    %385 = arith.mulf %369, %377 : vector<8x32xf32>
    %386 = arith.addf %384, %385 : vector<8x32xf32>
    %387 = math.tanh %386 : vector<8x32xf32>
    %388 = arith.mulf %383, %387 : vector<8x32xf32>
    %c24_121 = arith.constant 24 : index
    %c0_122 = arith.constant 0 : index
    %389 = vector.load %arg12[%c24_121, %c0_122] : memref<64x32xf32, #tpu.memory_space<vmem>>, vector<8x32xf32>
    tpu.vector_store %arg12[%c24_121, %c0_122], %388 {strides = array<i32>} : memref<64x32xf32, #tpu.memory_space<vmem>>, vector<8x32xf32>,
    %c4_123 = arith.constant 4 : index
    %c0_124 = arith.constant 0 : index
    %390 = tpu.strided_load %arg13[%c4_123, %c0_124] {strides = array<i32: 8, 1>} : memref<64x128xf32, #tpu.memory_space<vmem>>, vector<8x128xf32>
    %cst_125 = arith.constant dense<0.000000e+00> : vector<8x128xf32>
    %391 = tpu.matmul %388, %266, %cst_125 {dimension_numbers = #tpu.dot_dimension_numbers<[1], [0], [0], [1], [0, 0, 1, 1], [], []>} : vector<8x32xf32>, vector<32x128xf32>, vector<8x128xf32> -> vector<8x128xf32>
    %392 = arith.addf %390, %391 : vector<8x128xf32>
    %393 = vector.extract_strided_slice %392 {offsets = [0, 0], sizes = [8, 32], strides = [1, 1]} : vector<8x128xf32> to vector<8x32xf32>
    %394 = arith.negf %393 : vector<8x32xf32>
    %395 = math.exp %394 : vector<8x32xf32>
    %cst_126 = arith.constant 1.000000e+00 : f32
    %396 = vector.broadcast %cst_126 : f32 to vector<8x32xf32>
    %397 = arith.addf %396, %395 : vector<8x32xf32>
    %398 = arith.divf %396, %397 : vector<8x32xf32>
    %399 = vector.extract_strided_slice %392 {offsets = [0, 32], sizes = [8, 32], strides = [1, 1]} : vector<8x128xf32> to vector<8x32xf32>
    %400 = arith.negf %399 : vector<8x32xf32>
    %401 = math.exp %400 : vector<8x32xf32>
    %cst_127 = arith.constant 1.000000e+00 : f32
    %402 = vector.broadcast %cst_127 : f32 to vector<8x32xf32>
    %403 = arith.addf %402, %401 : vector<8x32xf32>
    %404 = arith.divf %402, %403 : vector<8x32xf32>
    %405 = vector.extract_strided_slice %392 {offsets = [0, 64], sizes = [8, 32], strides = [1, 1]} : vector<8x128xf32> to vector<8x32xf32>
    %406 = math.tanh %405 : vector<8x32xf32>
    %407 = vector.extract_strided_slice %392 {offsets = [0, 96], sizes = [8, 32], strides = [1, 1]} : vector<8x128xf32> to vector<8x32xf32>
    %408 = arith.negf %407 : vector<8x32xf32>
    %409 = math.exp %408 : vector<8x32xf32>
    %cst_128 = arith.constant 1.000000e+00 : f32
    %410 = vector.broadcast %cst_128 : f32 to vector<8x32xf32>
    %411 = arith.addf %410, %409 : vector<8x32xf32>
    %412 = arith.divf %410, %411 : vector<8x32xf32>
    %413 = arith.mulf %404, %386 : vector<8x32xf32>
    %414 = arith.mulf %398, %406 : vector<8x32xf32>
    %415 = arith.addf %413, %414 : vector<8x32xf32>
    %416 = math.tanh %415 : vector<8x32xf32>
    %417 = arith.mulf %412, %416 : vector<8x32xf32>
    %c32_129 = arith.constant 32 : index
    %c0_130 = arith.constant 0 : index
    %418 = vector.load %arg12[%c32_129, %c0_130] : memref<64x32xf32, #tpu.memory_space<vmem>>, vector<8x32xf32>
    tpu.vector_store %arg12[%c32_129, %c0_130], %417 {strides = array<i32>} : memref<64x32xf32, #tpu.memory_space<vmem>>, vector<8x32xf32>,
    %c5_131 = arith.constant 5 : index
    %c0_132 = arith.constant 0 : index
    %419 = tpu.strided_load %arg13[%c5_131, %c0_132] {strides = array<i32: 8, 1>} : memref<64x128xf32, #tpu.memory_space<vmem>>, vector<8x128xf32>
    %cst_133 = arith.constant dense<0.000000e+00> : vector<8x128xf32>
    %420 = tpu.matmul %417, %266, %cst_133 {dimension_numbers = #tpu.dot_dimension_numbers<[1], [0], [0], [1], [0, 0, 1, 1], [], []>} : vector<8x32xf32>, vector<32x128xf32>, vector<8x128xf32> -> vector<8x128xf32>
    %421 = arith.addf %419, %420 : vector<8x128xf32>
    %422 = vector.extract_strided_slice %421 {offsets = [0, 0], sizes = [8, 32], strides = [1, 1]} : vector<8x128xf32> to vector<8x32xf32>
    %423 = arith.negf %422 : vector<8x32xf32>
    %424 = math.exp %423 : vector<8x32xf32>
    %cst_134 = arith.constant 1.000000e+00 : f32
    %425 = vector.broadcast %cst_134 : f32 to vector<8x32xf32>
    %426 = arith.addf %425, %424 : vector<8x32xf32>
    %427 = arith.divf %425, %426 : vector<8x32xf32>
    %428 = vector.extract_strided_slice %421 {offsets = [0, 32], sizes = [8, 32], strides = [1, 1]} : vector<8x128xf32> to vector<8x32xf32>
    %429 = arith.negf %428 : vector<8x32xf32>
    %430 = math.exp %429 : vector<8x32xf32>
    %cst_135 = arith.constant 1.000000e+00 : f32
    %431 = vector.broadcast %cst_135 : f32 to vector<8x32xf32>
    %432 = arith.addf %431, %430 : vector<8x32xf32>
    %433 = arith.divf %431, %432 : vector<8x32xf32>
    %434 = vector.extract_strided_slice %421 {offsets = [0, 64], sizes = [8, 32], strides = [1, 1]} : vector<8x128xf32> to vector<8x32xf32>
    %435 = math.tanh %434 : vector<8x32xf32>
    %436 = vector.extract_strided_slice %421 {offsets = [0, 96], sizes = [8, 32], strides = [1, 1]} : vector<8x128xf32> to vector<8x32xf32>
    %437 = arith.negf %436 : vector<8x32xf32>
    %438 = math.exp %437 : vector<8x32xf32>
    %cst_136 = arith.constant 1.000000e+00 : f32
    %439 = vector.broadcast %cst_136 : f32 to vector<8x32xf32>
    %440 = arith.addf %439, %438 : vector<8x32xf32>
    %441 = arith.divf %439, %440 : vector<8x32xf32>
    %442 = arith.mulf %433, %415 : vector<8x32xf32>
    %443 = arith.mulf %427, %435 : vector<8x32xf32>
    %444 = arith.addf %442, %443 : vector<8x32xf32>
    %445 = math.tanh %444 : vector<8x32xf32>
    %446 = arith.mulf %441, %445 : vector<8x32xf32>
    %c40_137 = arith.constant 40 : index
    %c0_138 = arith.constant 0 : index
    %447 = vector.load %arg12[%c40_137, %c0_138] : memref<64x32xf32, #tpu.memory_space<vmem>>, vector<8x32xf32>
    tpu.vector_store %arg12[%c40_137, %c0_138], %446 {strides = array<i32>} : memref<64x32xf32, #tpu.memory_space<vmem>>, vector<8x32xf32>,
    %c6_139 = arith.constant 6 : index
    %c0_140 = arith.constant 0 : index
    %448 = tpu.strided_load %arg13[%c6_139, %c0_140] {strides = array<i32: 8, 1>} : memref<64x128xf32, #tpu.memory_space<vmem>>, vector<8x128xf32>
    %cst_141 = arith.constant dense<0.000000e+00> : vector<8x128xf32>
    %449 = tpu.matmul %446, %266, %cst_141 {dimension_numbers = #tpu.dot_dimension_numbers<[1], [0], [0], [1], [0, 0, 1, 1], [], []>} : vector<8x32xf32>, vector<32x128xf32>, vector<8x128xf32> -> vector<8x128xf32>
    %450 = arith.addf %448, %449 : vector<8x128xf32>
    %451 = vector.extract_strided_slice %450 {offsets = [0, 0], sizes = [8, 32], strides = [1, 1]} : vector<8x128xf32> to vector<8x32xf32>
    %452 = arith.negf %451 : vector<8x32xf32>
    %453 = math.exp %452 : vector<8x32xf32>
    %cst_142 = arith.constant 1.000000e+00 : f32
    %454 = vector.broadcast %cst_142 : f32 to vector<8x32xf32>
    %455 = arith.addf %454, %453 : vector<8x32xf32>
    %456 = arith.divf %454, %455 : vector<8x32xf32>
    %457 = vector.extract_strided_slice %450 {offsets = [0, 32], sizes = [8, 32], strides = [1, 1]} : vector<8x128xf32> to vector<8x32xf32>
    %458 = arith.negf %457 : vector<8x32xf32>
    %459 = math.exp %458 : vector<8x32xf32>
    %cst_143 = arith.constant 1.000000e+00 : f32
    %460 = vector.broadcast %cst_143 : f32 to vector<8x32xf32>
    %461 = arith.addf %460, %459 : vector<8x32xf32>
    %462 = arith.divf %460, %461 : vector<8x32xf32>
    %463 = vector.extract_strided_slice %450 {offsets = [0, 64], sizes = [8, 32], strides = [1, 1]} : vector<8x128xf32> to vector<8x32xf32>
    %464 = math.tanh %463 : vector<8x32xf32>
    %465 = vector.extract_strided_slice %450 {offsets = [0, 96], sizes = [8, 32], strides = [1, 1]} : vector<8x128xf32> to vector<8x32xf32>
    %466 = arith.negf %465 : vector<8x32xf32>
    %467 = math.exp %466 : vector<8x32xf32>
    %cst_144 = arith.constant 1.000000e+00 : f32
    %468 = vector.broadcast %cst_144 : f32 to vector<8x32xf32>
    %469 = arith.addf %468, %467 : vector<8x32xf32>
    %470 = arith.divf %468, %469 : vector<8x32xf32>
    %471 = arith.mulf %462, %444 : vector<8x32xf32>
    %472 = arith.mulf %456, %464 : vector<8x32xf32>
    %473 = arith.addf %471, %472 : vector<8x32xf32>
    %474 = math.tanh %473 : vector<8x32xf32>
    %475 = arith.mulf %470, %474 : vector<8x32xf32>
    %c48_145 = arith.constant 48 : index
    %c0_146 = arith.constant 0 : index
    %476 = vector.load %arg12[%c48_145, %c0_146] : memref<64x32xf32, #tpu.memory_space<vmem>>, vector<8x32xf32>
    tpu.vector_store %arg12[%c48_145, %c0_146], %475 {strides = array<i32>} : memref<64x32xf32, #tpu.memory_space<vmem>>, vector<8x32xf32>,
    %c7_147 = arith.constant 7 : index
    %c0_148 = arith.constant 0 : index
    %477 = tpu.strided_load %arg13[%c7_147, %c0_148] {strides = array<i32: 8, 1>} : memref<64x128xf32, #tpu.memory_space<vmem>>, vector<8x128xf32>
    %cst_149 = arith.constant dense<0.000000e+00> : vector<8x128xf32>
    %478 = tpu.matmul %475, %266, %cst_149 {dimension_numbers = #tpu.dot_dimension_numbers<[1], [0], [0], [1], [0, 0, 1, 1], [], []>} : vector<8x32xf32>, vector<32x128xf32>, vector<8x128xf32> -> vector<8x128xf32>
    %479 = arith.addf %477, %478 : vector<8x128xf32>
    %480 = vector.extract_strided_slice %479 {offsets = [0, 0], sizes = [8, 32], strides = [1, 1]} : vector<8x128xf32> to vector<8x32xf32>
    %481 = arith.negf %480 : vector<8x32xf32>
    %482 = math.exp %481 : vector<8x32xf32>
    %cst_150 = arith.constant 1.000000e+00 : f32
    %483 = vector.broadcast %cst_150 : f32 to vector<8x32xf32>
    %484 = arith.addf %483, %482 : vector<8x32xf32>
    %485 = arith.divf %483, %484 : vector<8x32xf32>
    %486 = vector.extract_strided_slice %479 {offsets = [0, 32], sizes = [8, 32], strides = [1, 1]} : vector<8x128xf32> to vector<8x32xf32>
    %487 = arith.negf %486 : vector<8x32xf32>
    %488 = math.exp %487 : vector<8x32xf32>
    %cst_151 = arith.constant 1.000000e+00 : f32
    %489 = vector.broadcast %cst_151 : f32 to vector<8x32xf32>
    %490 = arith.addf %489, %488 : vector<8x32xf32>
    %491 = arith.divf %489, %490 : vector<8x32xf32>
    %492 = vector.extract_strided_slice %479 {offsets = [0, 64], sizes = [8, 32], strides = [1, 1]} : vector<8x128xf32> to vector<8x32xf32>
    %493 = math.tanh %492 : vector<8x32xf32>
    %494 = vector.extract_strided_slice %479 {offsets = [0, 96], sizes = [8, 32], strides = [1, 1]} : vector<8x128xf32> to vector<8x32xf32>
    %495 = arith.negf %494 : vector<8x32xf32>
    %496 = math.exp %495 : vector<8x32xf32>
    %cst_152 = arith.constant 1.000000e+00 : f32
    %497 = vector.broadcast %cst_152 : f32 to vector<8x32xf32>
    %498 = arith.addf %497, %496 : vector<8x32xf32>
    %499 = arith.divf %497, %498 : vector<8x32xf32>
    %500 = arith.mulf %491, %473 : vector<8x32xf32>
    %501 = arith.mulf %485, %493 : vector<8x32xf32>
    %502 = arith.addf %500, %501 : vector<8x32xf32>
    %503 = math.tanh %502 : vector<8x32xf32>
    %504 = arith.mulf %499, %503 : vector<8x32xf32>
    %c56_153 = arith.constant 56 : index
    %c0_154 = arith.constant 0 : index
    %505 = vector.load %arg12[%c56_153, %c0_154] : memref<64x32xf32, #tpu.memory_space<vmem>>, vector<8x32xf32>
    tpu.vector_store %arg12[%c56_153, %c0_154], %504 {strides = array<i32>} : memref<64x32xf32, #tpu.memory_space<vmem>>, vector<8x32xf32>,
    %c1_155 = arith.constant 1 : index
    %c0_156 = arith.constant 0 : index
    %c0_157 = arith.constant 0 : index
    %506 = vector.load %arg4[%c1_155, %c0_156, %c0_157] : memref<3x1x32xf32, #tpu.memory_space<vmem>>, vector<1x1x32xf32>
    %507 = vector.shape_cast %506 : vector<1x1x32xf32> to vector<1x32xf32>
    %508 = vector.broadcast %507 : vector<1x32xf32> to vector<8x32xf32>
    %509 = arith.mulf %504, %508 : vector<8x32xf32>
    %cst_158 = arith.constant dense<0.000000e+00> : vector<8xf32>
    %510 = vector.multi_reduction <add>, %509, %cst_158 [1] : vector<8x32xf32> to vector<8xf32>
    %511 = vector.shape_cast %510 : vector<8xf32> to vector<8x1xf32>
    %c1_159 = arith.constant 1 : index
    %c0_160 = arith.constant 0 : index
    %c0_161 = arith.constant 0 : index
    %512 = vector.load %arg5[%c1_159, %c0_160, %c0_161] : memref<3x1x1xf32, #tpu.memory_space<vmem>>, vector<1x1x1xf32>
    %513 = vector.shape_cast %512 : vector<1x1x1xf32> to vector<1x1xf32>
    %514 = vector.broadcast %513 : vector<1x1xf32> to vector<8x1xf32>
    %515 = arith.addf %511, %514 : vector<8x1xf32>
    %516 = arith.negf %515 : vector<8x1xf32>
    %517 = math.exp %516 : vector<8x1xf32>
    %cst_162 = arith.constant 1.000000e+00 : f32
    %518 = vector.broadcast %cst_162 : f32 to vector<8x1xf32>
    %519 = arith.addf %518, %517 : vector<8x1xf32>
    %520 = arith.divf %518, %519 : vector<8x1xf32>
    %c1_163 = arith.constant 1 : index
    %c0_164 = arith.constant 0 : index
    %c0_165 = arith.constant 0 : index
    %521 = vector.load %arg8[%c1_163, %c0_164, %c0_165] : memref<3x8x1xf32, #tpu.memory_space<vmem>>, vector<1x8x1xf32>
    %522 = vector.shape_cast %521 : vector<1x8x1xf32> to vector<8x1xf32>
    %523 = vector.shape_cast %520 : vector<8x1xf32> to vector<1x8x1xf32>
    tpu.vector_store %arg8[%c1_163, %c0_164, %c0_165], %523 {strides = array<i32>} : memref<3x8x1xf32, #tpu.memory_space<vmem>>, vector<1x8x1xf32>,
    %c2_166 = arith.constant 2 : index
    %c0_167 = arith.constant 0 : index
    %c0_168 = arith.constant 0 : index
    %524 = vector.load %arg1[%c2_166, %c0_167, %c0_168] : memref<3x32x128xf32, #tpu.memory_space<vmem>>, vector<1x32x128xf32>
    %525 = vector.shape_cast %524 : vector<1x32x128xf32> to vector<32x128xf32>
    %c2_169 = arith.constant 2 : index
    %c0_170 = arith.constant 0 : index
    %c0_171 = arith.constant 0 : index
    %526 = vector.load %arg2[%c2_169, %c0_170, %c0_171] : memref<3x32x128xf32, #tpu.memory_space<vmem>>, vector<1x32x128xf32>
    %527 = vector.shape_cast %526 : vector<1x32x128xf32> to vector<32x128xf32>
    %c2_172 = arith.constant 2 : index
    %c0_173 = arith.constant 0 : index
    %c0_174 = arith.constant 0 : index
    %528 = vector.load %arg3[%c2_172, %c0_173, %c0_174] : memref<3x1x128xf32, #tpu.memory_space<vmem>>, vector<1x1x128xf32>
    %529 = vector.shape_cast %528 : vector<1x1x128xf32> to vector<1x128xf32>
    %c0_175 = arith.constant 0 : index
    %c0_176 = arith.constant 0 : index
    %530 = vector.load %arg12[%c0_175, %c0_176] : memref<64x32xf32, #tpu.memory_space<vmem>>, vector<64x32xf32>
    %cst_177 = arith.constant dense<0.000000e+00> : vector<64x128xf32>
    %531 = tpu.matmul %530, %525, %cst_177 {dimension_numbers = #tpu.dot_dimension_numbers<[1], [0], [0], [1], [0, 0, 1, 1], [], []>} : vector<64x32xf32>, vector<32x128xf32>, vector<64x128xf32> -> vector<64x128xf32>
    %532 = vector.broadcast %529 : vector<1x128xf32> to vector<64x128xf32>
    %533 = arith.addf %531, %532 : vector<64x128xf32>
    %c0_178 = arith.constant 0 : index
    %c0_179 = arith.constant 0 : index
    %534 = vector.load %arg13[%c0_178, %c0_179] : memref<64x128xf32, #tpu.memory_space<vmem>>, vector<64x128xf32>
    tpu.vector_store %arg13[%c0_178, %c0_179], %533 {strides = array<i32>} : memref<64x128xf32, #tpu.memory_space<vmem>>, vector<64x128xf32>,
    %c0_180 = arith.constant 0 : index
    %c0_181 = arith.constant 0 : index
    %535 = tpu.strided_load %arg13[%c0_180, %c0_181] {strides = array<i32: 8, 1>} : memref<64x128xf32, #tpu.memory_space<vmem>>, vector<8x128xf32>
    %cst_182 = arith.constant dense<0.000000e+00> : vector<8x128xf32>
    %536 = tpu.matmul %504, %527, %cst_182 {dimension_numbers = #tpu.dot_dimension_numbers<[1], [0], [0], [1], [0, 0, 1, 1], [], []>} : vector<8x32xf32>, vector<32x128xf32>, vector<8x128xf32> -> vector<8x128xf32>
    %537 = arith.addf %535, %536 : vector<8x128xf32>
    %538 = vector.extract_strided_slice %537 {offsets = [0, 0], sizes = [8, 32], strides = [1, 1]} : vector<8x128xf32> to vector<8x32xf32>
    %539 = arith.negf %538 : vector<8x32xf32>
    %540 = math.exp %539 : vector<8x32xf32>
    %cst_183 = arith.constant 1.000000e+00 : f32
    %541 = vector.broadcast %cst_183 : f32 to vector<8x32xf32>
    %542 = arith.addf %541, %540 : vector<8x32xf32>
    %543 = arith.divf %541, %542 : vector<8x32xf32>
    %544 = vector.extract_strided_slice %537 {offsets = [0, 32], sizes = [8, 32], strides = [1, 1]} : vector<8x128xf32> to vector<8x32xf32>
    %545 = arith.negf %544 : vector<8x32xf32>
    %546 = math.exp %545 : vector<8x32xf32>
    %cst_184 = arith.constant 1.000000e+00 : f32
    %547 = vector.broadcast %cst_184 : f32 to vector<8x32xf32>
    %548 = arith.addf %547, %546 : vector<8x32xf32>
    %549 = arith.divf %547, %548 : vector<8x32xf32>
    %550 = vector.extract_strided_slice %537 {offsets = [0, 64], sizes = [8, 32], strides = [1, 1]} : vector<8x128xf32> to vector<8x32xf32>
    %551 = math.tanh %550 : vector<8x32xf32>
    %552 = vector.extract_strided_slice %537 {offsets = [0, 96], sizes = [8, 32], strides = [1, 1]} : vector<8x128xf32> to vector<8x32xf32>
    %553 = arith.negf %552 : vector<8x32xf32>
    %554 = math.exp %553 : vector<8x32xf32>
    %cst_185 = arith.constant 1.000000e+00 : f32
    %555 = vector.broadcast %cst_185 : f32 to vector<8x32xf32>
    %556 = arith.addf %555, %554 : vector<8x32xf32>
    %557 = arith.divf %555, %556 : vector<8x32xf32>
    %558 = arith.mulf %549, %502 : vector<8x32xf32>
    %559 = arith.mulf %543, %551 : vector<8x32xf32>
    %560 = arith.addf %558, %559 : vector<8x32xf32>
    %561 = math.tanh %560 : vector<8x32xf32>
    %562 = arith.mulf %557, %561 : vector<8x32xf32>
    %c1_186 = arith.constant 1 : index
    %c0_187 = arith.constant 0 : index
    %563 = tpu.strided_load %arg13[%c1_186, %c0_187] {strides = array<i32: 8, 1>} : memref<64x128xf32, #tpu.memory_space<vmem>>, vector<8x128xf32>
    %cst_188 = arith.constant dense<0.000000e+00> : vector<8x128xf32>
    %564 = tpu.matmul %562, %527, %cst_188 {dimension_numbers = #tpu.dot_dimension_numbers<[1], [0], [0], [1], [0, 0, 1, 1], [], []>} : vector<8x32xf32>, vector<32x128xf32>, vector<8x128xf32> -> vector<8x128xf32>
    %565 = arith.addf %563, %564 : vector<8x128xf32>
    %566 = vector.extract_strided_slice %565 {offsets = [0, 0], sizes = [8, 32], strides = [1, 1]} : vector<8x128xf32> to vector<8x32xf32>
    %567 = arith.negf %566 : vector<8x32xf32>
    %568 = math.exp %567 : vector<8x32xf32>
    %cst_189 = arith.constant 1.000000e+00 : f32
    %569 = vector.broadcast %cst_189 : f32 to vector<8x32xf32>
    %570 = arith.addf %569, %568 : vector<8x32xf32>
    %571 = arith.divf %569, %570 : vector<8x32xf32>
    %572 = vector.extract_strided_slice %565 {offsets = [0, 32], sizes = [8, 32], strides = [1, 1]} : vector<8x128xf32> to vector<8x32xf32>
    %573 = arith.negf %572 : vector<8x32xf32>
    %574 = math.exp %573 : vector<8x32xf32>
    %cst_190 = arith.constant 1.000000e+00 : f32
    %575 = vector.broadcast %cst_190 : f32 to vector<8x32xf32>
    %576 = arith.addf %575, %574 : vector<8x32xf32>
    %577 = arith.divf %575, %576 : vector<8x32xf32>
    %578 = vector.extract_strided_slice %565 {offsets = [0, 64], sizes = [8, 32], strides = [1, 1]} : vector<8x128xf32> to vector<8x32xf32>
    %579 = math.tanh %578 : vector<8x32xf32>
    %580 = vector.extract_strided_slice %565 {offsets = [0, 96], sizes = [8, 32], strides = [1, 1]} : vector<8x128xf32> to vector<8x32xf32>
    %581 = arith.negf %580 : vector<8x32xf32>
    %582 = math.exp %581 : vector<8x32xf32>
    %cst_191 = arith.constant 1.000000e+00 : f32
    %583 = vector.broadcast %cst_191 : f32 to vector<8x32xf32>
    %584 = arith.addf %583, %582 : vector<8x32xf32>
    %585 = arith.divf %583, %584 : vector<8x32xf32>
    %586 = arith.mulf %577, %560 : vector<8x32xf32>
    %587 = arith.mulf %571, %579 : vector<8x32xf32>
    %588 = arith.addf %586, %587 : vector<8x32xf32>
    %589 = math.tanh %588 : vector<8x32xf32>
    %590 = arith.mulf %585, %589 : vector<8x32xf32>
    %c2_192 = arith.constant 2 : index
    %c0_193 = arith.constant 0 : index
    %591 = tpu.strided_load %arg13[%c2_192, %c0_193] {strides = array<i32: 8, 1>} : memref<64x128xf32, #tpu.memory_space<vmem>>, vector<8x128xf32>
    %cst_194 = arith.constant dense<0.000000e+00> : vector<8x128xf32>
    %592 = tpu.matmul %590, %527, %cst_194 {dimension_numbers = #tpu.dot_dimension_numbers<[1], [0], [0], [1], [0, 0, 1, 1], [], []>} : vector<8x32xf32>, vector<32x128xf32>, vector<8x128xf32> -> vector<8x128xf32>
    %593 = arith.addf %591, %592 : vector<8x128xf32>
    %594 = vector.extract_strided_slice %593 {offsets = [0, 0], sizes = [8, 32], strides = [1, 1]} : vector<8x128xf32> to vector<8x32xf32>
    %595 = arith.negf %594 : vector<8x32xf32>
    %596 = math.exp %595 : vector<8x32xf32>
    %cst_195 = arith.constant 1.000000e+00 : f32
    %597 = vector.broadcast %cst_195 : f32 to vector<8x32xf32>
    %598 = arith.addf %597, %596 : vector<8x32xf32>
    %599 = arith.divf %597, %598 : vector<8x32xf32>
    %600 = vector.extract_strided_slice %593 {offsets = [0, 32], sizes = [8, 32], strides = [1, 1]} : vector<8x128xf32> to vector<8x32xf32>
    %601 = arith.negf %600 : vector<8x32xf32>
    %602 = math.exp %601 : vector<8x32xf32>
    %cst_196 = arith.constant 1.000000e+00 : f32
    %603 = vector.broadcast %cst_196 : f32 to vector<8x32xf32>
    %604 = arith.addf %603, %602 : vector<8x32xf32>
    %605 = arith.divf %603, %604 : vector<8x32xf32>
    %606 = vector.extract_strided_slice %593 {offsets = [0, 64], sizes = [8, 32], strides = [1, 1]} : vector<8x128xf32> to vector<8x32xf32>
    %607 = math.tanh %606 : vector<8x32xf32>
    %608 = vector.extract_strided_slice %593 {offsets = [0, 96], sizes = [8, 32], strides = [1, 1]} : vector<8x128xf32> to vector<8x32xf32>
    %609 = arith.negf %608 : vector<8x32xf32>
    %610 = math.exp %609 : vector<8x32xf32>
    %cst_197 = arith.constant 1.000000e+00 : f32
    %611 = vector.broadcast %cst_197 : f32 to vector<8x32xf32>
    %612 = arith.addf %611, %610 : vector<8x32xf32>
    %613 = arith.divf %611, %612 : vector<8x32xf32>
    %614 = arith.mulf %605, %588 : vector<8x32xf32>
    %615 = arith.mulf %599, %607 : vector<8x32xf32>
    %616 = arith.addf %614, %615 : vector<8x32xf32>
    %617 = math.tanh %616 : vector<8x32xf32>
    %618 = arith.mulf %613, %617 : vector<8x32xf32>
    %c3_198 = arith.constant 3 : index
    %c0_199 = arith.constant 0 : index
    %619 = tpu.strided_load %arg13[%c3_198, %c0_199] {strides = array<i32: 8, 1>} : memref<64x128xf32, #tpu.memory_space<vmem>>, vector<8x128xf32>
    %cst_200 = arith.constant dense<0.000000e+00> : vector<8x128xf32>
    %620 = tpu.matmul %618, %527, %cst_200 {dimension_numbers = #tpu.dot_dimension_numbers<[1], [0], [0], [1], [0, 0, 1, 1], [], []>} : vector<8x32xf32>, vector<32x128xf32>, vector<8x128xf32> -> vector<8x128xf32>
    %621 = arith.addf %619, %620 : vector<8x128xf32>
    %622 = vector.extract_strided_slice %621 {offsets = [0, 0], sizes = [8, 32], strides = [1, 1]} : vector<8x128xf32> to vector<8x32xf32>
    %623 = arith.negf %622 : vector<8x32xf32>
    %624 = math.exp %623 : vector<8x32xf32>
    %cst_201 = arith.constant 1.000000e+00 : f32
    %625 = vector.broadcast %cst_201 : f32 to vector<8x32xf32>
    %626 = arith.addf %625, %624 : vector<8x32xf32>
    %627 = arith.divf %625, %626 : vector<8x32xf32>
    %628 = vector.extract_strided_slice %621 {offsets = [0, 32], sizes = [8, 32], strides = [1, 1]} : vector<8x128xf32> to vector<8x32xf32>
    %629 = arith.negf %628 : vector<8x32xf32>
    %630 = math.exp %629 : vector<8x32xf32>
    %cst_202 = arith.constant 1.000000e+00 : f32
    %631 = vector.broadcast %cst_202 : f32 to vector<8x32xf32>
    %632 = arith.addf %631, %630 : vector<8x32xf32>
    %633 = arith.divf %631, %632 : vector<8x32xf32>
    %634 = vector.extract_strided_slice %621 {offsets = [0, 64], sizes = [8, 32], strides = [1, 1]} : vector<8x128xf32> to vector<8x32xf32>
    %635 = math.tanh %634 : vector<8x32xf32>
    %636 = vector.extract_strided_slice %621 {offsets = [0, 96], sizes = [8, 32], strides = [1, 1]} : vector<8x128xf32> to vector<8x32xf32>
    %637 = arith.negf %636 : vector<8x32xf32>
    %638 = math.exp %637 : vector<8x32xf32>
    %cst_203 = arith.constant 1.000000e+00 : f32
    %639 = vector.broadcast %cst_203 : f32 to vector<8x32xf32>
    %640 = arith.addf %639, %638 : vector<8x32xf32>
    %641 = arith.divf %639, %640 : vector<8x32xf32>
    %642 = arith.mulf %633, %616 : vector<8x32xf32>
    %643 = arith.mulf %627, %635 : vector<8x32xf32>
    %644 = arith.addf %642, %643 : vector<8x32xf32>
    %645 = math.tanh %644 : vector<8x32xf32>
    %646 = arith.mulf %641, %645 : vector<8x32xf32>
    %c4_204 = arith.constant 4 : index
    %c0_205 = arith.constant 0 : index
    %647 = tpu.strided_load %arg13[%c4_204, %c0_205] {strides = array<i32: 8, 1>} : memref<64x128xf32, #tpu.memory_space<vmem>>, vector<8x128xf32>
    %cst_206 = arith.constant dense<0.000000e+00> : vector<8x128xf32>
    %648 = tpu.matmul %646, %527, %cst_206 {dimension_numbers = #tpu.dot_dimension_numbers<[1], [0], [0], [1], [0, 0, 1, 1], [], []>} : vector<8x32xf32>, vector<32x128xf32>, vector<8x128xf32> -> vector<8x128xf32>
    %649 = arith.addf %647, %648 : vector<8x128xf32>
    %650 = vector.extract_strided_slice %649 {offsets = [0, 0], sizes = [8, 32], strides = [1, 1]} : vector<8x128xf32> to vector<8x32xf32>
    %651 = arith.negf %650 : vector<8x32xf32>
    %652 = math.exp %651 : vector<8x32xf32>
    %cst_207 = arith.constant 1.000000e+00 : f32
    %653 = vector.broadcast %cst_207 : f32 to vector<8x32xf32>
    %654 = arith.addf %653, %652 : vector<8x32xf32>
    %655 = arith.divf %653, %654 : vector<8x32xf32>
    %656 = vector.extract_strided_slice %649 {offsets = [0, 32], sizes = [8, 32], strides = [1, 1]} : vector<8x128xf32> to vector<8x32xf32>
    %657 = arith.negf %656 : vector<8x32xf32>
    %658 = math.exp %657 : vector<8x32xf32>
    %cst_208 = arith.constant 1.000000e+00 : f32
    %659 = vector.broadcast %cst_208 : f32 to vector<8x32xf32>
    %660 = arith.addf %659, %658 : vector<8x32xf32>
    %661 = arith.divf %659, %660 : vector<8x32xf32>
    %662 = vector.extract_strided_slice %649 {offsets = [0, 64], sizes = [8, 32], strides = [1, 1]} : vector<8x128xf32> to vector<8x32xf32>
    %663 = math.tanh %662 : vector<8x32xf32>
    %664 = vector.extract_strided_slice %649 {offsets = [0, 96], sizes = [8, 32], strides = [1, 1]} : vector<8x128xf32> to vector<8x32xf32>
    %665 = arith.negf %664 : vector<8x32xf32>
    %666 = math.exp %665 : vector<8x32xf32>
    %cst_209 = arith.constant 1.000000e+00 : f32
    %667 = vector.broadcast %cst_209 : f32 to vector<8x32xf32>
    %668 = arith.addf %667, %666 : vector<8x32xf32>
    %669 = arith.divf %667, %668 : vector<8x32xf32>
    %670 = arith.mulf %661, %644 : vector<8x32xf32>
    %671 = arith.mulf %655, %663 : vector<8x32xf32>
    %672 = arith.addf %670, %671 : vector<8x32xf32>
    %673 = math.tanh %672 : vector<8x32xf32>
    %674 = arith.mulf %669, %673 : vector<8x32xf32>
    %c5_210 = arith.constant 5 : index
    %c0_211 = arith.constant 0 : index
    %675 = tpu.strided_load %arg13[%c5_210, %c0_211] {strides = array<i32: 8, 1>} : memref<64x128xf32, #tpu.memory_space<vmem>>, vector<8x128xf32>
    %cst_212 = arith.constant dense<0.000000e+00> : vector<8x128xf32>
    %676 = tpu.matmul %674, %527, %cst_212 {dimension_numbers = #tpu.dot_dimension_numbers<[1], [0], [0], [1], [0, 0, 1, 1], [], []>} : vector<8x32xf32>, vector<32x128xf32>, vector<8x128xf32> -> vector<8x128xf32>
    %677 = arith.addf %675, %676 : vector<8x128xf32>
    %678 = vector.extract_strided_slice %677 {offsets = [0, 0], sizes = [8, 32], strides = [1, 1]} : vector<8x128xf32> to vector<8x32xf32>
    %679 = arith.negf %678 : vector<8x32xf32>
    %680 = math.exp %679 : vector<8x32xf32>
    %cst_213 = arith.constant 1.000000e+00 : f32
    %681 = vector.broadcast %cst_213 : f32 to vector<8x32xf32>
    %682 = arith.addf %681, %680 : vector<8x32xf32>
    %683 = arith.divf %681, %682 : vector<8x32xf32>
    %684 = vector.extract_strided_slice %677 {offsets = [0, 32], sizes = [8, 32], strides = [1, 1]} : vector<8x128xf32> to vector<8x32xf32>
    %685 = arith.negf %684 : vector<8x32xf32>
    %686 = math.exp %685 : vector<8x32xf32>
    %cst_214 = arith.constant 1.000000e+00 : f32
    %687 = vector.broadcast %cst_214 : f32 to vector<8x32xf32>
    %688 = arith.addf %687, %686 : vector<8x32xf32>
    %689 = arith.divf %687, %688 : vector<8x32xf32>
    %690 = vector.extract_strided_slice %677 {offsets = [0, 64], sizes = [8, 32], strides = [1, 1]} : vector<8x128xf32> to vector<8x32xf32>
    %691 = math.tanh %690 : vector<8x32xf32>
    %692 = vector.extract_strided_slice %677 {offsets = [0, 96], sizes = [8, 32], strides = [1, 1]} : vector<8x128xf32> to vector<8x32xf32>
    %693 = arith.negf %692 : vector<8x32xf32>
    %694 = math.exp %693 : vector<8x32xf32>
    %cst_215 = arith.constant 1.000000e+00 : f32
    %695 = vector.broadcast %cst_215 : f32 to vector<8x32xf32>
    %696 = arith.addf %695, %694 : vector<8x32xf32>
    %697 = arith.divf %695, %696 : vector<8x32xf32>
    %698 = arith.mulf %689, %672 : vector<8x32xf32>
    %699 = arith.mulf %683, %691 : vector<8x32xf32>
    %700 = arith.addf %698, %699 : vector<8x32xf32>
    %701 = math.tanh %700 : vector<8x32xf32>
    %702 = arith.mulf %697, %701 : vector<8x32xf32>
    %c6_216 = arith.constant 6 : index
    %c0_217 = arith.constant 0 : index
    %703 = tpu.strided_load %arg13[%c6_216, %c0_217] {strides = array<i32: 8, 1>} : memref<64x128xf32, #tpu.memory_space<vmem>>, vector<8x128xf32>
    %cst_218 = arith.constant dense<0.000000e+00> : vector<8x128xf32>
    %704 = tpu.matmul %702, %527, %cst_218 {dimension_numbers = #tpu.dot_dimension_numbers<[1], [0], [0], [1], [0, 0, 1, 1], [], []>} : vector<8x32xf32>, vector<32x128xf32>, vector<8x128xf32> -> vector<8x128xf32>
    %705 = arith.addf %703, %704 : vector<8x128xf32>
    %706 = vector.extract_strided_slice %705 {offsets = [0, 0], sizes = [8, 32], strides = [1, 1]} : vector<8x128xf32> to vector<8x32xf32>
    %707 = arith.negf %706 : vector<8x32xf32>
    %708 = math.exp %707 : vector<8x32xf32>
    %cst_219 = arith.constant 1.000000e+00 : f32
    %709 = vector.broadcast %cst_219 : f32 to vector<8x32xf32>
    %710 = arith.addf %709, %708 : vector<8x32xf32>
    %711 = arith.divf %709, %710 : vector<8x32xf32>
    %712 = vector.extract_strided_slice %705 {offsets = [0, 32], sizes = [8, 32], strides = [1, 1]} : vector<8x128xf32> to vector<8x32xf32>
    %713 = arith.negf %712 : vector<8x32xf32>
    %714 = math.exp %713 : vector<8x32xf32>
    %cst_220 = arith.constant 1.000000e+00 : f32
    %715 = vector.broadcast %cst_220 : f32 to vector<8x32xf32>
    %716 = arith.addf %715, %714 : vector<8x32xf32>
    %717 = arith.divf %715, %716 : vector<8x32xf32>
    %718 = vector.extract_strided_slice %705 {offsets = [0, 64], sizes = [8, 32], strides = [1, 1]} : vector<8x128xf32> to vector<8x32xf32>
    %719 = math.tanh %718 : vector<8x32xf32>
    %720 = vector.extract_strided_slice %705 {offsets = [0, 96], sizes = [8, 32], strides = [1, 1]} : vector<8x128xf32> to vector<8x32xf32>
    %721 = arith.negf %720 : vector<8x32xf32>
    %722 = math.exp %721 : vector<8x32xf32>
    %cst_221 = arith.constant 1.000000e+00 : f32
    %723 = vector.broadcast %cst_221 : f32 to vector<8x32xf32>
    %724 = arith.addf %723, %722 : vector<8x32xf32>
    %725 = arith.divf %723, %724 : vector<8x32xf32>
    %726 = arith.mulf %717, %700 : vector<8x32xf32>
    %727 = arith.mulf %711, %719 : vector<8x32xf32>
    %728 = arith.addf %726, %727 : vector<8x32xf32>
    %729 = math.tanh %728 : vector<8x32xf32>
    %730 = arith.mulf %725, %729 : vector<8x32xf32>
    %c7_222 = arith.constant 7 : index
    %c0_223 = arith.constant 0 : index
    %731 = tpu.strided_load %arg13[%c7_222, %c0_223] {strides = array<i32: 8, 1>} : memref<64x128xf32, #tpu.memory_space<vmem>>, vector<8x128xf32>
    %cst_224 = arith.constant dense<0.000000e+00> : vector<8x128xf32>
    %732 = tpu.matmul %730, %527, %cst_224 {dimension_numbers = #tpu.dot_dimension_numbers<[1], [0], [0], [1], [0, 0, 1, 1], [], []>} : vector<8x32xf32>, vector<32x128xf32>, vector<8x128xf32> -> vector<8x128xf32>
    %733 = arith.addf %731, %732 : vector<8x128xf32>
    %734 = vector.extract_strided_slice %733 {offsets = [0, 0], sizes = [8, 32], strides = [1, 1]} : vector<8x128xf32> to vector<8x32xf32>
    %735 = arith.negf %734 : vector<8x32xf32>
    %736 = math.exp %735 : vector<8x32xf32>
    %cst_225 = arith.constant 1.000000e+00 : f32
    %737 = vector.broadcast %cst_225 : f32 to vector<8x32xf32>
    %738 = arith.addf %737, %736 : vector<8x32xf32>
    %739 = arith.divf %737, %738 : vector<8x32xf32>
    %740 = vector.extract_strided_slice %733 {offsets = [0, 32], sizes = [8, 32], strides = [1, 1]} : vector<8x128xf32> to vector<8x32xf32>
    %741 = arith.negf %740 : vector<8x32xf32>
    %742 = math.exp %741 : vector<8x32xf32>
    %cst_226 = arith.constant 1.000000e+00 : f32
    %743 = vector.broadcast %cst_226 : f32 to vector<8x32xf32>
    %744 = arith.addf %743, %742 : vector<8x32xf32>
    %745 = arith.divf %743, %744 : vector<8x32xf32>
    %746 = vector.extract_strided_slice %733 {offsets = [0, 64], sizes = [8, 32], strides = [1, 1]} : vector<8x128xf32> to vector<8x32xf32>
    %747 = math.tanh %746 : vector<8x32xf32>
    %748 = vector.extract_strided_slice %733 {offsets = [0, 96], sizes = [8, 32], strides = [1, 1]} : vector<8x128xf32> to vector<8x32xf32>
    %749 = arith.negf %748 : vector<8x32xf32>
    %750 = math.exp %749 : vector<8x32xf32>
    %cst_227 = arith.constant 1.000000e+00 : f32
    %751 = vector.broadcast %cst_227 : f32 to vector<8x32xf32>
    %752 = arith.addf %751, %750 : vector<8x32xf32>
    %753 = arith.divf %751, %752 : vector<8x32xf32>
    %754 = arith.mulf %745, %728 : vector<8x32xf32>
    %755 = arith.mulf %739, %747 : vector<8x32xf32>
    %756 = arith.addf %754, %755 : vector<8x32xf32>
    %757 = math.tanh %756 : vector<8x32xf32>
    %758 = arith.mulf %753, %757 : vector<8x32xf32>
    %c2_228 = arith.constant 2 : index
    %c0_229 = arith.constant 0 : index
    %c0_230 = arith.constant 0 : index
    %759 = vector.load %arg4[%c2_228, %c0_229, %c0_230] : memref<3x1x32xf32, #tpu.memory_space<vmem>>, vector<1x1x32xf32>
    %760 = vector.shape_cast %759 : vector<1x1x32xf32> to vector<1x32xf32>
    %761 = vector.broadcast %760 : vector<1x32xf32> to vector<8x32xf32>
    %762 = arith.mulf %758, %761 : vector<8x32xf32>
    %cst_231 = arith.constant dense<0.000000e+00> : vector<8xf32>
    %763 = vector.multi_reduction <add>, %762, %cst_231 [1] : vector<8x32xf32> to vector<8xf32>
    %764 = vector.shape_cast %763 : vector<8xf32> to vector<8x1xf32>
    %c2_232 = arith.constant 2 : index
    %c0_233 = arith.constant 0 : index
    %c0_234 = arith.constant 0 : index
    %765 = vector.load %arg5[%c2_232, %c0_233, %c0_234] : memref<3x1x1xf32, #tpu.memory_space<vmem>>, vector<1x1x1xf32>
    %766 = vector.shape_cast %765 : vector<1x1x1xf32> to vector<1x1xf32>
    %767 = vector.broadcast %766 : vector<1x1xf32> to vector<8x1xf32>
    %768 = arith.addf %764, %767 : vector<8x1xf32>
    %769 = arith.negf %768 : vector<8x1xf32>
    %770 = math.exp %769 : vector<8x1xf32>
    %cst_235 = arith.constant 1.000000e+00 : f32
    %771 = vector.broadcast %cst_235 : f32 to vector<8x1xf32>
    %772 = arith.addf %771, %770 : vector<8x1xf32>
    %773 = arith.divf %771, %772 : vector<8x1xf32>
    %c2_236 = arith.constant 2 : index
    %c0_237 = arith.constant 0 : index
    %c0_238 = arith.constant 0 : index
    %774 = vector.load %arg8[%c2_236, %c0_237, %c0_238] : memref<3x8x1xf32, #tpu.memory_space<vmem>>, vector<1x8x1xf32>
    %775 = vector.shape_cast %774 : vector<1x8x1xf32> to vector<8x1xf32>
    %776 = vector.shape_cast %773 : vector<8x1xf32> to vector<1x8x1xf32>
    tpu.vector_store %arg8[%c2_236, %c0_237, %c0_238], %776 {strides = array<i32>} : memref<3x8x1xf32, #tpu.memory_space<vmem>>, vector<1x8x1xf32>,
    %c0_239 = arith.constant 0 : index
    %c0_240 = arith.constant 0 : index
    %777 = vector.load %arg9[%c0_239, %c0_240] : memref<8x32xf32, #tpu.memory_space<vmem>>, vector<8x32xf32>
    tpu.vector_store %arg9[%c0_239, %c0_240], %758 {strides = array<i32>} : memref<8x32xf32, #tpu.memory_space<vmem>>, vector<8x32xf32>,
    %c0_241 = arith.constant 0 : index
    %c0_242 = arith.constant 0 : index
    %778 = vector.load %arg10[%c0_241, %c0_242] : memref<8x32xf32, #tpu.memory_space<vmem>>, vector<8x32xf32>
    tpu.vector_store %arg10[%c0_241, %c0_242], %756 {strides = array<i32>} : memref<8x32xf32, #tpu.memory_space<vmem>>, vector<8x32xf32>,
    return
  }
}

</mosaic_0001>

<llo_original>
// kernel: controller_net_forward.1
$region0: #{controller_net_forward.1}
  #allocation0 [shape = 'u32[]', space=smem, size = 0x4, offset = 0x4, fixed_abs, tag = 'smem constant byte address 0x4 - core index']
  #allocation1 [shape = 'u32[72,128]{1,0:T(1,128)}', space=vmem, size = 0x9000, scoped, tag = 'internal scratch']
  #allocation2 [shape = 'f32[64,32]{1,0:T(8,128)}', space=vmem, size = 0x8000, scoped, tag = 'scratch operand']
  #allocation3 [shape = 'f32[64,32]{1,0:T(8,128)}', space=vmem, size = 0x8000, scoped, tag = 'scratch operand']
  #allocation4 [shape = 'f32[64,128]{1,0:T(8,128)}', space=vmem, size = 0x8000, scoped, tag = 'scratch operand']
  %s0 = inlined_call_operand.hbm [shape: f32[64,32], index: 0, kind: input, shape index: {}]
  %s1 = inlined_call_operand.hbm [shape: f32[3,32,128], index: 1, kind: input, shape index: {}]
  %s2 = inlined_call_operand.hbm [shape: f32[3,32,128], index: 2, kind: input, shape index: {}]
  %s3 = inlined_call_operand.vmem [shape: f32[3,1,128], index: 3, kind: input, shape index: {}]
  %s4 = inlined_call_operand.vmem [shape: f32[3,1,32], index: 4, kind: input, shape index: {}]
  %s5 = inlined_call_operand.vmem [shape: f32[3,1,1], index: 5, kind: input, shape index: {}]
  %s6 = inlined_call_operand.hbm [shape: f32[8,32], index: 6, kind: input, shape index: {}]
  %s7 = inlined_call_operand.hbm [shape: f32[8,32], index: 7, kind: input, shape index: {}]
  %s8 = inlined_call_operand.vmem [shape: f32[3,8,1], index: 8, kind: output, shape index: {0}]
  %s9 = inlined_call_operand.hbm [shape: f32[8,32], index: 9, kind: output, shape index: {1}]
  %s10 = inlined_call_operand.hbm [shape: f32[8,32], index: 10, kind: output, shape index: {2}]
  %11 = xla_tuple %s8, %s9, %s10
  %s12 = sld [smem:[#allocation0]]
  $region78: #{controller_net_forward.1} parent=0
    _
  %s14 = ssub.s32 1, %s12
  %s15 = scalar_select 0, %s14, %s12
  $region1: #{controller_net_forward.1} parent=0
    #allocation5 [shape = 'u8[32768]{0}', space=vmem, size = 0x8000, scoped, tag = 'input window, operand 0, single buffered']
    #allocation6 [shape = 's32[1]{0}', space=sflag, size = 0x4, scoped, tag = 'scoped memory for controller_net_forward.1']
    #allocation7 [shape = 's32[1]{0}', space=sflag, size = 0x4, scoped, tag = 'scoped memory for controller_net_forward.1']
    #allocation8 [shape = 'u8[49152]{0}', space=vmem, size = 0xc000, scoped, tag = 'input window, operand 1, single buffered']
    #allocation9 [shape = 's32[1]{0}', space=sflag, size = 0x4, scoped, tag = 'scoped memory for controller_net_forward.1']
    #allocation10 [shape = 'u8[49152]{0}', space=vmem, size = 0xc000, scoped, tag = 'input window, operand 2, single buffered']
    #allocation11 [shape = 'u8[4096]{0}', space=vmem, size = 0x1000, scoped, tag = 'input window, operand 6, single buffered']
    #allocation12 [shape = 's32[1]{0}', space=sflag, size = 0x4, scoped, tag = 'scoped memory for controller_net_forward.1']
    #allocation13 [shape = 'u8[4096]{0}', space=vmem, size = 0x1000, scoped, tag = 'input window, operand 7, single buffered']
    #allocation14 [shape = 'u8[4096]{0}', space=vmem, size = 0x1000, scoped, tag = 'output window, operand 1, single buffered']
    #allocation15 [shape = 'u8[4096]{0}', space=vmem, size = 0x1000, scoped, tag = 'output window, operand 2, single buffered']
    #allocation16 [shape = 's32[1]{0}', space=sflag, size = 0x4, scoped, tag = 'scoped memory for controller_net_forward.1']
    %16 = vsyncpa [#allocation6], 0
    %17 = vsyncpa [#allocation9], 0
    %18 = vsyncpa [#allocation12], 0
    %19 = vsyncpa [#allocation7], 0
    %20 = vsyncpa [#allocation16], 0
    // Predicated region
    $region2: #{controller_net_forward.1} parent=1 // pred_check
      _
    $region3: #{controller_net_forward.1} parent=1 // pred_check_branch
      %22 = sbr.rel (0) target = $region5
    $region4: #{controller_net_forward.1} parent=1 // pred_region
      %24 = vsyncadd [#allocation6], 0
      %s25 = sshll.u32 %s0, 4
      %s26 = int_to_ptr.hbm [resolvable:$true] %s25
      %s27 = sshll.u32 [#allocation5], 4
      %s28 = int_to_ptr.vmem [resolvable:$true] %s27
      %33 = dma.hbm_to_vmem [thread:$0]  %s26, 1024, %s28, [#allocation6], 128, 128, 8
    $region5: #{controller_net_forward.1} parent=1 // pred_fallthru
      _
    // Predicated region
    $region6: #{controller_net_forward.1} parent=1 // pred_check
      _
    $region7: #{controller_net_forward.1} parent=1 // pred_check_branch
      %35 = sbr.rel (0) target = $region9
    $region8: #{controller_net_forward.1} parent=1 // pred_region
      %37 = vsyncadd [#allocation9], 0
      %s38 = sshll.u32 %s1, 4
      %s39 = int_to_ptr.hbm [resolvable:$true] %s38
      %s40 = sshll.u32 [#allocation8], 4
      %s41 = int_to_ptr.vmem [resolvable:$true] %s40
      %46 = dma.hbm_to_vmem [thread:$0]  %s39, 1536, %s41, [#allocation9], 128, 128, 8
    $region9: #{controller_net_forward.1} parent=1 // pred_fallthru
      _
    // Predicated region
    $region10: #{controller_net_forward.1} parent=1 // pred_check
      _
    $region11: #{controller_net_forward.1} parent=1 // pred_check_branch
      %48 = sbr.rel (0) target = $region13
    $region12: #{controller_net_forward.1} parent=1 // pred_region
      %50 = vsyncadd [#allocation9], 0
      %s51 = sshll.u32 %s2, 4
      %s52 = int_to_ptr.hbm [resolvable:$true] %s51
      %s53 = sshll.u32 [#allocation10], 4
      %s54 = int_to_ptr.vmem [resolvable:$true] %s53
      %59 = dma.hbm_to_vmem [thread:$0]  %s52, 1536, %s54, [#allocation9], 128, 128, 8
    $region13: #{controller_net_forward.1} parent=1 // pred_fallthru
      _
    // Predicated region
    $region14: #{controller_net_forward.1} parent=1 // pred_check
      _
    $region15: #{controller_net_forward.1} parent=1 // pred_check_branch
      %61 = sbr.rel (0) target = $region17
    $region16: #{controller_net_forward.1} parent=1 // pred_region
      _
    $region17: #{controller_net_forward.1} parent=1 // pred_fallthru
      _
    // Predicated region
    $region18: #{controller_net_forward.1} parent=1 // pred_check
      _
    $region19: #{controller_net_forward.1} parent=1 // pred_check_branch
      %63 = sbr.rel (0) target = $region21
    $region20: #{controller_net_forward.1} parent=1 // pred_region
      _
    $region21: #{controller_net_forward.1} parent=1 // pred_fallthru
      _
    // Predicated region
    $region22: #{controller_net_forward.1} parent=1 // pred_check
      _
    $region23: #{controller_net_forward.1} parent=1 // pred_check_branch
      %65 = sbr.rel (0) target = $region25
    $region24: #{controller_net_forward.1} parent=1 // pred_region
      _
    $region25: #{controller_net_forward.1} parent=1 // pred_fallthru
      _
    // Predicated region
    $region26: #{controller_net_forward.1} parent=1 // pred_check
      _
    $region27: #{controller_net_forward.1} parent=1 // pred_check_branch
      %67 = sbr.rel (0) target = $region29
    $region28: #{controller_net_forward.1} parent=1 // pred_region
      %69 = vsyncadd [#allocation12], 0
      %s71 = sshll.u32 %s6, 4
      %s72 = int_to_ptr.hbm [resolvable:$true] %s71
      %s73 = sshll.u32 [#allocation11], 4
      %s74 = int_to_ptr.vmem [resolvable:$true] %s73
      %76 = dma.hbm_to_vmem [thread:$0]  %s72, 128, %s74, [#allocation12]
    $region29: #{controller_net_forward.1} parent=1 // pred_fallthru
      _
    // Predicated region
    $region30: #{controller_net_forward.1} parent=1 // pred_check
      _
    $region31: #{controller_net_forward.1} parent=1 // pred_check_branch
      %78 = sbr.rel (0) target = $region33
    $region32: #{controller_net_forward.1} parent=1 // pred_region
      %80 = vsyncadd [#allocation12], 0
      %s82 = sshll.u32 %s7, 4
      %s83 = int_to_ptr.hbm [resolvable:$true] %s82
      %s84 = sshll.u32 [#allocation13], 4
      %s85 = int_to_ptr.vmem [resolvable:$true] %s84
      %87 = dma.hbm_to_vmem [thread:$0]  %s83, 128, %s85, [#allocation12]
    $region33: #{controller_net_forward.1} parent=1 // pred_fallthru
      _
    // Predicated region
    $region34: #{controller_net_forward.1} parent=1 // pred_check
      _
    $region35: #{controller_net_forward.1} parent=1 // pred_check_branch
      %89 = sbr.rel (0) target = $region37
    $region36: #{controller_net_forward.1} parent=1 // pred_region
      %91 = dma.done [#allocation6], 1024
    $region37: #{controller_net_forward.1} parent=1 // pred_fallthru
      _
    // Predicated region
    $region38: #{controller_net_forward.1} parent=1 // pred_check
      _
    $region39: #{controller_net_forward.1} parent=1 // pred_check_branch
      %93 = sbr.rel (0) target = $region41
    $region40: #{controller_net_forward.1} parent=1 // pred_region
      %95 = dma.done [#allocation9], 1536
    $region41: #{controller_net_forward.1} parent=1 // pred_fallthru
      _
    // Predicated region
    $region42: #{controller_net_forward.1} parent=1 // pred_check
      _
    $region43: #{controller_net_forward.1} parent=1 // pred_check_branch
      %97 = sbr.rel (0) target = $region45
    $region44: #{controller_net_forward.1} parent=1 // pred_region
      %99 = dma.done [#allocation9], 1536
    $region45: #{controller_net_forward.1} parent=1 // pred_fallthru
      _
    // Predicated region
    $region46: #{controller_net_forward.1} parent=1 // pred_check
      _
    $region47: #{controller_net_forward.1} parent=1 // pred_check_branch
      %101 = sbr.rel (0) target = $region49
    $region48: #{controller_net_forward.1} parent=1 // pred_region
      %103 = dma.done [#allocation12], 128
    $region49: #{controller_net_forward.1} parent=1 // pred_fallthru
      _
    // Predicated region
    $region50: #{controller_net_forward.1} parent=1 // pred_check
      _
    $region51: #{controller_net_forward.1} parent=1 // pred_check_branch
      %105 = sbr.rel (0) target = $region53
    $region52: #{controller_net_forward.1} parent=1 // pred_region
      %107 = dma.done [#allocation12], 128
    $region53: #{controller_net_forward.1} parent=1 // pred_fallthru
      _
    %v108 = vld [vmem:[#allocation11] sm:$0xff]
    %v109 = vld [vmem:[#allocation13] sm:$0xff]
    %v110 = vld [vmem:[#allocation8] sm:$0xff]
    %v111 = vld [vmem:[#allocation8 + $0x8] sm:$0xff]
    %v112 = vld [vmem:[#allocation8 + $0x10] sm:$0xff]
    %v113 = vld [vmem:[#allocation8 + $0x18] sm:$0xff]
    %v114 = vld [vmem:[#allocation10] sm:$0xff]
    %v115 = vld [vmem:[#allocation10 + $0x8] sm:$0xff]
    %v116 = vld [vmem:[#allocation10 + $0x10] sm:$0xff]
    %v117 = vld [vmem:[#allocation10 + $0x18] sm:$0xff]
    %v118 = vld [vmem:[%s3] sm:$0x1]
    %v119 = vld [vmem:[#allocation5] sm:$0xff]
    %v120 = vld [vmem:[#allocation5 + $0x8] sm:$0xff]
    %v121 = vld [vmem:[#allocation5 + $0x10] sm:$0xff]
    %v122 = vld [vmem:[#allocation5 + $0x18] sm:$0xff]
    %v123 = vld [vmem:[#allocation5 + $0x20] sm:$0xff]
    %v124 = vld [vmem:[#allocation5 + $0x28] sm:$0xff]
    %v125 = vld [vmem:[#allocation5 + $0x30] sm:$0xff]
    %v126 = vld [vmem:[#allocation5 + $0x38] sm:$0xff]
    %v128 = vperm.slane %v118, 0
    %vm130 = vcmask 261120
    %v132 = vsel %vm130, %v119, 0
    %v135 = vsel %vm130, %v120, 0
    %v138 = vsel %vm130, %v121, 0
    %v141 = vsel %vm130, %v122, 0
    %v144 = vsel %vm130, %v123, 0
    %v147 = vsel %vm130, %v124, 0
    %v150 = vsel %vm130, %v125, 0
    %v153 = vsel %vm130, %v126, 0
    %155 = vmatpush.msra.mxu0 0.0
    %156 = vmatpush.msra.mxu0 0.0
    %157 = vmatpush.msra.mxu0 0.0
    %158 = vmatpush.msra.mxu0 0.0
    %159 = vmatpush.msra.mxu0 0.0
    %160 = vmatpush.msra.mxu0 0.0
    %161 = vmatpush.msra.mxu0 0.0
    %162 = vmatpush.msra.mxu0 0.0
    %163 = vmatpush.msra.mxu0 0.0
    %164 = vmatpush.msra.mxu0 0.0
    %165 = vmatpush.msra.mxu0 0.0
    %166 = vmatpush.msra.mxu0 0.0
    %167 = vmatpush.msra.mxu0 %v113
    %168 = vmatpush.msra.mxu0 %v112
    %169 = vmatpush.msra.mxu0 %v111
    %170 = vmatpush.msra.mxu0 %v110
    %171 = vmatmul.f32.gmra.mxu0 %v132
    %v172 = vpop.f32.mrf.mxu0
    %v173 = vadd.f32 %v128, %v172
    %174 = vmatmul.f32.gmra.mxu0 %v135
    %v175 = vpop.f32.mrf.mxu0
    %v176 = vadd.f32 %v128, %v175
    %177 = vmatmul.f32.gmra.mxu0 %v138
    %v178 = vpop.f32.mrf.mxu0
    %v179 = vadd.f32 %v128, %v178
    %180 = vmatmul.f32.gmra.mxu0 %v141
    %v181 = vpop.f32.mrf.mxu0
    %v182 = vadd.f32 %v128, %v181
    %183 = vmatmul.f32.gmra.mxu0 %v144
    %v184 = vpop.f32.mrf.mxu0
    %v185 = vadd.f32 %v128, %v184
    %186 = vmatmul.f32.gmra.mxu0 %v147
    %v187 = vpop.f32.mrf.mxu0
    %v188 = vadd.f32 %v128, %v187
    %189 = vmatmul.f32.gmra.mxu0 %v150
    %v190 = vpop.f32.mrf.mxu0
    %v191 = vadd.f32 %v128, %v190
    %192 = vmatmul.f32.gmra.mxu0 %v153
    %v193 = vpop.f32.mrf.mxu0
    %v194 = vadd.f32 %v128, %v193
    %195 = vdwg.mxu0
    %196 = vst [vmem:[#allocation4] sm:$0xff] %v173
    %197 = vst [vmem:[#allocation4 + $0x8] sm:$0xff] %v176
    %198 = vst [vmem:[#allocation4 + $0x10] sm:$0xff] %v179
    %199 = vst [vmem:[#allocation4 + $0x18] sm:$0xff] %v182
    %200 = vst [vmem:[#allocation4 + $0x20] sm:$0xff] %v185
    %201 = vst [vmem:[#allocation4 + $0x28] sm:$0xff] %v188
    %202 = vst [vmem:[#allocation4 + $0x30] sm:$0xff] %v191
    %203 = vst [vmem:[#allocation4 + $0x38] sm:$0xff] %v194
    %v204 = vld [vmem:[#allocation4] ss:$8 sm:$0xf]
    %v205 = vld [vmem:[#allocation4] ss:$8 sm:$0xf0]
    %v206 = vor.u32 %v204, %v205
    %v208 = vsel %vm130, %v108, 0
    %210 = vmatpush.msra.mxu0 0.0
    %211 = vmatpush.msra.mxu0 0.0
    %212 = vmatpush.msra.mxu0 0.0
    %213 = vmatpush.msra.mxu0 0.0
    %214 = vmatpush.msra.mxu0 0.0
    %215 = vmatpush.msra.mxu0 0.0
    %216 = vmatpush.msra.mxu0 0.0
    %217 = vmatpush.msra.mxu0 0.0
    %218 = vmatpush.msra.mxu0 0.0
    %219 = vmatpush.msra.mxu0 0.0
    %220 = vmatpush.msra.mxu0 0.0
    %221 = vmatpush.msra.mxu0 0.0
    %222 = vmatpush.msra.mxu0 %v117
    %223 = vmatpush.msra.mxu0 %v116
    %224 = vmatpush.msra.mxu0 %v115
    %225 = vmatpush.msra.mxu0 %v114
    %226 = vmatmul.f32.gmra.mxu0 %v208
    %v227 = vpop.f32.mrf.mxu0
    %v228 = vadd.f32 0.0, %v227
    %229 = vdwg.mxu0
    %v230 = vadd.f32 %v206, %v228
    %v231 = vxor.u32 %v230, 2147483648
    %v232 = vmul.f32 %v231, 1.442695
    %v233 = vpow.pop %v232
    %v234 = vadd.f32 %v233, 1.0
    %v235 = vrcp.pop %v234
    %v236 = vmul.f32 %v234, %v235
    %v237 = vsub.f32 1.0, %v236
    %v238 = vmul.f32 %v235, %v237
    %v239 = vadd.f32 %v235, %v238
    %vm240 = vweird.f32 %v234
    %vm241 = vweird.f32 %v235
    %vm242 = vmor %vm240, %vm241
    %v243 = vsel %vm242, %v235, %v239
    %v244 = vand.u32 2147483647, %v234
    %vm245 = vcmp.eq.f32.partialorder %v244, 8.507059e+37
    %v246 = vand.u32 %v234, 2147483648
    %v247 = vor.u32 1.1754944e-38, %v246
    %v248 = vsel %vm245, %v247, %v243
    %v249 = vmul.f32 1.0, %v248
    %v250 = vtanh.pop %v230
    %252 = vrot.lane.b32.xlu0 %v109, 32
    %v253 = vpop.permute.xlu0 %252
    %v255 = vmul.f32 %v249, %v253
    %257 = vrot.lane.b32.xlu0 %v250, 64
    %v258 = vpop.permute.xlu0 %257
    %v260 = vmul.f32 %v249, %v258
    %262 = vrot.lane.b32.xlu0 %v260, 32
    %v263 = vpop.permute.xlu0 %262
    %v265 = vadd.f32 %v255, %v263
    %v266 = vtanh.pop %v265
    %268 = vrot.lane.b32.xlu0 %v266, 64
    %v269 = vpop.permute.xlu0 %268
    %v271 = vmul.f32 %v249, %v269
    %273 = vrot.lane.b32.xlu0 %v271, 32
    %v274 = vpop.permute.xlu0 %273
    %276 = vst.msk [vmem:[#allocation2] sm:$0xff] %vm130, %v274
    %s277 = scalar_lea.vmem [#allocation4], 1
    %v278 = vld [vmem:[%s277] ss:$8 sm:$0xf]
    %v279 = vld [vmem:[%s277] ss:$8 sm:$0xf0]
    %v280 = vor.u32 %v278, %v279
    %v281 = vsel %vm130, %v274, 0
    %283 = vmatpush.msra.mxu0 0.0
    %284 = vmatpush.msra.mxu0 0.0
    %285 = vmatpush.msra.mxu0 0.0
    %286 = vmatpush.msra.mxu0 0.0
    %287 = vmatpush.msra.mxu0 0.0
    %288 = vmatpush.msra.mxu0 0.0
    %289 = vmatpush.msra.mxu0 0.0
    %290 = vmatpush.msra.mxu0 0.0
    %291 = vmatpush.msra.mxu0 0.0
    %292 = vmatpush.msra.mxu0 0.0
    %293 = vmatpush.msra.mxu0 0.0
    %294 = vmatpush.msra.mxu0 0.0
    %295 = vmatpush.msra.mxu0 %v117
    %296 = vmatpush.msra.mxu0 %v116
    %297 = vmatpush.msra.mxu0 %v115
    %298 = vmatpush.msra.mxu0 %v114
    %299 = vmatmul.f32.gmra.mxu0 %v281
    %v300 = vpop.f32.mrf.mxu0
    %v301 = vadd.f32 0.0, %v300
    %302 = vdwg.mxu0
    %v303 = vadd.f32 %v280, %v301
    %v304 = vxor.u32 %v303, 2147483648
    %v305 = vmul.f32 %v304, 1.442695
    %v306 = vpow.pop %v305
    %v307 = vadd.f32 %v306, 1.0
    %v308 = vrcp.pop %v307
    %v309 = vmul.f32 %v307, %v308
    %v310 = vsub.f32 1.0, %v309
    %v311 = vmul.f32 %v308, %v310
    %v312 = vadd.f32 %v308, %v311
    %vm313 = vweird.f32 %v307
    %vm314 = vweird.f32 %v308
    %vm315 = vmor %vm313, %vm314
    %v316 = vsel %vm315, %v308, %v312
    %v317 = vand.u32 2147483647, %v307
    %vm318 = vcmp.eq.f32.partialorder %v317, 8.507059e+37
    %v319 = vand.u32 %v307, 2147483648
    %v320 = vor.u32 1.1754944e-38, %v319
    %v321 = vsel %vm318, %v320, %v316
    %v322 = vmul.f32 1.0, %v321
    %v323 = vtanh.pop %v303
    %v324 = vmul.f32 %v322, %v265
    %326 = vrot.lane.b32.xlu0 %v323, 64
    %v327 = vpop.permute.xlu0 %326
    %v329 = vmul.f32 %v322, %v327
    %331 = vrot.lane.b32.xlu0 %v329, 32
    %v332 = vpop.permute.xlu0 %331
    %v334 = vadd.f32 %v324, %v332
    %v335 = vtanh.pop %v334
    %337 = vrot.lane.b32.xlu0 %v335, 64
    %v338 = vpop.permute.xlu0 %337
    %v340 = vmul.f32 %v322, %v338
    %342 = vrot.lane.b32.xlu0 %v340, 32
    %v343 = vpop.permute.xlu0 %342
    %345 = vst.msk [vmem:[#allocation2 + $0x8] sm:$0xff] %vm130, %v343
    %s346 = scalar_lea.vmem [#allocation4], 2
    %v347 = vld [vmem:[%s346] ss:$8 sm:$0xf]
    %v348 = vld [vmem:[%s346] ss:$8 sm:$0xf0]
    %v349 = vor.u32 %v347, %v348
    %v350 = vsel %vm130, %v343, 0
    %352 = vmatpush.msra.mxu0 0.0
    %353 = vmatpush.msra.mxu0 0.0
    %354 = vmatpush.msra.mxu0 0.0
    %355 = vmatpush.msra.mxu0 0.0
    %356 = vmatpush.msra.mxu0 0.0
    %357 = vmatpush.msra.mxu0 0.0
    %358 = vmatpush.msra.mxu0 0.0
    %359 = vmatpush.msra.mxu0 0.0
    %360 = vmatpush.msra.mxu0 0.0
    %361 = vmatpush.msra.mxu0 0.0
    %362 = vmatpush.msra.mxu0 0.0
    %363 = vmatpush.msra.mxu0 0.0
    %364 = vmatpush.msra.mxu0 %v117
    %365 = vmatpush.msra.mxu0 %v116
    %366 = vmatpush.msra.mxu0 %v115
    %367 = vmatpush.msra.mxu0 %v114
    %368 = vmatmul.f32.gmra.mxu0 %v350
    %v369 = vpop.f32.mrf.mxu0
    %v370 = vadd.f32 0.0, %v369
    %371 = vdwg.mxu0
    %v372 = vadd.f32 %v349, %v370
    %v373 = vxor.u32 %v372, 2147483648
    %v374 = vmul.f32 %v373, 1.442695
    %v375 = vpow.pop %v374
    %v376 = vadd.f32 %v375, 1.0
    %v377 = vrcp.pop %v376
    %v378 = vmul.f32 %v376, %v377
    %v379 = vsub.f32 1.0, %v378
    %v380 = vmul.f32 %v377, %v379
    %v381 = vadd.f32 %v377, %v380
    %vm382 = vweird.f32 %v376
    %vm383 = vweird.f32 %v377
    %vm384 = vmor %vm382, %vm383
    %v385 = vsel %vm384, %v377, %v381
    %v386 = vand.u32 2147483647, %v376
    %vm387 = vcmp.eq.f32.partialorder %v386, 8.507059e+37
    %v388 = vand.u32 %v376, 2147483648
    %v389 = vor.u32 1.1754944e-38, %v388
    %v390 = vsel %vm387, %v389, %v385
    %v391 = vmul.f32 1.0, %v390
    %v392 = vtanh.pop %v372
    %v393 = vmul.f32 %v391, %v334
    %395 = vrot.lane.b32.xlu0 %v392, 64
    %v396 = vpop.permute.xlu0 %395
    %v398 = vmul.f32 %v391, %v396
    %400 = vrot.lane.b32.xlu0 %v398, 32
    %v401 = vpop.permute.xlu0 %400
    %v403 = vadd.f32 %v393, %v401
    %v404 = vtanh.pop %v403
    %406 = vrot.lane.b32.xlu0 %v404, 64
    %v407 = vpop.permute.xlu0 %406
    %v409 = vmul.f32 %v391, %v407
    %411 = vrot.lane.b32.xlu0 %v409, 32
    %v412 = vpop.permute.xlu0 %411
    %414 = vst.msk [vmem:[#allocation2 + $0x10] sm:$0xff] %vm130, %v412
    %s415 = scalar_lea.vmem [#allocation4], 3
    %v416 = vld [vmem:[%s415] ss:$8 sm:$0xf]
    %v417 = vld [vmem:[%s415] ss:$8 sm:$0xf0]
    %v418 = vor.u32 %v416, %v417
    %v419 = vsel %vm130, %v412, 0
    %421 = vmatpush.msra.mxu0 0.0
    %422 = vmatpush.msra.mxu0 0.0
    %423 = vmatpush.msra.mxu0 0.0
    %424 = vmatpush.msra.mxu0 0.0
    %425 = vmatpush.msra.mxu0 0.0
    %426 = vmatpush.msra.mxu0 0.0
    %427 = vmatpush.msra.mxu0 0.0
    %428 = vmatpush.msra.mxu0 0.0
    %429 = vmatpush.msra.mxu0 0.0
    %430 = vmatpush.msra.mxu0 0.0
    %431 = vmatpush.msra.mxu0 0.0
    %432 = vmatpush.msra.mxu0 0.0
    %433 = vmatpush.msra.mxu0 %v117
    %434 = vmatpush.msra.mxu0 %v116
    %435 = vmatpush.msra.mxu0 %v115
    %436 = vmatpush.msra.mxu0 %v114
    %437 = vmatmul.f32.gmra.mxu0 %v419
    %v438 = vpop.f32.mrf.mxu0
    %v439 = vadd.f32 0.0, %v438
    %440 = vdwg.mxu0
    %v441 = vadd.f32 %v418, %v439
    %v442 = vxor.u32 %v441, 2147483648
    %v443 = vmul.f32 %v442, 1.442695
    %v444 = vpow.pop %v443
    %v445 = vadd.f32 %v444, 1.0
    %v446 = vrcp.pop %v445
    %v447 = vmul.f32 %v445, %v446
    %v448 = vsub.f32 1.0, %v447
    %v449 = vmul.f32 %v446, %v448
    %v450 = vadd.f32 %v446, %v449
    %vm451 = vweird.f32 %v445
    %vm452 = vweird.f32 %v446
    %vm453 = vmor %vm451, %vm452
    %v454 = vsel %vm453, %v446, %v450
    %v455 = vand.u32 2147483647, %v445
    %vm456 = vcmp.eq.f32.partialorder %v455, 8.507059e+37
    %v457 = vand.u32 %v445, 2147483648
    %v458 = vor.u32 1.1754944e-38, %v457
    %v459 = vsel %vm456, %v458, %v454
    %v460 = vmul.f32 1.0, %v459
    %v461 = vtanh.pop %v441
    %v462 = vmul.f32 %v460, %v403
    %464 = vrot.lane.b32.xlu0 %v461, 64
    %v465 = vpop.permute.xlu0 %464
    %v467 = vmul.f32 %v460, %v465
    %469 = vrot.lane.b32.xlu0 %v467, 32
    %v470 = vpop.permute.xlu0 %469
    %v472 = vadd.f32 %v462, %v470
    %v473 = vtanh.pop %v472
    %475 = vrot.lane.b32.xlu0 %v473, 64
    %v476 = vpop.permute.xlu0 %475
    %v478 = vmul.f32 %v460, %v476
    %480 = vrot.lane.b32.xlu0 %v478, 32
    %v481 = vpop.permute.xlu0 %480
    %483 = vst.msk [vmem:[#allocation2 + $0x18] sm:$0xff] %vm130, %v481
    %s484 = scalar_lea.vmem [#allocation4], 4
    %v485 = vld [vmem:[%s484] ss:$8 sm:$0xf]
    %v486 = vld [vmem:[%s484] ss:$8 sm:$0xf0]
    %v487 = vor.u32 %v485, %v486
    %v488 = vsel %vm130, %v481, 0
    %490 = vmatpush.msra.mxu0 0.0
    %491 = vmatpush.msra.mxu0 0.0
    %492 = vmatpush.msra.mxu0 0.0
    %493 = vmatpush.msra.mxu0 0.0
    %494 = vmatpush.msra.mxu0 0.0
    %495 = vmatpush.msra.mxu0 0.0
    %496 = vmatpush.msra.mxu0 0.0
    %497 = vmatpush.msra.mxu0 0.0
    %498 = vmatpush.msra.mxu0 0.0
    %499 = vmatpush.msra.mxu0 0.0
    %500 = vmatpush.msra.mxu0 0.0
    %501 = vmatpush.msra.mxu0 0.0
    %502 = vmatpush.msra.mxu0 %v117
    %503 = vmatpush.msra.mxu0 %v116
    %504 = vmatpush.msra.mxu0 %v115
    %505 = vmatpush.msra.mxu0 %v114
    %506 = vmatmul.f32.gmra.mxu0 %v488
    %v507 = vpop.f32.mrf.mxu0
    %v508 = vadd.f32 0.0, %v507
    %509 = vdwg.mxu0
    %v510 = vadd.f32 %v487, %v508
    %v511 = vxor.u32 %v510, 2147483648
    %v512 = vmul.f32 %v511, 1.442695
    %v513 = vpow.pop %v512
    %v514 = vadd.f32 %v513, 1.0
    %v515 = vrcp.pop %v514
    %v516 = vmul.f32 %v514, %v515
    %v517 = vsub.f32 1.0, %v516
    %v518 = vmul.f32 %v515, %v517
    %v519 = vadd.f32 %v515, %v518
    %vm520 = vweird.f32 %v514
    %vm521 = vweird.f32 %v515
    %vm522 = vmor %vm520, %vm521
    %v523 = vsel %vm522, %v515, %v519
    %v524 = vand.u32 2147483647, %v514
    %vm525 = vcmp.eq.f32.partialorder %v524, 8.507059e+37
    %v526 = vand.u32 %v514, 2147483648
    %v527 = vor.u32 1.1754944e-38, %v526
    %v528 = vsel %vm525, %v527, %v523
    %v529 = vmul.f32 1.0, %v528
    %v530 = vtanh.pop %v510
    %v531 = vmul.f32 %v529, %v472
    %533 = vrot.lane.b32.xlu0 %v530, 64
    %v534 = vpop.permute.xlu0 %533
    %v536 = vmul.f32 %v529, %v534
    %538 = vrot.lane.b32.xlu0 %v536, 32
    %v539 = vpop.permute.xlu0 %538
    %v541 = vadd.f32 %v531, %v539
    %v542 = vtanh.pop %v541
    %544 = vrot.lane.b32.xlu0 %v542, 64
    %v545 = vpop.permute.xlu0 %544
    %v547 = vmul.f32 %v529, %v545
    %549 = vrot.lane.b32.xlu0 %v547, 32
    %v550 = vpop.permute.xlu0 %549
    %552 = vst.msk [vmem:[#allocation2 + $0x20] sm:$0xff] %vm130, %v550
    %s553 = scalar_lea.vmem [#allocation4], 5
    %v554 = vld [vmem:[%s553] ss:$8 sm:$0xf]
    %v555 = vld [vmem:[%s553] ss:$8 sm:$0xf0]
    %v556 = vor.u32 %v554, %v555
    %v557 = vsel %vm130, %v550, 0
    %559 = vmatpush.msra.mxu0 0.0
    %560 = vmatpush.msra.mxu0 0.0
    %561 = vmatpush.msra.mxu0 0.0
    %562 = vmatpush.msra.mxu0 0.0
    %563 = vmatpush.msra.mxu0 0.0
    %564 = vmatpush.msra.mxu0 0.0
    %565 = vmatpush.msra.mxu0 0.0
    %566 = vmatpush.msra.mxu0 0.0
    %567 = vmatpush.msra.mxu0 0.0
    %568 = vmatpush.msra.mxu0 0.0
    %569 = vmatpush.msra.mxu0 0.0
    %570 = vmatpush.msra.mxu0 0.0
    %571 = vmatpush.msra.mxu0 %v117
    %572 = vmatpush.msra.mxu0 %v116
    %573 = vmatpush.msra.mxu0 %v115
    %574 = vmatpush.msra.mxu0 %v114
    %575 = vmatmul.f32.gmra.mxu0 %v557
    %v576 = vpop.f32.mrf.mxu0
    %v577 = vadd.f32 0.0, %v576
    %578 = vdwg.mxu0
    %v579 = vadd.f32 %v556, %v577
    %v580 = vxor.u32 %v579, 2147483648
    %v581 = vmul.f32 %v580, 1.442695
    %v582 = vpow.pop %v581
    %v583 = vadd.f32 %v582, 1.0
    %v584 = vrcp.pop %v583
    %v585 = vmul.f32 %v583, %v584
    %v586 = vsub.f32 1.0, %v585
    %v587 = vmul.f32 %v584, %v586
    %v588 = vadd.f32 %v584, %v587
    %vm589 = vweird.f32 %v583
    %vm590 = vweird.f32 %v584
    %vm591 = vmor %vm589, %vm590
    %v592 = vsel %vm591, %v584, %v588
    %v593 = vand.u32 2147483647, %v583
    %vm594 = vcmp.eq.f32.partialorder %v593, 8.507059e+37
    %v595 = vand.u32 %v583, 2147483648
    %v596 = vor.u32 1.1754944e-38, %v595
    %v597 = vsel %vm594, %v596, %v592
    %v598 = vmul.f32 1.0, %v597
    %v599 = vtanh.pop %v579
    %v600 = vmul.f32 %v598, %v541
    %602 = vrot.lane.b32.xlu0 %v599, 64
    %v603 = vpop.permute.xlu0 %602
    %v605 = vmul.f32 %v598, %v603
    %607 = vrot.lane.b32.xlu0 %v605, 32
    %v608 = vpop.permute.xlu0 %607
    %v610 = vadd.f32 %v600, %v608
    %v611 = vtanh.pop %v610
    %613 = vrot.lane.b32.xlu0 %v611, 64
    %v614 = vpop.permute.xlu0 %613
    %v616 = vmul.f32 %v598, %v614
    %618 = vrot.lane.b32.xlu0 %v616, 32
    %v619 = vpop.permute.xlu0 %618
    %621 = vst.msk [vmem:[#allocation2 + $0x28] sm:$0xff] %vm130, %v619
    %s622 = scalar_lea.vmem [#allocation4], 6
    %v623 = vld [vmem:[%s622] ss:$8 sm:$0xf]
    %v624 = vld [vmem:[%s622] ss:$8 sm:$0xf0]
    %v625 = vor.u32 %v623, %v624
    %v626 = vsel %vm130, %v619, 0
    %628 = vmatpush.msra.mxu0 0.0
    %629 = vmatpush.msra.mxu0 0.0
    %630 = vmatpush.msra.mxu0 0.0
    %631 = vmatpush.msra.mxu0 0.0
    %632 = vmatpush.msra.mxu0 0.0
    %633 = vmatpush.msra.mxu0 0.0
    %634 = vmatpush.msra.mxu0 0.0
    %635 = vmatpush.msra.mxu0 0.0
    %636 = vmatpush.msra.mxu0 0.0
    %637 = vmatpush.msra.mxu0 0.0
    %638 = vmatpush.msra.mxu0 0.0
    %639 = vmatpush.msra.mxu0 0.0
    %640 = vmatpush.msra.mxu0 %v117
    %641 = vmatpush.msra.mxu0 %v116
    %642 = vmatpush.msra.mxu0 %v115
    %643 = vmatpush.msra.mxu0 %v114
    %644 = vmatmul.f32.gmra.mxu0 %v626
    %v645 = vpop.f32.mrf.mxu0
    %v646 = vadd.f32 0.0, %v645
    %647 = vdwg.mxu0
    %v648 = vadd.f32 %v625, %v646
    %v649 = vxor.u32 %v648, 2147483648
    %v650 = vmul.f32 %v649, 1.442695
    %v651 = vpow.pop %v650
    %v652 = vadd.f32 %v651, 1.0
    %v653 = vrcp.pop %v652
    %v654 = vmul.f32 %v652, %v653
    %v655 = vsub.f32 1.0, %v654
    %v656 = vmul.f32 %v653, %v655
    %v657 = vadd.f32 %v653, %v656
    %vm658 = vweird.f32 %v652
    %vm659 = vweird.f32 %v653
    %vm660 = vmor %vm658, %vm659
    %v661 = vsel %vm660, %v653, %v657
    %v662 = vand.u32 2147483647, %v652
    %vm663 = vcmp.eq.f32.partialorder %v662, 8.507059e+37
    %v664 = vand.u32 %v652, 2147483648
    %v665 = vor.u32 1.1754944e-38, %v664
    %v666 = vsel %vm663, %v665, %v661
    %v667 = vmul.f32 1.0, %v666
    %v668 = vtanh.pop %v648
    %v669 = vmul.f32 %v667, %v610
    %671 = vrot.lane.b32.xlu0 %v668, 64
    %v672 = vpop.permute.xlu0 %671
    %v674 = vmul.f32 %v667, %v672
    %676 = vrot.lane.b32.xlu0 %v674, 32
    %v677 = vpop.permute.xlu0 %676
    %v679 = vadd.f32 %v669, %v677
    %v680 = vtanh.pop %v679
    %682 = vrot.lane.b32.xlu0 %v680, 64
    %v683 = vpop.permute.xlu0 %682
    %v685 = vmul.f32 %v667, %v683
    %687 = vrot.lane.b32.xlu0 %v685, 32
    %v688 = vpop.permute.xlu0 %687
    %690 = vst.msk [vmem:[#allocation2 + $0x30] sm:$0xff] %vm130, %v688
    %s691 = scalar_lea.vmem [#allocation4], 7
    %v692 = vld [vmem:[%s691] ss:$8 sm:$0xf]
    %v693 = vld [vmem:[%s691] ss:$8 sm:$0xf0]
    %v694 = vor.u32 %v692, %v693
    %v695 = vsel %vm130, %v688, 0
    %697 = vmatpush.msra.mxu0 0.0
    %698 = vmatpush.msra.mxu0 0.0
    %699 = vmatpush.msra.mxu0 0.0
    %700 = vmatpush.msra.mxu0 0.0
    %701 = vmatpush.msra.mxu0 0.0
    %702 = vmatpush.msra.mxu0 0.0
    %703 = vmatpush.msra.mxu0 0.0
    %704 = vmatpush.msra.mxu0 0.0
    %705 = vmatpush.msra.mxu0 0.0
    %706 = vmatpush.msra.mxu0 0.0
    %707 = vmatpush.msra.mxu0 0.0
    %708 = vmatpush.msra.mxu0 0.0
    %709 = vmatpush.msra.mxu0 %v117
    %710 = vmatpush.msra.mxu0 %v116
    %711 = vmatpush.msra.mxu0 %v115
    %712 = vmatpush.msra.mxu0 %v114
    %713 = vmatmul.f32.gmra.mxu0 %v695
    %v714 = vpop.f32.mrf.mxu0
    %v715 = vadd.f32 0.0, %v714
    %716 = vdwg.mxu0
    %v717 = vadd.f32 %v694, %v715
    %v718 = vxor.u32 %v717, 2147483648
    %v719 = vmul.f32 %v718, 1.442695
    %v720 = vpow.pop %v719
    %v721 = vadd.f32 %v720, 1.0
    %v722 = vrcp.pop %v721
    %v723 = vmul.f32 %v721, %v722
    %v724 = vsub.f32 1.0, %v723
    %v725 = vmul.f32 %v722, %v724
    %v726 = vadd.f32 %v722, %v725
    %vm727 = vweird.f32 %v721
    %vm728 = vweird.f32 %v722
    %vm729 = vmor %vm727, %vm728
    %v730 = vsel %vm729, %v722, %v726
    %v731 = vand.u32 2147483647, %v721
    %vm732 = vcmp.eq.f32.partialorder %v731, 8.507059e+37
    %v733 = vand.u32 %v721, 2147483648
    %v734 = vor.u32 1.1754944e-38, %v733
    %v735 = vsel %vm732, %v734, %v730
    %v736 = vmul.f32 1.0, %v735
    %v737 = vtanh.pop %v717
    %v738 = vmul.f32 %v736, %v679
    %740 = vrot.lane.b32.xlu0 %v737, 64
    %v741 = vpop.permute.xlu0 %740
    %v743 = vmul.f32 %v736, %v741
    %745 = vrot.lane.b32.xlu0 %v743, 32
    %v746 = vpop.permute.xlu0 %745
    %v748 = vadd.f32 %v738, %v746
    %v749 = vtanh.pop %v748
    %751 = vrot.lane.b32.xlu0 %v749, 64
    %v752 = vpop.permute.xlu0 %751
    %v754 = vmul.f32 %v736, %v752
    %756 = vrot.lane.b32.xlu0 %v754, 32
    %v757 = vpop.permute.xlu0 %756
    %759 = vst.msk [vmem:[#allocation2 + $0x38] sm:$0xff] %vm130, %v757
    %v760 = vld [vmem:[%s4] sm:$0x1]
    %v762 = vperm.slane %v760, 0
    %763 = vrot.lane.b32.xlu0 %v762, 96
    %v764 = vpop.permute.xlu0 %763
    %v766 = vmul.f32 %v754, %v764
    %768 = vrot.lane.b32.xlu0 %v766, 32
    %v769 = vpop.permute.xlu0 %768
    %v771 = vsel %vm130, %v769, 0.0
    %772 = vadd.xlane.f32.xlu0 %v771
    %v773 = vpop.xlane.xlu0 %772
    %v774 = vld [vmem:[%s5] sm:$0x1]
    %v776 = vperm.slane %v774, 0
    %v778 = vadd.f32 %v773, %v776
    %v779 = vxor.u32 %v778, 2147483648
    %v780 = vmul.f32 %v779, 1.442695
    %v781 = vpow.pop %v780
    %v782 = vadd.f32 %v781, 1.0
    %v783 = vrcp.pop %v782
    %v784 = vmul.f32 %v782, %v783
    %v785 = vsub.f32 1.0, %v784
    %v786 = vmul.f32 %v783, %v785
    %v787 = vadd.f32 %v783, %v786
    %vm788 = vweird.f32 %v782
    %vm789 = vweird.f32 %v783
    %vm790 = vmor %vm788, %vm789
    %v791 = vsel %vm790, %v783, %v787
    %v792 = vand.u32 2147483647, %v782
    %vm793 = vcmp.eq.f32.partialorder %v792, 8.507059e+37
    %v794 = vand.u32 %v782, 2147483648
    %v795 = vor.u32 1.1754944e-38, %v794
    %v796 = vsel %vm793, %v795, %v791
    %v797 = vmul.f32 1.0, %v796
    %vm798 = vcmask 7168
    %799 = vst.msk [vmem:[%s8] sm:$0xff] %vm798, %v797
    %s800 = scalar_lea.vmem [#allocation8], 32
    %v801 = vld [vmem:[%s800] sm:$0xff]
    %v802 = vld [vmem:[%s800 + $0x8] sm:$0xff]
    %v803 = vld [vmem:[%s800 + $0x10] sm:$0xff]
    %v804 = vld [vmem:[%s800 + $0x18] sm:$0xff]
    %s805 = scalar_lea.vmem [#allocation10], 32
    %v806 = vld [vmem:[%s805] sm:$0xff]
    %v807 = vld [vmem:[%s805 + $0x8] sm:$0xff]
    %v808 = vld [vmem:[%s805 + $0x10] sm:$0xff]
    %v809 = vld [vmem:[%s805 + $0x18] sm:$0xff]
    %s810 = scalar_lea.vmem %s3, 1
    %v811 = vld [vmem:[%s810] sm:$0x1]
    %v812 = vld [vmem:[#allocation2] sm:$0xff]
    %v813 = vld [vmem:[#allocation2 + $0x8] sm:$0xff]
    %v814 = vld [vmem:[#allocation2 + $0x10] sm:$0xff]
    %v815 = vld [vmem:[#allocation2 + $0x18] sm:$0xff]
    %v816 = vld [vmem:[#allocation2 + $0x20] sm:$0xff]
    %v817 = vld [vmem:[#allocation2 + $0x28] sm:$0xff]
    %v818 = vld [vmem:[#allocation2 + $0x30] sm:$0xff]
    %v819 = vld [vmem:[#allocation2 + $0x38] sm:$0xff]
    %v821 = vperm.slane %v811, 0
    %v824 = vsel %vm130, %v812, 0
    %v827 = vsel %vm130, %v813, 0
    %v830 = vsel %vm130, %v814, 0
    %v833 = vsel %vm130, %v815, 0
    %v836 = vsel %vm130, %v816, 0
    %v839 = vsel %vm130, %v817, 0
    %v842 = vsel %vm130, %v818, 0
    %v845 = vsel %vm130, %v819, 0
    %847 = vmatpush.msra.mxu0 0.0
    %848 = vmatpush.msra.mxu0 0.0
    %849 = vmatpush.msra.mxu0 0.0
    %850 = vmatpush.msra.mxu0 0.0
    %851 = vmatpush.msra.mxu0 0.0
    %852 = vmatpush.msra.mxu0 0.0
    %853 = vmatpush.msra.mxu0 0.0
    %854 = vmatpush.msra.mxu0 0.0
    %855 = vmatpush.msra.mxu0 0.0
    %856 = vmatpush.msra.mxu0 0.0
    %857 = vmatpush.msra.mxu0 0.0
    %858 = vmatpush.msra.mxu0 0.0
    %859 = vmatpush.msra.mxu0 %v804
    %860 = vmatpush.msra.mxu0 %v803
    %861 = vmatpush.msra.mxu0 %v802
    %862 = vmatpush.msra.mxu0 %v801
    %863 = vmatmul.f32.gmra.mxu0 %v824
    %v864 = vpop.f32.mrf.mxu0
    %v865 = vadd.f32 %v821, %v864
    %866 = vmatmul.f32.gmra.mxu0 %v827
    %v867 = vpop.f32.mrf.mxu0
    %v868 = vadd.f32 %v821, %v867
    %869 = vmatmul.f32.gmra.mxu0 %v830
    %v870 = vpop.f32.mrf.mxu0
    %v871 = vadd.f32 %v821, %v870
    %872 = vmatmul.f32.gmra.mxu0 %v833
    %v873 = vpop.f32.mrf.mxu0
    %v874 = vadd.f32 %v821, %v873
    %875 = vmatmul.f32.gmra.mxu0 %v836
    %v876 = vpop.f32.mrf.mxu0
    %v877 = vadd.f32 %v821, %v876
    %878 = vmatmul.f32.gmra.mxu0 %v839
    %v879 = vpop.f32.mrf.mxu0
    %v880 = vadd.f32 %v821, %v879
    %881 = vmatmul.f32.gmra.mxu0 %v842
    %v882 = vpop.f32.mrf.mxu0
    %v883 = vadd.f32 %v821, %v882
    %884 = vmatmul.f32.gmra.mxu0 %v845
    %v885 = vpop.f32.mrf.mxu0
    %v886 = vadd.f32 %v821, %v885
    %887 = vdwg.mxu0
    %888 = vst [vmem:[#allocation4] sm:$0xff] %v865
    %889 = vst [vmem:[#allocation4 + $0x8] sm:$0xff] %v868
    %890 = vst [vmem:[#allocation4 + $0x10] sm:$0xff] %v871
    %891 = vst [vmem:[#allocation4 + $0x18] sm:$0xff] %v874
    %892 = vst [vmem:[#allocation4 + $0x20] sm:$0xff] %v877
    %893 = vst [vmem:[#allocation4 + $0x28] sm:$0xff] %v880
    %894 = vst [vmem:[#allocation4 + $0x30] sm:$0xff] %v883
    %895 = vst [vmem:[#allocation4 + $0x38] sm:$0xff] %v886
    %v896 = vld [vmem:[#allocation4] ss:$8 sm:$0xf]
    %v897 = vld [vmem:[#allocation4] ss:$8 sm:$0xf0]
    %v898 = vor.u32 %v896, %v897
    %v899 = vsel %vm130, %v757, 0
    %901 = vmatpush.msra.mxu0 0.0
    %902 = vmatpush.msra.mxu0 0.0
    %903 = vmatpush.msra.mxu0 0.0
    %904 = vmatpush.msra.mxu0 0.0
    %905 = vmatpush.msra.mxu0 0.0
    %906 = vmatpush.msra.mxu0 0.0
    %907 = vmatpush.msra.mxu0 0.0
    %908 = vmatpush.msra.mxu0 0.0
    %909 = vmatpush.msra.mxu0 0.0
    %910 = vmatpush.msra.mxu0 0.0
    %911 = vmatpush.msra.mxu0 0.0
    %912 = vmatpush.msra.mxu0 0.0
    %913 = vmatpush.msra.mxu0 %v809
    %914 = vmatpush.msra.mxu0 %v808
    %915 = vmatpush.msra.mxu0 %v807
    %916 = vmatpush.msra.mxu0 %v806
    %917 = vmatmul.f32.gmra.mxu0 %v899
    %v918 = vpop.f32.mrf.mxu0
    %v919 = vadd.f32 0.0, %v918
    %920 = vdwg.mxu0
    %v921 = vadd.f32 %v898, %v919
    %v922 = vxor.u32 %v921, 2147483648
    %v923 = vmul.f32 %v922, 1.442695
    %v924 = vpow.pop %v923
    %v925 = vadd.f32 %v924, 1.0
    %v926 = vrcp.pop %v925
    %v927 = vmul.f32 %v925, %v926
    %v928 = vsub.f32 1.0, %v927
    %v929 = vmul.f32 %v926, %v928
    %v930 = vadd.f32 %v926, %v929
    %vm931 = vweird.f32 %v925
    %vm932 = vweird.f32 %v926
    %vm933 = vmor %vm931, %vm932
    %v934 = vsel %vm933, %v926, %v930
    %v935 = vand.u32 2147483647, %v925
    %vm936 = vcmp.eq.f32.partialorder %v935, 8.507059e+37
    %v937 = vand.u32 %v925, 2147483648
    %v938 = vor.u32 1.1754944e-38, %v937
    %v939 = vsel %vm936, %v938, %v934
    %v940 = vmul.f32 1.0, %v939
    %v941 = vtanh.pop %v921
    %v942 = vmul.f32 %v940, %v748
    %944 = vrot.lane.b32.xlu0 %v941, 64
    %v945 = vpop.permute.xlu0 %944
    %v947 = vmul.f32 %v940, %v945
    %949 = vrot.lane.b32.xlu0 %v947, 32
    %v950 = vpop.permute.xlu0 %949
    %v952 = vadd.f32 %v942, %v950
    %v953 = vtanh.pop %v952
    %955 = vrot.lane.b32.xlu0 %v953, 64
    %v956 = vpop.permute.xlu0 %955
    %v958 = vmul.f32 %v940, %v956
    %960 = vrot.lane.b32.xlu0 %v958, 32
    %v961 = vpop.permute.xlu0 %960
    %963 = vst.msk [vmem:[#allocation3] sm:$0xff] %vm130, %v961
    %v964 = vld [vmem:[%s277] ss:$8 sm:$0xf]
    %v965 = vld [vmem:[%s277] ss:$8 sm:$0xf0]
    %v966 = vor.u32 %v964, %v965
    %v967 = vsel %vm130, %v961, 0
    %969 = vmatpush.msra.mxu0 0.0
    %970 = vmatpush.msra.mxu0 0.0
    %971 = vmatpush.msra.mxu0 0.0
    %972 = vmatpush.msra.mxu0 0.0
    %973 = vmatpush.msra.mxu0 0.0
    %974 = vmatpush.msra.mxu0 0.0
    %975 = vmatpush.msra.mxu0 0.0
    %976 = vmatpush.msra.mxu0 0.0
    %977 = vmatpush.msra.mxu0 0.0
    %978 = vmatpush.msra.mxu0 0.0
    %979 = vmatpush.msra.mxu0 0.0
    %980 = vmatpush.msra.mxu0 0.0
    %981 = vmatpush.msra.mxu0 %v809
    %982 = vmatpush.msra.mxu0 %v808
    %983 = vmatpush.msra.mxu0 %v807
    %984 = vmatpush.msra.mxu0 %v806
    %985 = vmatmul.f32.gmra.mxu0 %v967
    %v986 = vpop.f32.mrf.mxu0
    %v987 = vadd.f32 0.0, %v986
    %988 = vdwg.mxu0
    %v989 = vadd.f32 %v966, %v987
    %v990 = vxor.u32 %v989, 2147483648
    %v991 = vmul.f32 %v990, 1.442695
    %v992 = vpow.pop %v991
    %v993 = vadd.f32 %v992, 1.0
    %v994 = vrcp.pop %v993
    %v995 = vmul.f32 %v993, %v994
    %v996 = vsub.f32 1.0, %v995
    %v997 = vmul.f32 %v994, %v996
    %v998 = vadd.f32 %v994, %v997
    %vm999 = vweird.f32 %v993
    %vm1000 = vweird.f32 %v994
    %vm1001 = vmor %vm999, %vm1000
    %v1002 = vsel %vm1001, %v994, %v998
    %v1003 = vand.u32 2147483647, %v993
    %vm1004 = vcmp.eq.f32.partialorder %v1003, 8.507059e+37
    %v1005 = vand.u32 %v993, 2147483648
    %v1006 = vor.u32 1.1754944e-38, %v1005
    %v1007 = vsel %vm1004, %v1006, %v1002
    %v1008 = vmul.f32 1.0, %v1007
    %v1009 = vtanh.pop %v989
    %v1010 = vmul.f32 %v1008, %v952
    %1012 = vrot.lane.b32.xlu0 %v1009, 64
    %v1013 = vpop.permute.xlu0 %1012
    %v1015 = vmul.f32 %v1008, %v1013
    %1017 = vrot.lane.b32.xlu0 %v1015, 32
    %v1018 = vpop.permute.xlu0 %1017
    %v1020 = vadd.f32 %v1010, %v1018
    %v1021 = vtanh.pop %v1020
    %1023 = vrot.lane.b32.xlu0 %v1021, 64
    %v1024 = vpop.permute.xlu0 %1023
    %v1026 = vmul.f32 %v1008, %v1024
    %1028 = vrot.lane.b32.xlu0 %v1026, 32
    %v1029 = vpop.permute.xlu0 %1028
    %1031 = vst.msk [vmem:[#allocation3 + $0x8] sm:$0xff] %vm130, %v1029
    %v1032 = vld [vmem:[%s346] ss:$8 sm:$0xf]
    %v1033 = vld [vmem:[%s346] ss:$8 sm:$0xf0]
    %v1034 = vor.u32 %v1032, %v1033
    %v1035 = vsel %vm130, %v1029, 0
    %1037 = vmatpush.msra.mxu0 0.0
    %1038 = vmatpush.msra.mxu0 0.0
    %1039 = vmatpush.msra.mxu0 0.0
    %1040 = vmatpush.msra.mxu0 0.0
    %1041 = vmatpush.msra.mxu0 0.0
    %1042 = vmatpush.msra.mxu0 0.0
    %1043 = vmatpush.msra.mxu0 0.0
    %1044 = vmatpush.msra.mxu0 0.0
    %1045 = vmatpush.msra.mxu0 0.0
    %1046 = vmatpush.msra.mxu0 0.0
    %1047 = vmatpush.msra.mxu0 0.0
    %1048 = vmatpush.msra.mxu0 0.0
    %1049 = vmatpush.msra.mxu0 %v809
    %1050 = vmatpush.msra.mxu0 %v808
    %1051 = vmatpush.msra.mxu0 %v807
    %1052 = vmatpush.msra.mxu0 %v806
    %1053 = vmatmul.f32.gmra.mxu0 %v1035
    %v1054 = vpop.f32.mrf.mxu0
    %v1055 = vadd.f32 0.0, %v1054
    %1056 = vdwg.mxu0
    %v1057 = vadd.f32 %v1034, %v1055
    %v1058 = vxor.u32 %v1057, 2147483648
    %v1059 = vmul.f32 %v1058, 1.442695
    %v1060 = vpow.pop %v1059
    %v1061 = vadd.f32 %v1060, 1.0
    %v1062 = vrcp.pop %v1061
    %v1063 = vmul.f32 %v1061, %v1062
    %v1064 = vsub.f32 1.0, %v1063
    %v1065 = vmul.f32 %v1062, %v1064
    %v1066 = vadd.f32 %v1062, %v1065
    %vm1067 = vweird.f32 %v1061
    %vm1068 = vweird.f32 %v1062
    %vm1069 = vmor %vm1067, %vm1068
    %v1070 = vsel %vm1069, %v1062, %v1066
    %v1071 = vand.u32 2147483647, %v1061
    %vm1072 = vcmp.eq.f32.partialorder %v1071, 8.507059e+37
    %v1073 = vand.u32 %v1061, 2147483648
    %v1074 = vor.u32 1.1754944e-38, %v1073
    %v1075 = vsel %vm1072, %v1074, %v1070
    %v1076 = vmul.f32 1.0, %v1075
    %v1077 = vtanh.pop %v1057
    %v1078 = vmul.f32 %v1076, %v1020
    %1080 = vrot.lane.b32.xlu0 %v1077, 64
    %v1081 = vpop.permute.xlu0 %1080
    %v1083 = vmul.f32 %v1076, %v1081
    %1085 = vrot.lane.b32.xlu0 %v1083, 32
    %v1086 = vpop.permute.xlu0 %1085
    %v1088 = vadd.f32 %v1078, %v1086
    %v1089 = vtanh.pop %v1088
    %1091 = vrot.lane.b32.xlu0 %v1089, 64
    %v1092 = vpop.permute.xlu0 %1091
    %v1094 = vmul.f32 %v1076, %v1092
    %1096 = vrot.lane.b32.xlu0 %v1094, 32
    %v1097 = vpop.permute.xlu0 %1096
    %1099 = vst.msk [vmem:[#allocation3 + $0x10] sm:$0xff] %vm130, %v1097
    %v1100 = vld [vmem:[%s415] ss:$8 sm:$0xf]
    %v1101 = vld [vmem:[%s415] ss:$8 sm:$0xf0]
    %v1102 = vor.u32 %v1100, %v1101
    %v1103 = vsel %vm130, %v1097, 0
    %1105 = vmatpush.msra.mxu0 0.0
    %1106 = vmatpush.msra.mxu0 0.0
    %1107 = vmatpush.msra.mxu0 0.0
    %1108 = vmatpush.msra.mxu0 0.0
    %1109 = vmatpush.msra.mxu0 0.0
    %1110 = vmatpush.msra.mxu0 0.0
    %1111 = vmatpush.msra.mxu0 0.0
    %1112 = vmatpush.msra.mxu0 0.0
    %1113 = vmatpush.msra.mxu0 0.0
    %1114 = vmatpush.msra.mxu0 0.0
    %1115 = vmatpush.msra.mxu0 0.0
    %1116 = vmatpush.msra.mxu0 0.0
    %1117 = vmatpush.msra.mxu0 %v809
    %1118 = vmatpush.msra.mxu0 %v808
    %1119 = vmatpush.msra.mxu0 %v807
    %1120 = vmatpush.msra.mxu0 %v806
    %1121 = vmatmul.f32.gmra.mxu0 %v1103
    %v1122 = vpop.f32.mrf.mxu0
    %v1123 = vadd.f32 0.0, %v1122
    %1124 = vdwg.mxu0
    %v1125 = vadd.f32 %v1102, %v1123
    %v1126 = vxor.u32 %v1125, 2147483648
    %v1127 = vmul.f32 %v1126, 1.442695
    %v1128 = vpow.pop %v1127
    %v1129 = vadd.f32 %v1128, 1.0
    %v1130 = vrcp.pop %v1129
    %v1131 = vmul.f32 %v1129, %v1130
    %v1132 = vsub.f32 1.0, %v1131
    %v1133 = vmul.f32 %v1130, %v1132
    %v1134 = vadd.f32 %v1130, %v1133
    %vm1135 = vweird.f32 %v1129
    %vm1136 = vweird.f32 %v1130
    %vm1137 = vmor %vm1135, %vm1136
    %v1138 = vsel %vm1137, %v1130, %v1134
    %v1139 = vand.u32 2147483647, %v1129
    %vm1140 = vcmp.eq.f32.partialorder %v1139, 8.507059e+37
    %v1141 = vand.u32 %v1129, 2147483648
    %v1142 = vor.u32 1.1754944e-38, %v1141
    %v1143 = vsel %vm1140, %v1142, %v1138
    %v1144 = vmul.f32 1.0, %v1143
    %v1145 = vtanh.pop %v1125
    %v1146 = vmul.f32 %v1144, %v1088
    %1148 = vrot.lane.b32.xlu0 %v1145, 64
    %v1149 = vpop.permute.xlu0 %1148
    %v1151 = vmul.f32 %v1144, %v1149
    %1153 = vrot.lane.b32.xlu0 %v1151, 32
    %v1154 = vpop.permute.xlu0 %1153
    %v1156 = vadd.f32 %v1146, %v1154
    %v1157 = vtanh.pop %v1156
    %1159 = vrot.lane.b32.xlu0 %v1157, 64
    %v1160 = vpop.permute.xlu0 %1159
    %v1162 = vmul.f32 %v1144, %v1160
    %1164 = vrot.lane.b32.xlu0 %v1162, 32
    %v1165 = vpop.permute.xlu0 %1164
    %1167 = vst.msk [vmem:[#allocation3 + $0x18] sm:$0xff] %vm130, %v1165
    %v1168 = vld [vmem:[%s484] ss:$8 sm:$0xf]
    %v1169 = vld [vmem:[%s484] ss:$8 sm:$0xf0]
    %v1170 = vor.u32 %v1168, %v1169
    %v1171 = vsel %vm130, %v1165, 0
    %1173 = vmatpush.msra.mxu0 0.0
    %1174 = vmatpush.msra.mxu0 0.0
    %1175 = vmatpush.msra.mxu0 0.0
    %1176 = vmatpush.msra.mxu0 0.0
    %1177 = vmatpush.msra.mxu0 0.0
    %1178 = vmatpush.msra.mxu0 0.0
    %1179 = vmatpush.msra.mxu0 0.0
    %1180 = vmatpush.msra.mxu0 0.0
    %1181 = vmatpush.msra.mxu0 0.0
    %1182 = vmatpush.msra.mxu0 0.0
    %1183 = vmatpush.msra.mxu0 0.0
    %1184 = vmatpush.msra.mxu0 0.0
    %1185 = vmatpush.msra.mxu0 %v809
    %1186 = vmatpush.msra.mxu0 %v808
    %1187 = vmatpush.msra.mxu0 %v807
    %1188 = vmatpush.msra.mxu0 %v806
    %1189 = vmatmul.f32.gmra.mxu0 %v1171
    %v1190 = vpop.f32.mrf.mxu0
    %v1191 = vadd.f32 0.0, %v1190
    %1192 = vdwg.mxu0
    %v1193 = vadd.f32 %v1170, %v1191
    %v1194 = vxor.u32 %v1193, 2147483648
    %v1195 = vmul.f32 %v1194, 1.442695
    %v1196 = vpow.pop %v1195
    %v1197 = vadd.f32 %v1196, 1.0
    %v1198 = vrcp.pop %v1197
    %v1199 = vmul.f32 %v1197, %v1198
    %v1200 = vsub.f32 1.0, %v1199
    %v1201 = vmul.f32 %v1198, %v1200
    %v1202 = vadd.f32 %v1198, %v1201
    %vm1203 = vweird.f32 %v1197
    %vm1204 = vweird.f32 %v1198
    %vm1205 = vmor %vm1203, %vm1204
    %v1206 = vsel %vm1205, %v1198, %v1202
    %v1207 = vand.u32 2147483647, %v1197
    %vm1208 = vcmp.eq.f32.partialorder %v1207, 8.507059e+37
    %v1209 = vand.u32 %v1197, 2147483648
    %v1210 = vor.u32 1.1754944e-38, %v1209
    %v1211 = vsel %vm1208, %v1210, %v1206
    %v1212 = vmul.f32 1.0, %v1211
    %v1213 = vtanh.pop %v1193
    %v1214 = vmul.f32 %v1212, %v1156
    %1216 = vrot.lane.b32.xlu0 %v1213, 64
    %v1217 = vpop.permute.xlu0 %1216
    %v1219 = vmul.f32 %v1212, %v1217
    %1221 = vrot.lane.b32.xlu0 %v1219, 32
    %v1222 = vpop.permute.xlu0 %1221
    %v1224 = vadd.f32 %v1214, %v1222
    %v1225 = vtanh.pop %v1224
    %1227 = vrot.lane.b32.xlu0 %v1225, 64
    %v1228 = vpop.permute.xlu0 %1227
    %v1230 = vmul.f32 %v1212, %v1228
    %1232 = vrot.lane.b32.xlu0 %v1230, 32
    %v1233 = vpop.permute.xlu0 %1232
    %1235 = vst.msk [vmem:[#allocation3 + $0x20] sm:$0xff] %vm130, %v1233
    %v1236 = vld [vmem:[%s553] ss:$8 sm:$0xf]
    %v1237 = vld [vmem:[%s553] ss:$8 sm:$0xf0]
    %v1238 = vor.u32 %v1236, %v1237
    %v1239 = vsel %vm130, %v1233, 0
    %1241 = vmatpush.msra.mxu0 0.0
    %1242 = vmatpush.msra.mxu0 0.0
    %1243 = vmatpush.msra.mxu0 0.0
    %1244 = vmatpush.msra.mxu0 0.0
    %1245 = vmatpush.msra.mxu0 0.0
    %1246 = vmatpush.msra.mxu0 0.0
    %1247 = vmatpush.msra.mxu0 0.0
    %1248 = vmatpush.msra.mxu0 0.0
    %1249 = vmatpush.msra.mxu0 0.0
    %1250 = vmatpush.msra.mxu0 0.0
    %1251 = vmatpush.msra.mxu0 0.0
    %1252 = vmatpush.msra.mxu0 0.0
    %1253 = vmatpush.msra.mxu0 %v809
    %1254 = vmatpush.msra.mxu0 %v808
    %1255 = vmatpush.msra.mxu0 %v807
    %1256 = vmatpush.msra.mxu0 %v806
    %1257 = vmatmul.f32.gmra.mxu0 %v1239
    %v1258 = vpop.f32.mrf.mxu0
    %v1259 = vadd.f32 0.0, %v1258
    %1260 = vdwg.mxu0
    %v1261 = vadd.f32 %v1238, %v1259
    %v1262 = vxor.u32 %v1261, 2147483648
    %v1263 = vmul.f32 %v1262, 1.442695
    %v1264 = vpow.pop %v1263
    %v1265 = vadd.f32 %v1264, 1.0
    %v1266 = vrcp.pop %v1265
    %v1267 = vmul.f32 %v1265, %v1266
    %v1268 = vsub.f32 1.0, %v1267
    %v1269 = vmul.f32 %v1266, %v1268
    %v1270 = vadd.f32 %v1266, %v1269
    %vm1271 = vweird.f32 %v1265
    %vm1272 = vweird.f32 %v1266
    %vm1273 = vmor %vm1271, %vm1272
    %v1274 = vsel %vm1273, %v1266, %v1270
    %v1275 = vand.u32 2147483647, %v1265
    %vm1276 = vcmp.eq.f32.partialorder %v1275, 8.507059e+37
    %v1277 = vand.u32 %v1265, 2147483648
    %v1278 = vor.u32 1.1754944e-38, %v1277
    %v1279 = vsel %vm1276, %v1278, %v1274
    %v1280 = vmul.f32 1.0, %v1279
    %v1281 = vtanh.pop %v1261
    %v1282 = vmul.f32 %v1280, %v1224
    %1284 = vrot.lane.b32.xlu0 %v1281, 64
    %v1285 = vpop.permute.xlu0 %1284
    %v1287 = vmul.f32 %v1280, %v1285
    %1289 = vrot.lane.b32.xlu0 %v1287, 32
    %v1290 = vpop.permute.xlu0 %1289
    %v1292 = vadd.f32 %v1282, %v1290
    %v1293 = vtanh.pop %v1292
    %1295 = vrot.lane.b32.xlu0 %v1293, 64
    %v1296 = vpop.permute.xlu0 %1295
    %v1298 = vmul.f32 %v1280, %v1296
    %1300 = vrot.lane.b32.xlu0 %v1298, 32
    %v1301 = vpop.permute.xlu0 %1300
    %1303 = vst.msk [vmem:[#allocation3 + $0x28] sm:$0xff] %vm130, %v1301
    %v1304 = vld [vmem:[%s622] ss:$8 sm:$0xf]
    %v1305 = vld [vmem:[%s622] ss:$8 sm:$0xf0]
    %v1306 = vor.u32 %v1304, %v1305
    %v1307 = vsel %vm130, %v1301, 0
    %1309 = vmatpush.msra.mxu0 0.0
    %1310 = vmatpush.msra.mxu0 0.0
    %1311 = vmatpush.msra.mxu0 0.0
    %1312 = vmatpush.msra.mxu0 0.0
    %1313 = vmatpush.msra.mxu0 0.0
    %1314 = vmatpush.msra.mxu0 0.0
    %1315 = vmatpush.msra.mxu0 0.0
    %1316 = vmatpush.msra.mxu0 0.0
    %1317 = vmatpush.msra.mxu0 0.0
    %1318 = vmatpush.msra.mxu0 0.0
    %1319 = vmatpush.msra.mxu0 0.0
    %1320 = vmatpush.msra.mxu0 0.0
    %1321 = vmatpush.msra.mxu0 %v809
    %1322 = vmatpush.msra.mxu0 %v808
    %1323 = vmatpush.msra.mxu0 %v807
    %1324 = vmatpush.msra.mxu0 %v806
    %1325 = vmatmul.f32.gmra.mxu0 %v1307
    %v1326 = vpop.f32.mrf.mxu0
    %v1327 = vadd.f32 0.0, %v1326
    %1328 = vdwg.mxu0
    %v1329 = vadd.f32 %v1306, %v1327
    %v1330 = vxor.u32 %v1329, 2147483648
    %v1331 = vmul.f32 %v1330, 1.442695
    %v1332 = vpow.pop %v1331
    %v1333 = vadd.f32 %v1332, 1.0
    %v1334 = vrcp.pop %v1333
    %v1335 = vmul.f32 %v1333, %v1334
    %v1336 = vsub.f32 1.0, %v1335
    %v1337 = vmul.f32 %v1334, %v1336
    %v1338 = vadd.f32 %v1334, %v1337
    %vm1339 = vweird.f32 %v1333
    %vm1340 = vweird.f32 %v1334
    %vm1341 = vmor %vm1339, %vm1340
    %v1342 = vsel %vm1341, %v1334, %v1338
    %v1343 = vand.u32 2147483647, %v1333
    %vm1344 = vcmp.eq.f32.partialorder %v1343, 8.507059e+37
    %v1345 = vand.u32 %v1333, 2147483648
    %v1346 = vor.u32 1.1754944e-38, %v1345
    %v1347 = vsel %vm1344, %v1346, %v1342
    %v1348 = vmul.f32 1.0, %v1347
    %v1349 = vtanh.pop %v1329
    %v1350 = vmul.f32 %v1348, %v1292
    %1352 = vrot.lane.b32.xlu0 %v1349, 64
    %v1353 = vpop.permute.xlu0 %1352
    %v1355 = vmul.f32 %v1348, %v1353
    %1357 = vrot.lane.b32.xlu0 %v1355, 32
    %v1358 = vpop.permute.xlu0 %1357
    %v1360 = vadd.f32 %v1350, %v1358
    %v1361 = vtanh.pop %v1360
    %1363 = vrot.lane.b32.xlu0 %v1361, 64
    %v1364 = vpop.permute.xlu0 %1363
    %v1366 = vmul.f32 %v1348, %v1364
    %1368 = vrot.lane.b32.xlu0 %v1366, 32
    %v1369 = vpop.permute.xlu0 %1368
    %1371 = vst.msk [vmem:[#allocation3 + $0x30] sm:$0xff] %vm130, %v1369
    %v1372 = vld [vmem:[%s691] ss:$8 sm:$0xf]
    %v1373 = vld [vmem:[%s691] ss:$8 sm:$0xf0]
    %v1374 = vor.u32 %v1372, %v1373
    %v1375 = vsel %vm130, %v1369, 0
    %1377 = vmatpush.msra.mxu0 0.0
    %1378 = vmatpush.msra.mxu0 0.0
    %1379 = vmatpush.msra.mxu0 0.0
    %1380 = vmatpush.msra.mxu0 0.0
    %1381 = vmatpush.msra.mxu0 0.0
    %1382 = vmatpush.msra.mxu0 0.0
    %1383 = vmatpush.msra.mxu0 0.0
    %1384 = vmatpush.msra.mxu0 0.0
    %1385 = vmatpush.msra.mxu0 0.0
    %1386 = vmatpush.msra.mxu0 0.0
    %1387 = vmatpush.msra.mxu0 0.0
    %1388 = vmatpush.msra.mxu0 0.0
    %1389 = vmatpush.msra.mxu0 %v809
    %1390 = vmatpush.msra.mxu0 %v808
    %1391 = vmatpush.msra.mxu0 %v807
    %1392 = vmatpush.msra.mxu0 %v806
    %1393 = vmatmul.f32.gmra.mxu0 %v1375
    %v1394 = vpop.f32.mrf.mxu0
    %v1395 = vadd.f32 0.0, %v1394
    %1396 = vdwg.mxu0
    %v1397 = vadd.f32 %v1374, %v1395
    %v1398 = vxor.u32 %v1397, 2147483648
    %v1399 = vmul.f32 %v1398, 1.442695
    %v1400 = vpow.pop %v1399
    %v1401 = vadd.f32 %v1400, 1.0
    %v1402 = vrcp.pop %v1401
    %v1403 = vmul.f32 %v1401, %v1402
    %v1404 = vsub.f32 1.0, %v1403
    %v1405 = vmul.f32 %v1402, %v1404
    %v1406 = vadd.f32 %v1402, %v1405
    %vm1407 = vweird.f32 %v1401
    %vm1408 = vweird.f32 %v1402
    %vm1409 = vmor %vm1407, %vm1408
    %v1410 = vsel %vm1409, %v1402, %v1406
    %v1411 = vand.u32 2147483647, %v1401
    %vm1412 = vcmp.eq.f32.partialorder %v1411, 8.507059e+37
    %v1413 = vand.u32 %v1401, 2147483648
    %v1414 = vor.u32 1.1754944e-38, %v1413
    %v1415 = vsel %vm1412, %v1414, %v1410
    %v1416 = vmul.f32 1.0, %v1415
    %v1417 = vtanh.pop %v1397
    %v1418 = vmul.f32 %v1416, %v1360
    %1420 = vrot.lane.b32.xlu0 %v1417, 64
    %v1421 = vpop.permute.xlu0 %1420
    %v1423 = vmul.f32 %v1416, %v1421
    %1425 = vrot.lane.b32.xlu0 %v1423, 32
    %v1426 = vpop.permute.xlu0 %1425
    %v1428 = vadd.f32 %v1418, %v1426
    %v1429 = vtanh.pop %v1428
    %1431 = vrot.lane.b32.xlu0 %v1429, 64
    %v1432 = vpop.permute.xlu0 %1431
    %v1434 = vmul.f32 %v1416, %v1432
    %1436 = vrot.lane.b32.xlu0 %v1434, 32
    %v1437 = vpop.permute.xlu0 %1436
    %1439 = vst.msk [vmem:[#allocation3 + $0x38] sm:$0xff] %vm130, %v1437
    %s1440 = scalar_lea.vmem %s4, 1
    %v1441 = vld [vmem:[%s1440] sm:$0x1]
    %v1443 = vperm.slane %v1441, 0
    %1444 = vrot.lane.b32.xlu0 %v1443, 96
    %v1445 = vpop.permute.xlu0 %1444
    %v1447 = vmul.f32 %v1434, %v1445
    %1449 = vrot.lane.b32.xlu0 %v1447, 32
    %v1450 = vpop.permute.xlu0 %1449
    %v1452 = vsel %vm130, %v1450, 0.0
    %1453 = vadd.xlane.f32.xlu0 %v1452
    %v1454 = vpop.xlane.xlu0 %1453
    %s1455 = scalar_lea.vmem %s5, 1
    %v1456 = vld [vmem:[%s1455] sm:$0x1]
    %v1458 = vperm.slane %v1456, 0
    %v1460 = vadd.f32 %v1454, %v1458
    %v1461 = vxor.u32 %v1460, 2147483648
    %v1462 = vmul.f32 %v1461, 1.442695
    %v1463 = vpow.pop %v1462
    %v1464 = vadd.f32 %v1463, 1.0
    %v1465 = vrcp.pop %v1464
    %v1466 = vmul.f32 %v1464, %v1465
    %v1467 = vsub.f32 1.0, %v1466
    %v1468 = vmul.f32 %v1465, %v1467
    %v1469 = vadd.f32 %v1465, %v1468
    %vm1470 = vweird.f32 %v1464
    %vm1471 = vweird.f32 %v1465
    %vm1472 = vmor %vm1470, %vm1471
    %v1473 = vsel %vm1472, %v1465, %v1469
    %v1474 = vand.u32 2147483647, %v1464
    %vm1475 = vcmp.eq.f32.partialorder %v1474, 8.507059e+37
    %v1476 = vand.u32 %v1464, 2147483648
    %v1477 = vor.u32 1.1754944e-38, %v1476
    %v1478 = vsel %vm1475, %v1477, %v1473
    %v1479 = vmul.f32 1.0, %v1478
    %s1480 = scalar_lea.vmem %s8, 8
    %1481 = vst.msk [vmem:[%s1480] sm:$0xff] %vm798, %v1479
    %s1482 = scalar_lea.vmem [#allocation8], 64
    %v1483 = vld [vmem:[%s1482] sm:$0xff]
    %v1484 = vld [vmem:[%s1482 + $0x8] sm:$0xff]
    %v1485 = vld [vmem:[%s1482 + $0x10] sm:$0xff]
    %v1486 = vld [vmem:[%s1482 + $0x18] sm:$0xff]
    %s1487 = scalar_lea.vmem [#allocation10], 64
    %v1488 = vld [vmem:[%s1487] sm:$0xff]
    %v1489 = vld [vmem:[%s1487 + $0x8] sm:$0xff]
    %v1490 = vld [vmem:[%s1487 + $0x10] sm:$0xff]
    %v1491 = vld [vmem:[%s1487 + $0x18] sm:$0xff]
    %s1492 = scalar_lea.vmem %s3, 2
    %v1493 = vld [vmem:[%s1492] sm:$0x1]
    %v1494 = vld [vmem:[#allocation3] sm:$0xff]
    %v1495 = vld [vmem:[#allocation3 + $0x8] sm:$0xff]
    %v1496 = vld [vmem:[#allocation3 + $0x10] sm:$0xff]
    %v1497 = vld [vmem:[#allocation3 + $0x18] sm:$0xff]
    %v1498 = vld [vmem:[#allocation3 + $0x20] sm:$0xff]
    %v1499 = vld [vmem:[#allocation3 + $0x28] sm:$0xff]
    %v1500 = vld [vmem:[#allocation3 + $0x30] sm:$0xff]
    %v1501 = vld [vmem:[#allocation3 + $0x38] sm:$0xff]
    %v1503 = vperm.slane %v1493, 0
    %v1506 = vsel %vm130, %v1494, 0
    %v1509 = vsel %vm130, %v1495, 0
    %v1512 = vsel %vm130, %v1496, 0
    %v1515 = vsel %vm130, %v1497, 0
    %v1518 = vsel %vm130, %v1498, 0
    %v1521 = vsel %vm130, %v1499, 0
    %v1524 = vsel %vm130, %v1500, 0
    %v1527 = vsel %vm130, %v1501, 0
    %1529 = vmatpush.msra.mxu0 0.0
    %1530 = vmatpush.msra.mxu0 0.0
    %1531 = vmatpush.msra.mxu0 0.0
    %1532 = vmatpush.msra.mxu0 0.0
    %1533 = vmatpush.msra.mxu0 0.0
    %1534 = vmatpush.msra.mxu0 0.0
    %1535 = vmatpush.msra.mxu0 0.0
    %1536 = vmatpush.msra.mxu0 0.0
    %1537 = vmatpush.msra.mxu0 0.0
    %1538 = vmatpush.msra.mxu0 0.0
    %1539 = vmatpush.msra.mxu0 0.0
    %1540 = vmatpush.msra.mxu0 0.0
    %1541 = vmatpush.msra.mxu0 %v1486
    %1542 = vmatpush.msra.mxu0 %v1485
    %1543 = vmatpush.msra.mxu0 %v1484
    %1544 = vmatpush.msra.mxu0 %v1483
    %1545 = vmatmul.f32.gmra.mxu0 %v1506
    %v1546 = vpop.f32.mrf.mxu0
    %v1547 = vadd.f32 %v1503, %v1546
    %1548 = vmatmul.f32.gmra.mxu0 %v1509
    %v1549 = vpop.f32.mrf.mxu0
    %v1550 = vadd.f32 %v1503, %v1549
    %1551 = vmatmul.f32.gmra.mxu0 %v1512
    %v1552 = vpop.f32.mrf.mxu0
    %v1553 = vadd.f32 %v1503, %v1552
    %1554 = vmatmul.f32.gmra.mxu0 %v1515
    %v1555 = vpop.f32.mrf.mxu0
    %v1556 = vadd.f32 %v1503, %v1555
    %1557 = vmatmul.f32.gmra.mxu0 %v1518
    %v1558 = vpop.f32.mrf.mxu0
    %v1559 = vadd.f32 %v1503, %v1558
    %1560 = vmatmul.f32.gmra.mxu0 %v1521
    %v1561 = vpop.f32.mrf.mxu0
    %v1562 = vadd.f32 %v1503, %v1561
    %1563 = vmatmul.f32.gmra.mxu0 %v1524
    %v1564 = vpop.f32.mrf.mxu0
    %v1565 = vadd.f32 %v1503, %v1564
    %1566 = vmatmul.f32.gmra.mxu0 %v1527
    %v1567 = vpop.f32.mrf.mxu0
    %v1568 = vadd.f32 %v1503, %v1567
    %1569 = vdwg.mxu0
    %1570 = vst [vmem:[#allocation4] sm:$0xff] %v1547
    %1571 = vst [vmem:[#allocation4 + $0x8] sm:$0xff] %v1550
    %1572 = vst [vmem:[#allocation4 + $0x10] sm:$0xff] %v1553
    %1573 = vst [vmem:[#allocation4 + $0x18] sm:$0xff] %v1556
    %1574 = vst [vmem:[#allocation4 + $0x20] sm:$0xff] %v1559
    %1575 = vst [vmem:[#allocation4 + $0x28] sm:$0xff] %v1562
    %1576 = vst [vmem:[#allocation4 + $0x30] sm:$0xff] %v1565
    %1577 = vst [vmem:[#allocation4 + $0x38] sm:$0xff] %v1568
    %v1578 = vld [vmem:[#allocation4] ss:$8 sm:$0xf]
    %v1579 = vld [vmem:[#allocation4] ss:$8 sm:$0xf0]
    %v1580 = vor.u32 %v1578, %v1579
    %v1581 = vsel %vm130, %v1437, 0
    %1583 = vmatpush.msra.mxu0 0.0
    %1584 = vmatpush.msra.mxu0 0.0
    %1585 = vmatpush.msra.mxu0 0.0
    %1586 = vmatpush.msra.mxu0 0.0
    %1587 = vmatpush.msra.mxu0 0.0
    %1588 = vmatpush.msra.mxu0 0.0
    %1589 = vmatpush.msra.mxu0 0.0
    %1590 = vmatpush.msra.mxu0 0.0
    %1591 = vmatpush.msra.mxu0 0.0
    %1592 = vmatpush.msra.mxu0 0.0
    %1593 = vmatpush.msra.mxu0 0.0
    %1594 = vmatpush.msra.mxu0 0.0
    %1595 = vmatpush.msra.mxu0 %v1491
    %1596 = vmatpush.msra.mxu0 %v1490
    %1597 = vmatpush.msra.mxu0 %v1489
    %1598 = vmatpush.msra.mxu0 %v1488
    %1599 = vmatmul.f32.gmra.mxu0 %v1581
    %v1600 = vpop.f32.mrf.mxu0
    %v1601 = vadd.f32 0.0, %v1600
    %1602 = vdwg.mxu0
    %v1603 = vadd.f32 %v1580, %v1601
    %v1604 = vxor.u32 %v1603, 2147483648
    %v1605 = vmul.f32 %v1604, 1.442695
    %v1606 = vpow.pop %v1605
    %v1607 = vadd.f32 %v1606, 1.0
    %v1608 = vrcp.pop %v1607
    %v1609 = vmul.f32 %v1607, %v1608
    %v1610 = vsub.f32 1.0, %v1609
    %v1611 = vmul.f32 %v1608, %v1610
    %v1612 = vadd.f32 %v1608, %v1611
    %vm1613 = vweird.f32 %v1607
    %vm1614 = vweird.f32 %v1608
    %vm1615 = vmor %vm1613, %vm1614
    %v1616 = vsel %vm1615, %v1608, %v1612
    %v1617 = vand.u32 2147483647, %v1607
    %vm1618 = vcmp.eq.f32.partialorder %v1617, 8.507059e+37
    %v1619 = vand.u32 %v1607, 2147483648
    %v1620 = vor.u32 1.1754944e-38, %v1619
    %v1621 = vsel %vm1618, %v1620, %v1616
    %v1622 = vmul.f32 1.0, %v1621
    %v1623 = vtanh.pop %v1603
    %v1624 = vmul.f32 %v1622, %v1428
    %1626 = vrot.lane.b32.xlu0 %v1623, 64
    %v1627 = vpop.permute.xlu0 %1626
    %v1629 = vmul.f32 %v1622, %v1627
    %1631 = vrot.lane.b32.xlu0 %v1629, 32
    %v1632 = vpop.permute.xlu0 %1631
    %v1634 = vadd.f32 %v1624, %v1632
    %v1635 = vtanh.pop %v1634
    %1637 = vrot.lane.b32.xlu0 %v1635, 64
    %v1638 = vpop.permute.xlu0 %1637
    %v1640 = vmul.f32 %v1622, %v1638
    %v1641 = vld [vmem:[%s277] ss:$8 sm:$0xf]
    %v1642 = vld [vmem:[%s277] ss:$8 sm:$0xf0]
    %v1643 = vor.u32 %v1641, %v1642
    %1645 = vrot.lane.b32.xlu0 %v1640, 32
    %v1646 = vpop.permute.xlu0 %1645
    %v1647 = vsel %vm130, %v1646, 0
    %1649 = vmatpush.msra.mxu0 0.0
    %1650 = vmatpush.msra.mxu0 0.0
    %1651 = vmatpush.msra.mxu0 0.0
    %1652 = vmatpush.msra.mxu0 0.0
    %1653 = vmatpush.msra.mxu0 0.0
    %1654 = vmatpush.msra.mxu0 0.0
    %1655 = vmatpush.msra.mxu0 0.0
    %1656 = vmatpush.msra.mxu0 0.0
    %1657 = vmatpush.msra.mxu0 0.0
    %1658 = vmatpush.msra.mxu0 0.0
    %1659 = vmatpush.msra.mxu0 0.0
    %1660 = vmatpush.msra.mxu0 0.0
    %1661 = vmatpush.msra.mxu0 %v1491
    %1662 = vmatpush.msra.mxu0 %v1490
    %1663 = vmatpush.msra.mxu0 %v1489
    %1664 = vmatpush.msra.mxu0 %v1488
    %1665 = vmatmul.f32.gmra.mxu0 %v1647
    %v1666 = vpop.f32.mrf.mxu0
    %v1667 = vadd.f32 0.0, %v1666
    %1668 = vdwg.mxu0
    %v1669 = vadd.f32 %v1643, %v1667
    %v1670 = vxor.u32 %v1669, 2147483648
    %v1671 = vmul.f32 %v1670, 1.442695
    %v1672 = vpow.pop %v1671
    %v1673 = vadd.f32 %v1672, 1.0
    %v1674 = vrcp.pop %v1673
    %v1675 = vmul.f32 %v1673, %v1674
    %v1676 = vsub.f32 1.0, %v1675
    %v1677 = vmul.f32 %v1674, %v1676
    %v1678 = vadd.f32 %v1674, %v1677
    %vm1679 = vweird.f32 %v1673
    %vm1680 = vweird.f32 %v1674
    %vm1681 = vmor %vm1679, %vm1680
    %v1682 = vsel %vm1681, %v1674, %v1678
    %v1683 = vand.u32 2147483647, %v1673
    %vm1684 = vcmp.eq.f32.partialorder %v1683, 8.507059e+37
    %v1685 = vand.u32 %v1673, 2147483648
    %v1686 = vor.u32 1.1754944e-38, %v1685
    %v1687 = vsel %vm1684, %v1686, %v1682
    %v1688 = vmul.f32 1.0, %v1687
    %v1689 = vtanh.pop %v1669
    %v1690 = vmul.f32 %v1688, %v1634
    %1692 = vrot.lane.b32.xlu0 %v1689, 64
    %v1693 = vpop.permute.xlu0 %1692
    %v1695 = vmul.f32 %v1688, %v1693
    %1697 = vrot.lane.b32.xlu0 %v1695, 32
    %v1698 = vpop.permute.xlu0 %1697
    %v1700 = vadd.f32 %v1690, %v1698
    %v1701 = vtanh.pop %v1700
    %1703 = vrot.lane.b32.xlu0 %v1701, 64
    %v1704 = vpop.permute.xlu0 %1703
    %v1706 = vmul.f32 %v1688, %v1704
    %v1707 = vld [vmem:[%s346] ss:$8 sm:$0xf]
    %v1708 = vld [vmem:[%s346] ss:$8 sm:$0xf0]
    %v1709 = vor.u32 %v1707, %v1708
    %1711 = vrot.lane.b32.xlu0 %v1706, 32
    %v1712 = vpop.permute.xlu0 %1711
    %v1713 = vsel %vm130, %v1712, 0
    %1715 = vmatpush.msra.mxu0 0.0
    %1716 = vmatpush.msra.mxu0 0.0
    %1717 = vmatpush.msra.mxu0 0.0
    %1718 = vmatpush.msra.mxu0 0.0
    %1719 = vmatpush.msra.mxu0 0.0
    %1720 = vmatpush.msra.mxu0 0.0
    %1721 = vmatpush.msra.mxu0 0.0
    %1722 = vmatpush.msra.mxu0 0.0
    %1723 = vmatpush.msra.mxu0 0.0
    %1724 = vmatpush.msra.mxu0 0.0
    %1725 = vmatpush.msra.mxu0 0.0
    %1726 = vmatpush.msra.mxu0 0.0
    %1727 = vmatpush.msra.mxu0 %v1491
    %1728 = vmatpush.msra.mxu0 %v1490
    %1729 = vmatpush.msra.mxu0 %v1489
    %1730 = vmatpush.msra.mxu0 %v1488
    %1731 = vmatmul.f32.gmra.mxu0 %v1713
    %v1732 = vpop.f32.mrf.mxu0
    %v1733 = vadd.f32 0.0, %v1732
    %1734 = vdwg.mxu0
    %v1735 = vadd.f32 %v1709, %v1733
    %v1736 = vxor.u32 %v1735, 2147483648
    %v1737 = vmul.f32 %v1736, 1.442695
    %v1738 = vpow.pop %v1737
    %v1739 = vadd.f32 %v1738, 1.0
    %v1740 = vrcp.pop %v1739
    %v1741 = vmul.f32 %v1739, %v1740
    %v1742 = vsub.f32 1.0, %v1741
    %v1743 = vmul.f32 %v1740, %v1742
    %v1744 = vadd.f32 %v1740, %v1743
    %vm1745 = vweird.f32 %v1739
    %vm1746 = vweird.f32 %v1740
    %vm1747 = vmor %vm1745, %vm1746
    %v1748 = vsel %vm1747, %v1740, %v1744
    %v1749 = vand.u32 2147483647, %v1739
    %vm1750 = vcmp.eq.f32.partialorder %v1749, 8.507059e+37
    %v1751 = vand.u32 %v1739, 2147483648
    %v1752 = vor.u32 1.1754944e-38, %v1751
    %v1753 = vsel %vm1750, %v1752, %v1748
    %v1754 = vmul.f32 1.0, %v1753
    %v1755 = vtanh.pop %v1735
    %v1756 = vmul.f32 %v1754, %v1700
    %1758 = vrot.lane.b32.xlu0 %v1755, 64
    %v1759 = vpop.permute.xlu0 %1758
    %v1761 = vmul.f32 %v1754, %v1759
    %1763 = vrot.lane.b32.xlu0 %v1761, 32
    %v1764 = vpop.permute.xlu0 %1763
    %v1766 = vadd.f32 %v1756, %v1764
    %v1767 = vtanh.pop %v1766
    %1769 = vrot.lane.b32.xlu0 %v1767, 64
    %v1770 = vpop.permute.xlu0 %1769
    %v1772 = vmul.f32 %v1754, %v1770
    %v1773 = vld [vmem:[%s415] ss:$8 sm:$0xf]
    %v1774 = vld [vmem:[%s415] ss:$8 sm:$0xf0]
    %v1775 = vor.u32 %v1773, %v1774
    %1777 = vrot.lane.b32.xlu0 %v1772, 32
    %v1778 = vpop.permute.xlu0 %1777
    %v1779 = vsel %vm130, %v1778, 0
    %1781 = vmatpush.msra.mxu0 0.0
    %1782 = vmatpush.msra.mxu0 0.0
    %1783 = vmatpush.msra.mxu0 0.0
    %1784 = vmatpush.msra.mxu0 0.0
    %1785 = vmatpush.msra.mxu0 0.0
    %1786 = vmatpush.msra.mxu0 0.0
    %1787 = vmatpush.msra.mxu0 0.0
    %1788 = vmatpush.msra.mxu0 0.0
    %1789 = vmatpush.msra.mxu0 0.0
    %1790 = vmatpush.msra.mxu0 0.0
    %1791 = vmatpush.msra.mxu0 0.0
    %1792 = vmatpush.msra.mxu0 0.0
    %1793 = vmatpush.msra.mxu0 %v1491
    %1794 = vmatpush.msra.mxu0 %v1490
    %1795 = vmatpush.msra.mxu0 %v1489
    %1796 = vmatpush.msra.mxu0 %v1488
    %1797 = vmatmul.f32.gmra.mxu0 %v1779
    %v1798 = vpop.f32.mrf.mxu0
    %v1799 = vadd.f32 0.0, %v1798
    %1800 = vdwg.mxu0
    %v1801 = vadd.f32 %v1775, %v1799
    %v1802 = vxor.u32 %v1801, 2147483648
    %v1803 = vmul.f32 %v1802, 1.442695
    %v1804 = vpow.pop %v1803
    %v1805 = vadd.f32 %v1804, 1.0
    %v1806 = vrcp.pop %v1805
    %v1807 = vmul.f32 %v1805, %v1806
    %v1808 = vsub.f32 1.0, %v1807
    %v1809 = vmul.f32 %v1806, %v1808
    %v1810 = vadd.f32 %v1806, %v1809
    %vm1811 = vweird.f32 %v1805
    %vm1812 = vweird.f32 %v1806
    %vm1813 = vmor %vm1811, %vm1812
    %v1814 = vsel %vm1813, %v1806, %v1810
    %v1815 = vand.u32 2147483647, %v1805
    %vm1816 = vcmp.eq.f32.partialorder %v1815, 8.507059e+37
    %v1817 = vand.u32 %v1805, 2147483648
    %v1818 = vor.u32 1.1754944e-38, %v1817
    %v1819 = vsel %vm1816, %v1818, %v1814
    %v1820 = vmul.f32 1.0, %v1819
    %v1821 = vtanh.pop %v1801
    %v1822 = vmul.f32 %v1820, %v1766
    %1824 = vrot.lane.b32.xlu0 %v1821, 64
    %v1825 = vpop.permute.xlu0 %1824
    %v1827 = vmul.f32 %v1820, %v1825
    %1829 = vrot.lane.b32.xlu0 %v1827, 32
    %v1830 = vpop.permute.xlu0 %1829
    %v1832 = vadd.f32 %v1822, %v1830
    %v1833 = vtanh.pop %v1832
    %1835 = vrot.lane.b32.xlu0 %v1833, 64
    %v1836 = vpop.permute.xlu0 %1835
    %v1838 = vmul.f32 %v1820, %v1836
    %v1839 = vld [vmem:[%s484] ss:$8 sm:$0xf]
    %v1840 = vld [vmem:[%s484] ss:$8 sm:$0xf0]
    %v1841 = vor.u32 %v1839, %v1840
    %1843 = vrot.lane.b32.xlu0 %v1838, 32
    %v1844 = vpop.permute.xlu0 %1843
    %v1845 = vsel %vm130, %v1844, 0
    %1847 = vmatpush.msra.mxu0 0.0
    %1848 = vmatpush.msra.mxu0 0.0
    %1849 = vmatpush.msra.mxu0 0.0
    %1850 = vmatpush.msra.mxu0 0.0
    %1851 = vmatpush.msra.mxu0 0.0
    %1852 = vmatpush.msra.mxu0 0.0
    %1853 = vmatpush.msra.mxu0 0.0
    %1854 = vmatpush.msra.mxu0 0.0
    %1855 = vmatpush.msra.mxu0 0.0
    %1856 = vmatpush.msra.mxu0 0.0
    %1857 = vmatpush.msra.mxu0 0.0
    %1858 = vmatpush.msra.mxu0 0.0
    %1859 = vmatpush.msra.mxu0 %v1491
    %1860 = vmatpush.msra.mxu0 %v1490
    %1861 = vmatpush.msra.mxu0 %v1489
    %1862 = vmatpush.msra.mxu0 %v1488
    %1863 = vmatmul.f32.gmra.mxu0 %v1845
    %v1864 = vpop.f32.mrf.mxu0
    %v1865 = vadd.f32 0.0, %v1864
    %1866 = vdwg.mxu0
    %v1867 = vadd.f32 %v1841, %v1865
    %v1868 = vxor.u32 %v1867, 2147483648
    %v1869 = vmul.f32 %v1868, 1.442695
    %v1870 = vpow.pop %v1869
    %v1871 = vadd.f32 %v1870, 1.0
    %v1872 = vrcp.pop %v1871
    %v1873 = vmul.f32 %v1871, %v1872
    %v1874 = vsub.f32 1.0, %v1873
    %v1875 = vmul.f32 %v1872, %v1874
    %v1876 = vadd.f32 %v1872, %v1875
    %vm1877 = vweird.f32 %v1871
    %vm1878 = vweird.f32 %v1872
    %vm1879 = vmor %vm1877, %vm1878
    %v1880 = vsel %vm1879, %v1872, %v1876
    %v1881 = vand.u32 2147483647, %v1871
    %vm1882 = vcmp.eq.f32.partialorder %v1881, 8.507059e+37
    %v1883 = vand.u32 %v1871, 2147483648
    %v1884 = vor.u32 1.1754944e-38, %v1883
    %v1885 = vsel %vm1882, %v1884, %v1880
    %v1886 = vmul.f32 1.0, %v1885
    %v1887 = vtanh.pop %v1867
    %v1888 = vmul.f32 %v1886, %v1832
    %1890 = vrot.lane.b32.xlu0 %v1887, 64
    %v1891 = vpop.permute.xlu0 %1890
    %v1893 = vmul.f32 %v1886, %v1891
    %1895 = vrot.lane.b32.xlu0 %v1893, 32
    %v1896 = vpop.permute.xlu0 %1895
    %v1898 = vadd.f32 %v1888, %v1896
    %v1899 = vtanh.pop %v1898
    %1901 = vrot.lane.b32.xlu0 %v1899, 64
    %v1902 = vpop.permute.xlu0 %1901
    %v1904 = vmul.f32 %v1886, %v1902
    %v1905 = vld [vmem:[%s553] ss:$8 sm:$0xf]
    %v1906 = vld [vmem:[%s553] ss:$8 sm:$0xf0]
    %v1907 = vor.u32 %v1905, %v1906
    %1909 = vrot.lane.b32.xlu0 %v1904, 32
    %v1910 = vpop.permute.xlu0 %1909
    %v1911 = vsel %vm130, %v1910, 0
    %1913 = vmatpush.msra.mxu0 0.0
    %1914 = vmatpush.msra.mxu0 0.0
    %1915 = vmatpush.msra.mxu0 0.0
    %1916 = vmatpush.msra.mxu0 0.0
    %1917 = vmatpush.msra.mxu0 0.0
    %1918 = vmatpush.msra.mxu0 0.0
    %1919 = vmatpush.msra.mxu0 0.0
    %1920 = vmatpush.msra.mxu0 0.0
    %1921 = vmatpush.msra.mxu0 0.0
    %1922 = vmatpush.msra.mxu0 0.0
    %1923 = vmatpush.msra.mxu0 0.0
    %1924 = vmatpush.msra.mxu0 0.0
    %1925 = vmatpush.msra.mxu0 %v1491
    %1926 = vmatpush.msra.mxu0 %v1490
    %1927 = vmatpush.msra.mxu0 %v1489
    %1928 = vmatpush.msra.mxu0 %v1488
    %1929 = vmatmul.f32.gmra.mxu0 %v1911
    %v1930 = vpop.f32.mrf.mxu0
    %v1931 = vadd.f32 0.0, %v1930
    %1932 = vdwg.mxu0
    %v1933 = vadd.f32 %v1907, %v1931
    %v1934 = vxor.u32 %v1933, 2147483648
    %v1935 = vmul.f32 %v1934, 1.442695
    %v1936 = vpow.pop %v1935
    %v1937 = vadd.f32 %v1936, 1.0
    %v1938 = vrcp.pop %v1937
    %v1939 = vmul.f32 %v1937, %v1938
    %v1940 = vsub.f32 1.0, %v1939
    %v1941 = vmul.f32 %v1938, %v1940
    %v1942 = vadd.f32 %v1938, %v1941
    %vm1943 = vweird.f32 %v1937
    %vm1944 = vweird.f32 %v1938
    %vm1945 = vmor %vm1943, %vm1944
    %v1946 = vsel %vm1945, %v1938, %v1942
    %v1947 = vand.u32 2147483647, %v1937
    %vm1948 = vcmp.eq.f32.partialorder %v1947, 8.507059e+37
    %v1949 = vand.u32 %v1937, 2147483648
    %v1950 = vor.u32 1.1754944e-38, %v1949
    %v1951 = vsel %vm1948, %v1950, %v1946
    %v1952 = vmul.f32 1.0, %v1951
    %v1953 = vtanh.pop %v1933
    %v1954 = vmul.f32 %v1952, %v1898
    %1956 = vrot.lane.b32.xlu0 %v1953, 64
    %v1957 = vpop.permute.xlu0 %1956
    %v1959 = vmul.f32 %v1952, %v1957
    %1961 = vrot.lane.b32.xlu0 %v1959, 32
    %v1962 = vpop.permute.xlu0 %1961
    %v1964 = vadd.f32 %v1954, %v1962
    %v1965 = vtanh.pop %v1964
    %1967 = vrot.lane.b32.xlu0 %v1965, 64
    %v1968 = vpop.permute.xlu0 %1967
    %v1970 = vmul.f32 %v1952, %v1968
    %v1971 = vld [vmem:[%s622] ss:$8 sm:$0xf]
    %v1972 = vld [vmem:[%s622] ss:$8 sm:$0xf0]
    %v1973 = vor.u32 %v1971, %v1972
    %1975 = vrot.lane.b32.xlu0 %v1970, 32
    %v1976 = vpop.permute.xlu0 %1975
    %v1977 = vsel %vm130, %v1976, 0
    %1979 = vmatpush.msra.mxu0 0.0
    %1980 = vmatpush.msra.mxu0 0.0
    %1981 = vmatpush.msra.mxu0 0.0
    %1982 = vmatpush.msra.mxu0 0.0
    %1983 = vmatpush.msra.mxu0 0.0
    %1984 = vmatpush.msra.mxu0 0.0
    %1985 = vmatpush.msra.mxu0 0.0
    %1986 = vmatpush.msra.mxu0 0.0
    %1987 = vmatpush.msra.mxu0 0.0
    %1988 = vmatpush.msra.mxu0 0.0
    %1989 = vmatpush.msra.mxu0 0.0
    %1990 = vmatpush.msra.mxu0 0.0
    %1991 = vmatpush.msra.mxu0 %v1491
    %1992 = vmatpush.msra.mxu0 %v1490
    %1993 = vmatpush.msra.mxu0 %v1489
    %1994 = vmatpush.msra.mxu0 %v1488
    %1995 = vmatmul.f32.gmra.mxu0 %v1977
    %v1996 = vpop.f32.mrf.mxu0
    %v1997 = vadd.f32 0.0, %v1996
    %1998 = vdwg.mxu0
    %v1999 = vadd.f32 %v1973, %v1997
    %v2000 = vxor.u32 %v1999, 2147483648
    %v2001 = vmul.f32 %v2000, 1.442695
    %v2002 = vpow.pop %v2001
    %v2003 = vadd.f32 %v2002, 1.0
    %v2004 = vrcp.pop %v2003
    %v2005 = vmul.f32 %v2003, %v2004
    %v2006 = vsub.f32 1.0, %v2005
    %v2007 = vmul.f32 %v2004, %v2006
    %v2008 = vadd.f32 %v2004, %v2007
    %vm2009 = vweird.f32 %v2003
    %vm2010 = vweird.f32 %v2004
    %vm2011 = vmor %vm2009, %vm2010
    %v2012 = vsel %vm2011, %v2004, %v2008
    %v2013 = vand.u32 2147483647, %v2003
    %vm2014 = vcmp.eq.f32.partialorder %v2013, 8.507059e+37
    %v2015 = vand.u32 %v2003, 2147483648
    %v2016 = vor.u32 1.1754944e-38, %v2015
    %v2017 = vsel %vm2014, %v2016, %v2012
    %v2018 = vmul.f32 1.0, %v2017
    %v2019 = vtanh.pop %v1999
    %v2020 = vmul.f32 %v2018, %v1964
    %2022 = vrot.lane.b32.xlu0 %v2019, 64
    %v2023 = vpop.permute.xlu0 %2022
    %v2025 = vmul.f32 %v2018, %v2023
    %2027 = vrot.lane.b32.xlu0 %v2025, 32
    %v2028 = vpop.permute.xlu0 %2027
    %v2030 = vadd.f32 %v2020, %v2028
    %v2031 = vtanh.pop %v2030
    %2033 = vrot.lane.b32.xlu0 %v2031, 64
    %v2034 = vpop.permute.xlu0 %2033
    %v2036 = vmul.f32 %v2018, %v2034
    %v2037 = vld [vmem:[%s691] ss:$8 sm:$0xf]
    %v2038 = vld [vmem:[%s691] ss:$8 sm:$0xf0]
    %v2039 = vor.u32 %v2037, %v2038
    %2041 = vrot.lane.b32.xlu0 %v2036, 32
    %v2042 = vpop.permute.xlu0 %2041
    %v2043 = vsel %vm130, %v2042, 0
    %2045 = vmatpush.msra.mxu0 0.0
    %2046 = vmatpush.msra.mxu0 0.0
    %2047 = vmatpush.msra.mxu0 0.0
    %2048 = vmatpush.msra.mxu0 0.0
    %2049 = vmatpush.msra.mxu0 0.0
    %2050 = vmatpush.msra.mxu0 0.0
    %2051 = vmatpush.msra.mxu0 0.0
    %2052 = vmatpush.msra.mxu0 0.0
    %2053 = vmatpush.msra.mxu0 0.0
    %2054 = vmatpush.msra.mxu0 0.0
    %2055 = vmatpush.msra.mxu0 0.0
    %2056 = vmatpush.msra.mxu0 0.0
    %2057 = vmatpush.msra.mxu0 %v1491
    %2058 = vmatpush.msra.mxu0 %v1490
    %2059 = vmatpush.msra.mxu0 %v1489
    %2060 = vmatpush.msra.mxu0 %v1488
    %2061 = vmatmul.f32.gmra.mxu0 %v2043
    %v2062 = vpop.f32.mrf.mxu0
    %v2063 = vadd.f32 0.0, %v2062
    %2064 = vdwg.mxu0
    %v2065 = vadd.f32 %v2039, %v2063
    %v2066 = vxor.u32 %v2065, 2147483648
    %v2067 = vmul.f32 %v2066, 1.442695
    %v2068 = vpow.pop %v2067
    %v2069 = vadd.f32 %v2068, 1.0
    %v2070 = vrcp.pop %v2069
    %v2071 = vmul.f32 %v2069, %v2070
    %v2072 = vsub.f32 1.0, %v2071
    %v2073 = vmul.f32 %v2070, %v2072
    %v2074 = vadd.f32 %v2070, %v2073
    %vm2075 = vweird.f32 %v2069
    %vm2076 = vweird.f32 %v2070
    %vm2077 = vmor %vm2075, %vm2076
    %v2078 = vsel %vm2077, %v2070, %v2074
    %v2079 = vand.u32 2147483647, %v2069
    %vm2080 = vcmp.eq.f32.partialorder %v2079, 8.507059e+37
    %v2081 = vand.u32 %v2069, 2147483648
    %v2082 = vor.u32 1.1754944e-38, %v2081
    %v2083 = vsel %vm2080, %v2082, %v2078
    %v2084 = vmul.f32 1.0, %v2083
    %v2085 = vtanh.pop %v2065
    %v2086 = vmul.f32 %v2084, %v2030
    %2088 = vrot.lane.b32.xlu0 %v2085, 64
    %v2089 = vpop.permute.xlu0 %2088
    %v2091 = vmul.f32 %v2084, %v2089
    %2093 = vrot.lane.b32.xlu0 %v2091, 32
    %v2094 = vpop.permute.xlu0 %2093
    %v2096 = vadd.f32 %v2086, %v2094
    %v2097 = vtanh.pop %v2096
    %2099 = vrot.lane.b32.xlu0 %v2097, 64
    %v2100 = vpop.permute.xlu0 %2099
    %v2102 = vmul.f32 %v2084, %v2100
    %s2103 = scalar_lea.vmem %s4, 2
    %v2104 = vld [vmem:[%s2103] sm:$0x1]
    %v2106 = vperm.slane %v2104, 0
    %2107 = vrot.lane.b32.xlu0 %v2106, 96
    %v2108 = vpop.permute.xlu0 %2107
    %v2110 = vmul.f32 %v2102, %v2108
    %2112 = vrot.lane.b32.xlu0 %v2110, 32
    %v2113 = vpop.permute.xlu0 %2112
    %v2115 = vsel %vm130, %v2113, 0.0
    %2116 = vadd.xlane.f32.xlu0 %v2115
    %v2117 = vpop.xlane.xlu0 %2116
    %s2118 = scalar_lea.vmem %s5, 2
    %v2119 = vld [vmem:[%s2118] sm:$0x1]
    %v2121 = vperm.slane %v2119, 0
    %v2123 = vadd.f32 %v2117, %v2121
    %v2124 = vxor.u32 %v2123, 2147483648
    %v2125 = vmul.f32 %v2124, 1.442695
    %v2126 = vpow.pop %v2125
    %v2127 = vadd.f32 %v2126, 1.0
    %v2128 = vrcp.pop %v2127
    %v2129 = vmul.f32 %v2127, %v2128
    %v2130 = vsub.f32 1.0, %v2129
    %v2131 = vmul.f32 %v2128, %v2130
    %v2132 = vadd.f32 %v2128, %v2131
    %vm2133 = vweird.f32 %v2127
    %vm2134 = vweird.f32 %v2128
    %vm2135 = vmor %vm2133, %vm2134
    %v2136 = vsel %vm2135, %v2128, %v2132
    %v2137 = vand.u32 2147483647, %v2127
    %vm2138 = vcmp.eq.f32.partialorder %v2137, 8.507059e+37
    %v2139 = vand.u32 %v2127, 2147483648
    %v2140 = vor.u32 1.1754944e-38, %v2139
    %v2141 = vsel %vm2138, %v2140, %v2136
    %v2142 = vmul.f32 1.0, %v2141
    %s2143 = scalar_lea.vmem %s8, 16
    %2144 = vst.msk [vmem:[%s2143] sm:$0xff] %vm798, %v2142
    %2146 = vrot.lane.b32.xlu0 %v2102, 32
    %v2147 = vpop.permute.xlu0 %2146
    %2149 = vst.msk [vmem:[#allocation14] sm:$0xff] %vm130, %v2147
    %2151 = vrot.lane.b32.xlu0 %v2096, 96
    %v2152 = vpop.permute.xlu0 %2151
    %2154 = vst.msk [vmem:[#allocation15] sm:$0xff] %vm130, %v2152
    // Predicated region
    $region54: #{controller_net_forward.1} parent=1 // pred_check
      _
    $region55: #{controller_net_forward.1} parent=1 // pred_check_branch
      %2156 = sbr.rel (0) target = $region57
    $region56: #{controller_net_forward.1} parent=1 // pred_region
      _
    $region57: #{controller_net_forward.1} parent=1 // pred_fallthru
      _
    // Predicated region
    $region58: #{controller_net_forward.1} parent=1 // pred_check
      _
    $region59: #{controller_net_forward.1} parent=1 // pred_check_branch
      %2158 = sbr.rel (0) target = $region61
    $region60: #{controller_net_forward.1} parent=1 // pred_region
      %2160 = vsyncadd [#allocation7], 0
      %s2162 = sshll.u32 [#allocation14], 4
      %s2163 = int_to_ptr.vmem [resolvable:$true] %s2162
      %s2164 = sshll.u32 %s9, 4
      %s2165 = int_to_ptr.hbm [resolvable:$true] %s2164
      %2167 = dma.vmem_to_hbm [thread:$0]  %s2163, 128, %s2165, [#allocation7]
    $region61: #{controller_net_forward.1} parent=1 // pred_fallthru
      _
    // Predicated region
    $region62: #{controller_net_forward.1} parent=1 // pred_check
      _
    $region63: #{controller_net_forward.1} parent=1 // pred_check_branch
      %2169 = sbr.rel (0) target = $region65
    $region64: #{controller_net_forward.1} parent=1 // pred_region
      %2171 = vsyncadd [#allocation16], 0
      %s2173 = sshll.u32 [#allocation15], 4
      %s2174 = int_to_ptr.vmem [resolvable:$true] %s2173
      %s2175 = sshll.u32 %s10, 4
      %s2176 = int_to_ptr.hbm [resolvable:$true] %s2175
      %2178 = dma.vmem_to_hbm [thread:$0]  %s2174, 128, %s2176, [#allocation16]
    $region65: #{controller_net_forward.1} parent=1 // pred_fallthru
      _
    // Predicated region
    $region66: #{controller_net_forward.1} parent=1 // pred_check
      _
    $region67: #{controller_net_forward.1} parent=1 // pred_check_branch
      %2180 = sbr.rel (0) target = $region69
    $region68: #{controller_net_forward.1} parent=1 // pred_region
      _
    $region69: #{controller_net_forward.1} parent=1 // pred_fallthru
      _
    // Predicated region
    $region70: #{controller_net_forward.1} parent=1 // pred_check
      _
    $region71: #{controller_net_forward.1} parent=1 // pred_check_branch
      %2182 = sbr.rel (0) target = $region73
    $region72: #{controller_net_forward.1} parent=1 // pred_region
      %2184 = dma.done [#allocation7], 128
    $region73: #{controller_net_forward.1} parent=1 // pred_fallthru
      _
    // Predicated region
    $region74: #{controller_net_forward.1} parent=1 // pred_check
      _
    $region75: #{controller_net_forward.1} parent=1 // pred_check_branch
      %2186 = sbr.rel (0) target = $region77
    $region76: #{controller_net_forward.1} parent=1 // pred_region
      %2188 = dma.done [#allocation16], 128
    $region77: #{controller_net_forward.1} parent=1 // pred_fallthru
      _
    %2189 = vsyncpa [#allocation6], 1
    %2190 = vsyncpa [#allocation9], 1
    %2191 = vsyncpa [#allocation12], 1
    %2192 = vsyncpa [#allocation7], 1
    %2193 = vsyncpa [#allocation16], 1

</llo_original>
